<compile_context>
chip_gen: v7x
topology: tpu7x:2x2x1
jax: 0.10.0
libtpu: 0.0.40
codegen_flags: <defaults>
</compile_context>

<pallas_src>
import functools

import jax
import jax.numpy as jnp
from jax.experimental import pallas as pl
from jax.experimental.pallas import tpu as pltpu

BN_EPS = 1e-5


# ----------------------------------------------------------------------------
# Pallas kernels
# ----------------------------------------------------------------------------
def _matmul_bn_act_kernel(*refs, relu, residual):
    """Tiled matmul with f32 accumulation; epilogue = BN scale/shift
    (+ residual) (+ ReLU).  Grid = (M tiles, N tiles, K tiles), K innermost."""
    if residual:
        a_ref, w_ref, scale_ref, shift_ref, r_ref, o_ref, acc_ref = refs
    else:
        a_ref, w_ref, scale_ref, shift_ref, o_ref, acc_ref = refs
        r_ref = None

    @pl.when(pl.program_id(2) == 0)
    def _init():
        acc_ref[...] = jnp.zeros_like(acc_ref)

    acc_ref[...] += jnp.dot(a_ref[...], w_ref[...],
                            preferred_element_type=jnp.float32)

    @pl.when(pl.program_id(2) == pl.num_programs(2) - 1)
    def _finalize():
        y = acc_ref[...] * scale_ref[...] + shift_ref[...]
        if residual:
            y = y + r_ref[...].astype(jnp.float32)
        if relu:
            y = jnp.maximum(y, 0.0)
        o_ref[...] = y.astype(o_ref.dtype)


def _max_over_windows_kernel(x_ref, o_ref):
    # x: (KW, tm, C) -> max over the window (tap) axis.
    o_ref[...] = jnp.max(x_ref[...], axis=0)


def _mean_hw_kernel(x_ref, o_ref):
    # x: (N, HW, C) bf16 -> f32 mean over the spatial axis (global avg pool).
    o_ref[...] = jnp.mean(x_ref[...].astype(jnp.float32), axis=1)


# ----------------------------------------------------------------------------
# Tile helpers (always return a divisor of the dimension)
# ----------------------------------------------------------------------------
def _row_tile(m):
    for t in (512, 256, 128, 64, 32, 16, 8):
        if m % t == 0:
            return t
    return m


def _col_tile(n):
    for t in (512, 256, 128):
        if n % t == 0:
            return t
    return n


def _k_tile(k):
    if k <= 768:
        return k
    for t in (512, 384, 256, 128):   # multiples of 128 (lane-aligned A blocks)
        if k % t == 0:
            return t
    return k


# ----------------------------------------------------------------------------
# Cached pallas_call builders (one Mosaic kernel per distinct shape/config)
# ----------------------------------------------------------------------------
@functools.lru_cache(maxsize=None)
def _make_matmul_bn_act(M, K, N, relu, residual):
    tm, tn, tk = _row_tile(M), _col_tile(N), _k_tile(K)
    assert M % tm == 0 and N % tn == 0 and K % tk == 0
    gm, gn, gk = M // tm, N // tn, K // tk
    kern = functools.partial(_matmul_bn_act_kernel, relu=relu,
                             residual=residual)
    in_specs = [
        pl.BlockSpec((tm, tk), lambda i, j, k: (i, k)),      # activations
        pl.BlockSpec((tk, tn), lambda i, j, k: (k, j)),      # weights
        pl.BlockSpec((1, tn), lambda i, j, k: (0, j)),       # BN scale
        pl.BlockSpec((1, tn), lambda i, j, k: (0, j)),       # BN shift
    ]
    if residual:
        in_specs.append(pl.BlockSpec((tm, tn), lambda i, j, k: (i, j)))
    return pl.pallas_call(
        kern,
        out_shape=jax.ShapeDtypeStruct((M, N), jnp.bfloat16),
        grid=(gm, gn, gk),
        in_specs=in_specs,
        out_specs=pl.BlockSpec((tm, tn), lambda i, j, k: (i, j)),
        scratch_shapes=[pltpu.VMEM((tm, tn), jnp.float32)],
        compiler_params=pltpu.CompilerParams(
            dimension_semantics=("parallel", "parallel", "arbitrary")),
        cost_estimate=pl.CostEstimate(
            flops=2 * M * K * N,
            transcendentals=0,
            bytes_accessed=2 * (M * K + K * N + M * N)),
    )


@functools.lru_cache(maxsize=None)
def _make_max_over_windows(KW, M, C):
    tm = _row_tile(M)
    return pl.pallas_call(
        _max_over_windows_kernel,
        out_shape=jax.ShapeDtypeStruct((M, C), jnp.bfloat16),
        grid=(M // tm,),
        in_specs=[pl.BlockSpec((KW, tm, C), lambda i: (0, i, 0))],
        out_specs=pl.BlockSpec((tm, C), lambda i: (i, 0)),
        compiler_params=pltpu.CompilerParams(
            dimension_semantics=("parallel",)),
    )


@functools.lru_cache(maxsize=None)
def _make_avgpool(N, HW, C):
    return pl.pallas_call(
        _mean_hw_kernel,
        out_shape=jax.ShapeDtypeStruct((N, C), jnp.float32),
        grid=(1,),
        in_specs=[pl.BlockSpec((N, HW, C), lambda i: (0, 0, 0))],
        out_specs=pl.BlockSpec((N, C), lambda i: (0, 0)),
    )


# ----------------------------------------------------------------------------
# Layer wrappers (glue is traced inside jit; compute is the Pallas kernels)
# ----------------------------------------------------------------------------
def conv2d_bn_act(x, w, scale, shift, stride, pad, relu, residual=None):
    """x: (N,H,W,Cin) bf16 NHWC.  w: (kh,kw,Cin,Cout) bf16 HWIO.
    Returns (N,Ho,Wo,Cout) bf16.  BN folded into scale/shift (f32)."""
    N, H, W, C = x.shape
    kh, kw, cin, cout = w.shape
    assert cin == C
    if kh == 1 and kw == 1 and pad == 0:
        xs = x[:, ::stride, ::stride, :]
        _, Ho, Wo, _ = xs.shape
        a = xs.reshape(N * Ho * Wo, C)
    else:
        xp = jnp.pad(x, ((0, 0), (pad, pad), (pad, pad), (0, 0)))
        Ho = (H + 2 * pad - kh) // stride + 1
        Wo = (W + 2 * pad - kw) // stride + 1
        cols = []
        for i in range(kh):
            for j in range(kw):
                cols.append(
                    xp[:, i:i + (Ho - 1) * stride + 1:stride,
                       j:j + (Wo - 1) * stride + 1:stride, :])
        a = jnp.stack(cols, axis=3).reshape(N * Ho * Wo, kh * kw * C)
    wmat = w.reshape(kh * kw * cin, cout)
    M, K = a.shape
    args = [a, wmat, scale, shift]
    if residual is not None:
        args.append(residual.reshape(M, cout).astype(jnp.bfloat16))
    out = _make_matmul_bn_act(M, K, cout, relu, residual is not None)(*args)
    return out.reshape(N, Ho, Wo, cout)


def maxpool_3x3_s2(x):
    """3x3 max pool, stride 2, pad 1 (window gather fused by XLA; reduce in
    a tiled Pallas kernel)."""
    N, H, W, C = x.shape
    k, s, pad = 3, 2, 1
    Ho = (H + 2 * pad - k) // s + 1
    Wo = (W + 2 * pad - k) // s + 1
    xp = jnp.pad(x, ((0, 0), (pad, pad), (pad, pad), (0, 0)),
                 constant_values=-jnp.inf)
    shifts = []
    for i in range(k):
        for j in range(k):
            shifts.append(
                xp[:, i:i + (Ho - 1) * s + 1:s, j:j + (Wo - 1) * s + 1:s, :])
    stacked = jnp.stack(shifts, axis=0).reshape(k * k, N * Ho * Wo, C)
    out = _make_max_over_windows(k * k, N * Ho * Wo, C)(stacked)
    return out.reshape(N, Ho, Wo, C)


def global_avgpool(x):
    N, H, W, C = x.shape
    return _make_avgpool(N, H * W, C)(x.reshape(N, H * W, C))


# ----------------------------------------------------------------------------
# Jitted stages: stem, bottleneck, head
# ----------------------------------------------------------------------------
@jax.jit
def _stem_fwd(x_nchw, conv1_w, bn1_scale, bn1_shift):
    x = jnp.transpose(x_nchw, (0, 2, 3, 1)).astype(jnp.bfloat16)  # NCHW->NHWC
    x = conv2d_bn_act(x, conv1_w, bn1_scale, bn1_shift,
                      stride=2, pad=3, relu=True)
    return maxpool_3x3_s2(x)


@functools.partial(jax.jit, static_argnames=("stride",))
def _bottleneck_fwd(x, p, *, stride):
    identity = x
    out = conv2d_bn_act(x, p['w1'], p['s1'], p['b1'], 1, 0, True)
    out = conv2d_bn_act(out, p['w2'], p['s2'], p['b2'], stride, 1, True)
    if 'wd' in p:
        identity = conv2d_bn_act(x, p['wd'], p['sd'], p['bd'],
                                 stride, 0, False)
    # conv3 + BN + residual add + ReLU fused into one Pallas epilogue.
    return conv2d_bn_act(out, p['w3'], p['s3'], p['b3'], 1, 0, True,
                         residual=identity)


@jax.jit
def _head_fwd(x):
    pooled = global_avgpool(x)          # (N, 2048) f32 == AdaptiveAvgPool2d(1)
    return pooled.reshape(-1, 2048)     # == x.view(-1, 2048)


# ----------------------------------------------------------------------------
# Deterministic parameter construction (ResNet-152: blocks = [3, 8, 36, 3])
# ----------------------------------------------------------------------------
class KeyGen:
    def __init__(self, key):
        self._key = key
        self._i = 0

    def __call__(self):
        self._i += 1
        return jax.random.fold_in(self._key, self._i)


def _conv_w(key, kh, kw, cin, cout):
    w = 0.02 * jax.random.normal(key, (kh, kw, cin, cout), jnp.float32)
    return w.astype(jnp.bfloat16)


def _bn(kg, c):
    gamma = 1.0 + 0.05 * jax.random.normal(kg(), (c,), jnp.float32)
    beta = 0.01 * jax.random.normal(kg(), (c,), jnp.float32)
    running_mean = 0.01 * jax.random.normal(kg(), (c,), jnp.float32)
    running_var = 1.0 + 0.05 * jax.random.uniform(kg(), (c,), jnp.float32)
    scale = gamma / jnp.sqrt(running_var + BN_EPS)
    shift = beta - running_mean * scale
    return scale.reshape(1, c), shift.reshape(1, c)


def build_resnet152_params(key):
    kg = KeyGen(key)
    params = {'conv1_w': _conv_w(kg(), 7, 7, 3, 64), 'bn1': _bn(kg, 64)}
    cfg = [(64, 3), (128, 8), (256, 36), (512, 3)]
    inplanes, expansion = 64, 4
    layers = []
    for li, (planes, nblocks) in enumerate(cfg):
        blocks = []
        for b in range(nblocks):
            s = (1 if li == 0 else 2) if b == 0 else 1
            blk = {}
            blk['w1'] = _conv_w(kg(), 1, 1, inplanes, planes)
            blk['s1'], blk['b1'] = _bn(kg, planes)
            blk['w2'] = _conv_w(kg(), 3, 3, planes, planes)
            blk['s2'], blk['b2'] = _bn(kg, planes)
            blk['w3'] = _conv_w(kg(), 1, 1, planes, planes * expansion)
            blk['s3'], blk['b3'] = _bn(kg, planes * expansion)
            if s != 1 or inplanes != planes * expansion:
                blk['wd'] = _conv_w(kg(), 1, 1, inplanes, planes * expansion)
                blk['sd'], blk['bd'] = _bn(kg, planes * expansion)
            blocks.append(blk)
            inplanes = planes * expansion
        layers.append(blocks)
    params['layers'] = layers
    return params


# ----------------------------------------------------------------------------
# Encoder forward: resnet152 children[:-1] (conv1..avgpool) then view(-1, 2048)
# ----------------------------------------------------------------------------
def encoder_forward(params, x_nchw):
    x = _stem_fwd(x_nchw, params['conv1_w'], *params['bn1'])
    for li, blocks in enumerate(params['layers']):
        for bi, blk in enumerate(blocks):
            stride = (1 if li == 0 else 2) if bi == 0 else 1
            x = _bottleneck_fwd(x, blk, stride=stride)
    return _head_fwd(x)


if __name__ == "__main__":
    root = jax.random.PRNGKey(0)
    params = build_resnet152_params(jax.random.fold_in(root, 1))
    # Small input consistent with the module: NCHW, 3 channels, 64x64 spatial.
    x = jax.random.normal(jax.random.fold_in(root, 2), (2, 3, 64, 64),
                          jnp.float32)
    out = encoder_forward(params, x)
    out = jax.block_until_ready(out)
    assert out.shape == (2, 2048), out.shape
    assert bool(jnp.all(jnp.isfinite(out)))
    print("KERNEL_OK")
</pallas_src>

<mosaic_0001>
module attributes {stable_mosaic.version = 11 : i64} {
  func.func @_matmul_bn_act_kernel(%arg0: i32, %arg1: i32, %arg2: i32, %arg3: memref<512x147xbf16, #tpu.memory_space<vmem>>, %arg4: memref<147x64xbf16, #tpu.memory_space<vmem>>, %arg5: memref<1x64xf32, #tpu.memory_space<vmem>>, %arg6: memref<1x64xf32, #tpu.memory_space<vmem>>, %arg7: memref<512x64xbf16, #tpu.memory_space<vmem>>, %arg8: memref<512x64xf32, #tpu.memory_space<vmem>>) attributes {dimension_semantics = [#tpu.dimension_semantics<parallel>, #tpu.dimension_semantics<parallel>, #tpu.dimension_semantics<arbitrary>], iteration_bounds = array<i64: 4, 1, 1>, scalar_prefetch = 0 : i64, scratch_operands = 1 : i64, tpu.core_type = #tpu.core_type<tc>, window_params = [{transform_indices = @transform_0, window_bounds = array<i64: 512, 147>}, {transform_indices = @transform_1, window_bounds = array<i64: 147, 64>}, {transform_indices = @transform_2, window_bounds = array<i64: 1, 64>}, {transform_indices = @transform_3, window_bounds = array<i64: 1, 64>}, {transform_indices = @transform_4, window_bounds = array<i64: 512, 64>}]} {
    %c0_i32 = arith.constant 0 : i32
    %0 = arith.cmpi eq, %arg2, %c0_i32 : i32
    %1 = arith.extui %0 : i1 to i32
    %c0_i32_0 = arith.constant 0 : i32
    %2 = arith.cmpi ne, %1, %c0_i32_0 : i32
    scf.if %2 {
      %cst_10 = arith.constant 0.000000e+00 : f32
      %12 = vector.broadcast %cst_10 : f32 to vector<512x64xf32>
      %c0_11 = arith.constant 0 : index
      %c0_12 = arith.constant 0 : index
      %13 = vector.load %arg8[%c0_11, %c0_12] : memref<512x64xf32, #tpu.memory_space<vmem>>, vector<512x64xf32>
      tpu.vector_store %arg8[%c0_11, %c0_12], %12 {strides = array<i32>} : memref<512x64xf32, #tpu.memory_space<vmem>>, vector<512x64xf32>,
    } else {
    }
    %c0 = arith.constant 0 : index
    %c0_1 = arith.constant 0 : index
    %3 = vector.load %arg8[%c0, %c0_1] : memref<512x64xf32, #tpu.memory_space<vmem>>, vector<512x64xf32>
    %c0_2 = arith.constant 0 : index
    %c0_3 = arith.constant 0 : index
    %4 = vector.load %arg3[%c0_2, %c0_3] : memref<512x147xbf16, #tpu.memory_space<vmem>>, vector<512x147xbf16>
    %c0_4 = arith.constant 0 : index
    %c0_5 = arith.constant 0 : index
    %5 = vector.load %arg4[%c0_4, %c0_5] : memref<147x64xbf16, #tpu.memory_space<vmem>>, vector<147x64xbf16>
    %cst = arith.constant dense<0.000000e+00> : vector<512x64xf32>
    %6 = tpu.matmul %4, %5, %cst {dimension_numbers = #tpu.dot_dimension_numbers<[1], [0], [0], [1], [0, 0, 1, 1], [], []>} : vector<512x147xbf16>, vector<147x64xbf16>, vector<512x64xf32> -> vector<512x64xf32>
    %7 = arith.addf %3, %6 : vector<512x64xf32>
    %c0_6 = arith.constant 0 : index
    %c0_7 = arith.constant 0 : index
    %8 = vector.load %arg8[%c0_6, %c0_7] : memref<512x64xf32, #tpu.memory_space<vmem>>, vector<512x64xf32>
    tpu.vector_store %arg8[%c0_6, %c0_7], %7 {strides = array<i32>} : memref<512x64xf32, #tpu.memory_space<vmem>>, vector<512x64xf32>,
    %c0_i32_8 = arith.constant 0 : i32
    %9 = arith.cmpi eq, %arg2, %c0_i32_8 : i32
    %10 = arith.extui %9 : i1 to i32
    %c0_i32_9 = arith.constant 0 : i32
    %11 = arith.cmpi ne, %10, %c0_i32_9 : i32
    scf.if %11 {
      %c0_10 = arith.constant 0 : index
      %c0_11 = arith.constant 0 : index
      %12 = vector.load %arg8[%c0_10, %c0_11] : memref<512x64xf32, #tpu.memory_space<vmem>>, vector<512x64xf32>
      %c0_12 = arith.constant 0 : index
      %c0_13 = arith.constant 0 : index
      %13 = vector.load %arg5[%c0_12, %c0_13] : memref<1x64xf32, #tpu.memory_space<vmem>>, vector<1x64xf32>
      %14 = vector.broadcast %13 : vector<1x64xf32> to vector<512x64xf32>
      %15 = arith.mulf %12, %14 : vector<512x64xf32>
      %c0_14 = arith.constant 0 : index
      %c0_15 = arith.constant 0 : index
      %16 = vector.load %arg6[%c0_14, %c0_15] : memref<1x64xf32, #tpu.memory_space<vmem>>, vector<1x64xf32>
      %17 = vector.broadcast %16 : vector<1x64xf32> to vector<512x64xf32>
      %18 = arith.addf %15, %17 : vector<512x64xf32>
      %cst_16 = arith.constant 0.000000e+00 : f32
      %19 = vector.broadcast %cst_16 : f32 to vector<512x64xf32>
      %20 = arith.maximumf %18, %19 : vector<512x64xf32>
      %21 = arith.truncf %20 : vector<512x64xf32> to vector<512x64xbf16>
      %c0_17 = arith.constant 0 : index
      %c0_18 = arith.constant 0 : index
      %22 = vector.load %arg7[%c0_17, %c0_18] : memref<512x64xbf16, #tpu.memory_space<vmem>>, vector<512x64xbf16>
      tpu.vector_store %arg7[%c0_17, %c0_18], %21 {strides = array<i32>} : memref<512x64xbf16, #tpu.memory_space<vmem>>, vector<512x64xbf16>,
    } else {
    }
    return
  }
  func.func @transform_0(%arg0: i32, %arg1: i32, %arg2: i32) -> (i32, i32) {
    %c0_i32 = arith.constant 0 : i32
    return %arg0, %arg2 : i32, i32
  }
  func.func @transform_1(%arg0: i32, %arg1: i32, %arg2: i32) -> (i32, i32) {
    %c0_i32 = arith.constant 0 : i32
    return %arg2, %arg1 : i32, i32
  }
  func.func @transform_2(%arg0: i32, %arg1: i32, %arg2: i32) -> (i32, i32) {
    %c0_i32 = arith.constant 0 : i32
    %c0_i32_0 = arith.constant 0 : i32
    return %c0_i32, %arg1 : i32, i32
  }
  func.func @transform_3(%arg0: i32, %arg1: i32, %arg2: i32) -> (i32, i32) {
    %c0_i32 = arith.constant 0 : i32
    %c0_i32_0 = arith.constant 0 : i32
    return %c0_i32, %arg1 : i32, i32
  }
  func.func @transform_4(%arg0: i32, %arg1: i32, %arg2: i32) -> (i32, i32) {
    %c0_i32 = arith.constant 0 : i32
    return %arg0, %arg1 : i32, i32
  }
}

module attributes {stable_mosaic.version = 11 : i64} {
  func.func @_max_over_windows_kernel(%arg0: i32, %arg1: memref<9x512x64xbf16, #tpu.memory_space<vmem>>, %arg2: memref<512x64xbf16, #tpu.memory_space<vmem>>) attributes {dimension_semantics = [#tpu.dimension_semantics<parallel>], iteration_bounds = array<i64: 1>, scalar_prefetch = 0 : i64, scratch_operands = 0 : i64, tpu.core_type = #tpu.core_type<tc>, window_params = [{transform_indices = @transform_0, window_bounds = array<i64: 9, 512, 64>}, {transform_indices = @transform_1, window_bounds = array<i64: 512, 64>}]} {
    %c0 = arith.constant 0 : index
    %c0_0 = arith.constant 0 : index
    %c0_1 = arith.constant 0 : index
    %0 = vector.load %arg1[%c0, %c0_0, %c0_1] : memref<9x512x64xbf16, #tpu.memory_space<vmem>>, vector<9x512x64xbf16>
    %cst = arith.constant dense<0xFF80> : vector<512x64xbf16>
    %1 = vector.multi_reduction <maximumf>, %0, %cst [0] : vector<9x512x64xbf16> to vector<512x64xbf16>
    %c0_2 = arith.constant 0 : index
    %c0_3 = arith.constant 0 : index
    %2 = vector.load %arg2[%c0_2, %c0_3] : memref<512x64xbf16, #tpu.memory_space<vmem>>, vector<512x64xbf16>
    tpu.vector_store %arg2[%c0_2, %c0_3], %1 {strides = array<i32>} : memref<512x64xbf16, #tpu.memory_space<vmem>>, vector<512x64xbf16>,
    return
  }
  func.func @transform_0(%arg0: i32) -> (i32, i32, i32) {
    %c0_i32 = arith.constant 0 : i32
    %c0_i32_0 = arith.constant 0 : i32
    %c0_i32_1 = arith.constant 0 : i32
    return %c0_i32, %arg0, %c0_i32_0 : i32, i32, i32
  }
  func.func @transform_1(%arg0: i32) -> (i32, i32) {
    %c0_i32 = arith.constant 0 : i32
    %c0_i32_0 = arith.constant 0 : i32
    return %arg0, %c0_i32 : i32, i32
  }
}

</mosaic_0001>

<llo_original>
// kernel: _stem_fwd.2
$region0: #{_stem_fwd.2}
  #allocation0 [shape = 'u32[]', space=smem, size = 0x4, offset = 0x4, fixed_abs, tag = 'smem constant byte address 0x4 - core index']
  #allocation1 [shape = 'u32[144,128]{1,0:T(1,128)}', space=vmem, size = 0x12000, scoped, tag = 'internal scratch']
  #allocation2 [shape = 'f32[512,64]{1,0:T(8,128)}', space=vmem, size = 0x40000, scoped, tag = 'scratch operand']
  %s0 = inlined_call_operand.vmem [shape: bf16[2048,147], index: 0, kind: input, shape index: {}]
  %s1 = inlined_call_operand.vmem [shape: bf16[147,64], index: 1, kind: input, shape index: {}]
  %s2 = inlined_call_operand.vmem [shape: f32[1,64], index: 2, kind: input, shape index: {}]
  %s3 = inlined_call_operand.vmem [shape: f32[1,64], index: 3, kind: input, shape index: {}]
  %s4 = inlined_call_operand.vmem [shape: bf16[2048,64], index: 4, kind: output, shape index: {}]
  %s5 = sld [smem:[#allocation0]]
  $region57: #{_stem_fwd.2} parent=0
    _
  %s7 = ssub.s32 1, %s5
  %s8 = scalar_select 0, %s7, %s5
  loop: start=0, step=1, limit=6
  $region2: #{_stem_fwd.2} parent=0 // loop_pre_header
    _
  $region3: #{_stem_fwd.2} parent=0 // loop_header
    %s10 = sphi 0, %s14
    %p11 = scmp.ge.s32.totalorder %s10, 6
    %s17 = sphi 0, %s36
    %s18 = sphi 0, %s32
    %s19 = sphi 0, %s28
    %s20 = sphi 0, %s17
    %s21 = sphi 0, %s18
    %s22 = sphi 0, %s19
    %s23 = sphi 0, %s20
    %s24 = sphi 0, %s21
    %s25 = sphi 0, %s22
    %s41 = sphi 0, %s43
    %s44 = sphi 0, %s41
    %s45 = sphi 0, %s44
    %s61 = sphi 0, %s45
    %s69 = sphi 0, %s71
    %s72 = sphi 0, %s69
    %s73 = sphi 0, %s72
    %s89 = sphi 0, %s73
    %s95 = sphi 0, %s97
    %s98 = sphi 0, %s95
    %s99 = sphi 0, %s98
    %s115 = sphi 0, %s99
    %s121 = sphi 0, %s123
    %s124 = sphi 0, %s121
    %s125 = sphi 0, %s124
    %s141 = sphi 0, %s125
    %s149 = sphi 0, %s151
    %s152 = sphi 0, %s149
    %s153 = sphi 0, %s152
    %s169 = sphi 0, %s153
  $region4: #{_stem_fwd.2} parent=0 // loop_header_branch
    %13 = sbr.rel (%p11) target = $region8
  $region5: #{_stem_fwd.2} parent=0 // loop_body
    %s15 = ssub.s32 %s10, 1
    %s16 = ssub.s32 %s10, 2
    %s26 = sadd.s32 1, %s19
    %p27 = scmp.ge.s32.totalorder %s26, 1
    %s28 = scalar_select %p27, 0, %s26
    %s29 = sadd.s32 1, %s18
    %s30 = scalar_select %p27, %s29, %s18
    %p31 = scmp.ge.s32.totalorder %s30, 1
    %s32 = scalar_select %p31, 0, %s30
    %s33 = sadd.s32 1, %s17
    %s34 = scalar_select %p31, %s33, %s17
    %p35 = scmp.ge.s32.totalorder %s34, 4
    %s36 = scalar_select %p35, 0, %s34
    %s37 = ssub.s32 %s17, %s36
    %s38 = ssub.s32 %s19, %s28
    %s39 = sor.u32 %s37, %s38
    %p40 = scmp.eq.s32.totalorder %s39, 0
    %s42 = sadd.s32 %s41, 1
    %s43 = scalar_select %p40, %s41, %s42
    %p46 = pneg %p40
    %p47 = scmp.eq.s32.totalorder %s10, 3
    %p48 = por %p46, %p47
    %p49 = scmp.ne.s32.totalorder %s41, %s44
    %p50 = scmp.eq.s32.totalorder %s10, 0
    %p51 = por %p49, %p50
    %p52 = scmp.ne.s32.totalorder %s41, %s44
    %p53 = scmp.eq.s32.totalorder %s15, 3
    %p54 = por %p52, %p53
    %p55 = scmp.ne.s32.totalorder %s44, %s45
    %p56 = scmp.eq.s32.totalorder %s15, 0
    %p57 = por %p55, %p56
    %p58 = scmp.ne.s32.totalorder %s44, %s45
    %p59 = scmp.eq.s32.totalorder %s16, 3
    %p60 = por %p58, %p59
    %p62 = scmp.ne.s32.totalorder %s45, %s61
    %p63 = scmp.eq.s32.totalorder %s16, 0
    %p64 = por %p62, %p63
    %s65 = ssub.s32 %s19, %s28
    %s66 = ssub.s32 %s18, %s32
    %s67 = sor.u32 %s65, %s66
    %p68 = scmp.eq.s32.totalorder %s67, 0
    %s70 = sadd.s32 %s69, 1
    %s71 = scalar_select %p68, %s69, %s70
    %p74 = pneg %p68
    %p75 = scmp.eq.s32.totalorder %s10, 3
    %p76 = por %p74, %p75
    %p77 = scmp.ne.s32.totalorder %s69, %s72
    %p78 = scmp.eq.s32.totalorder %s10, 0
    %p79 = por %p77, %p78
    %p80 = scmp.ne.s32.totalorder %s69, %s72
    %p81 = scmp.eq.s32.totalorder %s15, 3
    %p82 = por %p80, %p81
    %p83 = scmp.ne.s32.totalorder %s72, %s73
    %p84 = scmp.eq.s32.totalorder %s15, 0
    %p85 = por %p83, %p84
    %p86 = scmp.ne.s32.totalorder %s72, %s73
    %p87 = scmp.eq.s32.totalorder %s16, 3
    %p88 = por %p86, %p87
    %p90 = scmp.ne.s32.totalorder %s73, %s89
    %p91 = scmp.eq.s32.totalorder %s16, 0
    %p92 = por %p90, %p91
    %s93 = ssub.s32 %s18, %s32
    %p94 = scmp.eq.s32.totalorder %s93, 0
    %s96 = sadd.s32 %s95, 1
    %s97 = scalar_select %p94, %s95, %s96
    %p100 = pneg %p94
    %p101 = scmp.eq.s32.totalorder %s10, 3
    %p102 = por %p100, %p101
    %p103 = scmp.ne.s32.totalorder %s95, %s98
    %p104 = scmp.eq.s32.totalorder %s10, 0
    %p105 = por %p103, %p104
    %p106 = scmp.ne.s32.totalorder %s95, %s98
    %p107 = scmp.eq.s32.totalorder %s15, 3
    %p108 = por %p106, %p107
    %p109 = scmp.ne.s32.totalorder %s98, %s99
    %p110 = scmp.eq.s32.totalorder %s15, 0
    %p111 = por %p109, %p110
    %p112 = scmp.ne.s32.totalorder %s98, %s99
    %p113 = scmp.eq.s32.totalorder %s16, 3
    %p114 = por %p112, %p113
    %p116 = scmp.ne.s32.totalorder %s99, %s115
    %p117 = scmp.eq.s32.totalorder %s16, 0
    %p118 = por %p116, %p117
    %s119 = ssub.s32 %s18, %s32
    %p120 = scmp.eq.s32.totalorder %s119, 0
    %s122 = sadd.s32 %s121, 1
    %s123 = scalar_select %p120, %s121, %s122
    %p126 = pneg %p120
    %p127 = scmp.eq.s32.totalorder %s10, 3
    %p128 = por %p126, %p127
    %p129 = scmp.ne.s32.totalorder %s121, %s124
    %p130 = scmp.eq.s32.totalorder %s10, 0
    %p131 = por %p129, %p130
    %p132 = scmp.ne.s32.totalorder %s121, %s124
    %p133 = scmp.eq.s32.totalorder %s15, 3
    %p134 = por %p132, %p133
    %p135 = scmp.ne.s32.totalorder %s124, %s125
    %p136 = scmp.eq.s32.totalorder %s15, 0
    %p137 = por %p135, %p136
    %p138 = scmp.ne.s32.totalorder %s124, %s125
    %p139 = scmp.eq.s32.totalorder %s16, 3
    %p140 = por %p138, %p139
    %p142 = scmp.ne.s32.totalorder %s125, %s141
    %p143 = scmp.eq.s32.totalorder %s16, 0
    %p144 = por %p142, %p143
    %s145 = ssub.s32 %s17, %s36
    %s146 = ssub.s32 %s18, %s32
    %s147 = sor.u32 %s145, %s146
    %p148 = scmp.eq.s32.totalorder %s147, 0
    %s150 = sadd.s32 %s149, 1
    %s151 = scalar_select %p148, %s149, %s150
    %p154 = pneg %p148
    %p155 = scmp.eq.s32.totalorder %s10, 3
    %p156 = por %p154, %p155
    %p157 = scmp.ne.s32.totalorder %s149, %s152
    %p158 = scmp.eq.s32.totalorder %s10, 0
    %p159 = por %p157, %p158
    %p160 = scmp.ne.s32.totalorder %s149, %s152
    %p161 = scmp.eq.s32.totalorder %s15, 3
    %p162 = por %p160, %p161
    %p163 = scmp.ne.s32.totalorder %s152, %s153
    %p164 = scmp.eq.s32.totalorder %s15, 0
    %p165 = por %p163, %p164
    %p166 = scmp.ne.s32.totalorder %s152, %s153
    %p167 = scmp.eq.s32.totalorder %s16, 3
    %p168 = por %p166, %p167
    %p170 = scmp.ne.s32.totalorder %s153, %s169
    %p171 = scmp.eq.s32.totalorder %s16, 0
    %p172 = por %p170, %p171
    %p173 = scmp.le.s32.totalorder 1, %s10
    %p174 = scmp.lt.s32.totalorder %s10, 5
    %p175 = pnand %p173, %p174
    %p176 = pneg %p175
    // Predicated region
    $region9: #{_stem_fwd.2} parent=5 // pred_check
      _
    $region10: #{_stem_fwd.2} parent=5 // pred_check_branch
      %178 = sbr.rel (%p175) target = $region12
    $region11: #{_stem_fwd.2} parent=5 // pred_region
      %s179 = ssub.s32 %s10, 1
      // Predicated region
      $region13: #{_stem_fwd.2} parent=11 // pred_check
        %p180 = pneg %p85
      $region14: #{_stem_fwd.2} parent=11 // pred_check_branch
        %182 = sbr.rel (%p180) target = $region16
      $region15: #{_stem_fwd.2} parent=11 // pred_region
        %s183 = smul.u32 19, %s22
        %p184 = scmp.lt.s32.totalorder %s183, 18
        %s185 = scalar_select %p184, %s183, 18
        %p186 = scmp.lt.s32.totalorder %s21, 0
        %s187 = scalar_select %p186, %s21, 0
        %s188 = sadd.s32 %s187, %s185
        %s189 = smul.addr %s188, 4
        %s190 = scalar_lea.vmem %s1, %s189
        %s191 = smul.u32 19, %s22
      $region16: #{_stem_fwd.2} parent=11 // pred_fallthru
        _
      // Predicated region
      $region17: #{_stem_fwd.2} parent=11 // pred_check
        %p192 = pneg %p111
      $region18: #{_stem_fwd.2} parent=11 // pred_check_branch
        %194 = sbr.rel (%p192) target = $region20
      $region19: #{_stem_fwd.2} parent=11 // pred_region
        %p195 = scmp.lt.s32.totalorder %s21, 0
        %s196 = scalar_select %p195, %s21, 0
        %s197 = scalar_lea.vmem %s2, %s196
      $region20: #{_stem_fwd.2} parent=11 // pred_fallthru
        _
      // Predicated region
      $region21: #{_stem_fwd.2} parent=11 // pred_check
        %p198 = pneg %p137
      $region22: #{_stem_fwd.2} parent=11 // pred_check_branch
        %200 = sbr.rel (%p198) target = $region24
      $region23: #{_stem_fwd.2} parent=11 // pred_region
        %p201 = scmp.lt.s32.totalorder %s21, 0
        %s202 = scalar_select %p201, %s21, 0
        %s203 = scalar_lea.vmem %s3, %s202
      $region24: #{_stem_fwd.2} parent=11 // pred_fallthru
        _
    $region12: #{_stem_fwd.2} parent=5 // pred_fallthru
      _
    %p204 = scmp.lt.s32.totalorder %s10, 4
    // Predicated region
    $region25: #{_stem_fwd.2} parent=5 // pred_check
      %p205 = pneg %p204
    $region26: #{_stem_fwd.2} parent=5 // pred_check_branch
      %207 = sbr.rel (%p205) target = $region28
    $region27: #{_stem_fwd.2} parent=5 // pred_region
      // Predicated region
      $region29: #{_stem_fwd.2} parent=27 // pred_check
        %p208 = pneg %p51
      $region30: #{_stem_fwd.2} parent=27 // pred_check_branch
        %210 = sbr.rel (%p208) target = $region32
      $region31: #{_stem_fwd.2} parent=27 // pred_region
        %s211 = smul.u32 64, %s17
        %s212 = smul.u32 2, %s19
        %p213 = scmp.lt.s32.totalorder %s211, 255
        %s214 = scalar_select %p213, %s211, 255
        %p215 = scmp.lt.s32.totalorder %s212, 1
        %s216 = scalar_select %p215, %s212, 1
        %s217 = smul.addr %s214, 2
        %s218 = sadd.s32 %s216, %s217
        %s219 = smul.addr %s218, 4
        %s220 = scalar_lea.vmem %s0, %s219
        %s221 = smul.u32 64, %s17
        %s222 = smul.u32 2, %s19
      $region32: #{_stem_fwd.2} parent=27 // pred_fallthru
        _
    $region28: #{_stem_fwd.2} parent=5 // pred_fallthru
      _
    %p223 = scmp.le.s32.totalorder 1, %s10
    %p224 = scmp.lt.s32.totalorder %s10, 5
    %p225 = pnand %p223, %p224
    %p226 = pneg %p225
    // Predicated region
    $region33: #{_stem_fwd.2} parent=5 // pred_check
      _
    $region34: #{_stem_fwd.2} parent=5 // pred_check_branch
      %228 = sbr.rel (%p225) target = $region36
    $region35: #{_stem_fwd.2} parent=5 // pred_region
      %s229 = ssub.s32 %s10, 1
      %s230 = smul.u32 64, %s20
      %s231 = smul.u32 2, %s22
      %p232 = scmp.lt.s32.totalorder %s230, 255
      %s233 = scalar_select %p232, %s230, 255
      %p234 = scmp.lt.s32.totalorder %s231, 1
      %s235 = scalar_select %p234, %s231, 1
      %s236 = smul.addr %s233, 2
      %s237 = sadd.s32 %s235, %s236
      %s238 = smul.addr %s237, 4
      %s239 = scalar_lea.vmem %s0, %s238
      %p240 = pneg %p57
      %p241 = pneg %p54
      %s242 = smul.u32 19, %s22
      %p243 = scmp.lt.s32.totalorder %s242, 18
      %s244 = scalar_select %p243, %s242, 18
      %p245 = scmp.lt.s32.totalorder %s21, 0
      %s246 = scalar_select %p245, %s21, 0
      %s247 = sadd.s32 %s246, %s244
      %s248 = smul.addr %s247, 4
      %s249 = scalar_lea.vmem %s1, %s248
      %p250 = pneg %p85
      %p251 = pneg %p82
      %p252 = scmp.lt.s32.totalorder %s21, 0
      %s253 = scalar_select %p252, %s21, 0
      %s254 = scalar_lea.vmem %s2, %s253
      %p255 = pneg %p111
      %p256 = pneg %p108
      %p257 = scmp.lt.s32.totalorder %s21, 0
      %s258 = scalar_select %p257, %s21, 0
      %s259 = scalar_lea.vmem %s3, %s258
      %p260 = pneg %p137
      %p261 = pneg %p134
      %p262 = pneg %p165
      %p263 = pneg %p162
      %s264 = smul.u32 64, %s20
      %p265 = scmp.lt.s32.totalorder %s264, 255
      %s266 = scalar_select %p265, %s264, 255
      %p267 = scmp.lt.s32.totalorder %s21, 0
      %s268 = scalar_select %p267, %s21, 0
      %s269 = sadd.s32 %s268, %s266
      %s270 = smul.addr %s269, 4
      %s271 = scalar_lea.vmem %s4, %s270
      %s272 = smul.u32 64, %s20
      %s273 = smul.u32 2, %s22
      %p274 = scmp.lt.s32.totalorder %s272, 255
      %s275 = scalar_select %p274, %s272, 255
      %p276 = scmp.lt.s32.totalorder %s273, 1
      %s277 = scalar_select %p276, %s273, 1
      %s278 = smul.addr %s275, 2
      %s279 = sadd.s32 %s277, %s278
      %s280 = smul.addr %s279, 4
      %s281 = scalar_lea.vmem %s0, %s280
      %s282 = smul.u32 64, %s20
      %s283 = smul.u32 2, %s22
      %s284 = smul.u32 19, %s22
      %p285 = scmp.lt.s32.totalorder %s284, 18
      %s286 = scalar_select %p285, %s284, 18
      %p287 = scmp.lt.s32.totalorder %s21, 0
      %s288 = scalar_select %p287, %s21, 0
      %s289 = sadd.s32 %s288, %s286
      %s290 = smul.addr %s289, 4
      %s291 = scalar_lea.vmem %s1, %s290
      %s292 = smul.u32 19, %s22
      %p293 = scmp.lt.s32.totalorder %s21, 0
      %s294 = scalar_select %p293, %s21, 0
      %s295 = scalar_lea.vmem %s2, %s294
      %p296 = scmp.lt.s32.totalorder %s21, 0
      %s297 = scalar_select %p296, %s21, 0
      %s298 = scalar_lea.vmem %s3, %s297
      %s299 = smul.u32 64, %s20
      %p300 = scmp.lt.s32.totalorder %s299, 255
      %s301 = scalar_select %p300, %s299, 255
      %p302 = scmp.lt.s32.totalorder %s21, 0
      %s303 = scalar_select %p302, %s21, 0
      %s304 = sadd.s32 %s303, %s301
      %s305 = smul.addr %s304, 4
      %s306 = scalar_lea.vmem %s4, %s305
      %s307 = smul.u32 64, %s20
      %p309 = scmp.eq.s32.totalorder %s22, 0
      // Predicated region
      $region37: #{_stem_fwd.2} parent=35 // pred_check
        %p310 = pneg %p309
      $region38: #{_stem_fwd.2} parent=35 // pred_check_branch
        %312 = sbr.rel (%p310) target = $region40
      $region39: #{_stem_fwd.2} parent=35 // pred_region
        %vm313 = vcmask 523264
        %314 = vst.msk [vmem:[#allocation2] sm:$0xff] %vm313, 0.0
        %315 = vst.msk [vmem:[#allocation2 + $0x8] sm:$0xff] %vm313, 0.0
        %316 = vst.msk [vmem:[#allocation2 + $0x10] sm:$0xff] %vm313, 0.0
        %317 = vst.msk [vmem:[#allocation2 + $0x18] sm:$0xff] %vm313, 0.0
        %318 = vst.msk [vmem:[#allocation2 + $0x20] sm:$0xff] %vm313, 0.0
        %319 = vst.msk [vmem:[#allocation2 + $0x28] sm:$0xff] %vm313, 0.0
        %320 = vst.msk [vmem:[#allocation2 + $0x30] sm:$0xff] %vm313, 0.0
        %321 = vst.msk [vmem:[#allocation2 + $0x38] sm:$0xff] %vm313, 0.0
        %322 = vst.msk [vmem:[#allocation2 + $0x40] sm:$0xff] %vm313, 0.0
        %323 = vst.msk [vmem:[#allocation2 + $0x48] sm:$0xff] %vm313, 0.0
        %324 = vst.msk [vmem:[#allocation2 + $0x50] sm:$0xff] %vm313, 0.0
        %325 = vst.msk [vmem:[#allocation2 + $0x58] sm:$0xff] %vm313, 0.0
        %326 = vst.msk [vmem:[#allocation2 + $0x60] sm:$0xff] %vm313, 0.0
        %327 = vst.msk [vmem:[#allocation2 + $0x68] sm:$0xff] %vm313, 0.0
        %328 = vst.msk [vmem:[#allocation2 + $0x70] sm:$0xff] %vm313, 0.0
        %329 = vst.msk [vmem:[#allocation2 + $0x78] sm:$0xff] %vm313, 0.0
        %330 = vst.msk [vmem:[#allocation2 + $0x80] sm:$0xff] %vm313, 0.0
        %331 = vst.msk [vmem:[#allocation2 + $0x88] sm:$0xff] %vm313, 0.0
        %332 = vst.msk [vmem:[#allocation2 + $0x90] sm:$0xff] %vm313, 0.0
        %333 = vst.msk [vmem:[#allocation2 + $0x98] sm:$0xff] %vm313, 0.0
        %334 = vst.msk [vmem:[#allocation2 + $0xa0] sm:$0xff] %vm313, 0.0
        %335 = vst.msk [vmem:[#allocation2 + $0xa8] sm:$0xff] %vm313, 0.0
        %336 = vst.msk [vmem:[#allocation2 + $0xb0] sm:$0xff] %vm313, 0.0
        %337 = vst.msk [vmem:[#allocation2 + $0xb8] sm:$0xff] %vm313, 0.0
        %338 = vst.msk [vmem:[#allocation2 + $0xc0] sm:$0xff] %vm313, 0.0
        %339 = vst.msk [vmem:[#allocation2 + $0xc8] sm:$0xff] %vm313, 0.0
        %340 = vst.msk [vmem:[#allocation2 + $0xd0] sm:$0xff] %vm313, 0.0
        %341 = vst.msk [vmem:[#allocation2 + $0xd8] sm:$0xff] %vm313, 0.0
        %342 = vst.msk [vmem:[#allocation2 + $0xe0] sm:$0xff] %vm313, 0.0
        %343 = vst.msk [vmem:[#allocation2 + $0xe8] sm:$0xff] %vm313, 0.0
        %344 = vst.msk [vmem:[#allocation2 + $0xf0] sm:$0xff] %vm313, 0.0
        %345 = vst.msk [vmem:[#allocation2 + $0xf8] sm:$0xff] %vm313, 0.0
        %346 = vst.msk [vmem:[#allocation2 + $0x100] sm:$0xff] %vm313, 0.0
        %347 = vst.msk [vmem:[#allocation2 + $0x108] sm:$0xff] %vm313, 0.0
        %348 = vst.msk [vmem:[#allocation2 + $0x110] sm:$0xff] %vm313, 0.0
        %349 = vst.msk [vmem:[#allocation2 + $0x118] sm:$0xff] %vm313, 0.0
        %350 = vst.msk [vmem:[#allocation2 + $0x120] sm:$0xff] %vm313, 0.0
        %351 = vst.msk [vmem:[#allocation2 + $0x128] sm:$0xff] %vm313, 0.0
        %352 = vst.msk [vmem:[#allocation2 + $0x130] sm:$0xff] %vm313, 0.0
        %353 = vst.msk [vmem:[#allocation2 + $0x138] sm:$0xff] %vm313, 0.0
        %354 = vst.msk [vmem:[#allocation2 + $0x140] sm:$0xff] %vm313, 0.0
        %355 = vst.msk [vmem:[#allocation2 + $0x148] sm:$0xff] %vm313, 0.0
        %356 = vst.msk [vmem:[#allocation2 + $0x150] sm:$0xff] %vm313, 0.0
        %357 = vst.msk [vmem:[#allocation2 + $0x158] sm:$0xff] %vm313, 0.0
        %358 = vst.msk [vmem:[#allocation2 + $0x160] sm:$0xff] %vm313, 0.0
        %359 = vst.msk [vmem:[#allocation2 + $0x168] sm:$0xff] %vm313, 0.0
        %360 = vst.msk [vmem:[#allocation2 + $0x170] sm:$0xff] %vm313, 0.0
        %361 = vst.msk [vmem:[#allocation2 + $0x178] sm:$0xff] %vm313, 0.0
        %362 = vst.msk [vmem:[#allocation2 + $0x180] sm:$0xff] %vm313, 0.0
        %363 = vst.msk [vmem:[#allocation2 + $0x188] sm:$0xff] %vm313, 0.0
        %364 = vst.msk [vmem:[#allocation2 + $0x190] sm:$0xff] %vm313, 0.0
        %365 = vst.msk [vmem:[#allocation2 + $0x198] sm:$0xff] %vm313, 0.0
        %366 = vst.msk [vmem:[#allocation2 + $0x1a0] sm:$0xff] %vm313, 0.0
        %367 = vst.msk [vmem:[#allocation2 + $0x1a8] sm:$0xff] %vm313, 0.0
        %368 = vst.msk [vmem:[#allocation2 + $0x1b0] sm:$0xff] %vm313, 0.0
        %369 = vst.msk [vmem:[#allocation2 + $0x1b8] sm:$0xff] %vm313, 0.0
        %370 = vst.msk [vmem:[#allocation2 + $0x1c0] sm:$0xff] %vm313, 0.0
        %371 = vst.msk [vmem:[#allocation2 + $0x1c8] sm:$0xff] %vm313, 0.0
        %372 = vst.msk [vmem:[#allocation2 + $0x1d0] sm:$0xff] %vm313, 0.0
        %373 = vst.msk [vmem:[#allocation2 + $0x1d8] sm:$0xff] %vm313, 0.0
        %374 = vst.msk [vmem:[#allocation2 + $0x1e0] sm:$0xff] %vm313, 0.0
        %375 = vst.msk [vmem:[#allocation2 + $0x1e8] sm:$0xff] %vm313, 0.0
        %376 = vst.msk [vmem:[#allocation2 + $0x1f0] sm:$0xff] %vm313, 0.0
        %377 = vst.msk [vmem:[#allocation2 + $0x1f8] sm:$0xff] %vm313, 0.0
      $region40: #{_stem_fwd.2} parent=35 // pred_fallthru
        _
      %v378 = vld [vmem:[#allocation2] sm:$0xff]
      %v379 = vld [vmem:[#allocation2 + $0x8] sm:$0xff]
      %v380 = vld [vmem:[#allocation2 + $0x10] sm:$0xff]
      %v381 = vld [vmem:[#allocation2 + $0x18] sm:$0xff]
      %v382 = vld [vmem:[#allocation2 + $0x20] sm:$0xff]
      %v383 = vld [vmem:[#allocation2 + $0x28] sm:$0xff]
      %v384 = vld [vmem:[#allocation2 + $0x30] sm:$0xff]
      %v385 = vld [vmem:[#allocation2 + $0x38] sm:$0xff]
      %v386 = vld [vmem:[#allocation2 + $0x40] sm:$0xff]
      %v387 = vld [vmem:[#allocation2 + $0x48] sm:$0xff]
      %v388 = vld [vmem:[#allocation2 + $0x50] sm:$0xff]
      %v389 = vld [vmem:[#allocation2 + $0x58] sm:$0xff]
      %v390 = vld [vmem:[#allocation2 + $0x60] sm:$0xff]
      %v391 = vld [vmem:[#allocation2 + $0x68] sm:$0xff]
      %v392 = vld [vmem:[#allocation2 + $0x70] sm:$0xff]
      %v393 = vld [vmem:[#allocation2 + $0x78] sm:$0xff]
      %v394 = vld [vmem:[#allocation2 + $0x80] sm:$0xff]
      %v395 = vld [vmem:[#allocation2 + $0x88] sm:$0xff]
      %v396 = vld [vmem:[#allocation2 + $0x90] sm:$0xff]
      %v397 = vld [vmem:[#allocation2 + $0x98] sm:$0xff]
      %v398 = vld [vmem:[#allocation2 + $0xa0] sm:$0xff]
      %v399 = vld [vmem:[#allocation2 + $0xa8] sm:$0xff]
      %v400 = vld [vmem:[#allocation2 + $0xb0] sm:$0xff]
      %v401 = vld [vmem:[#allocation2 + $0xb8] sm:$0xff]
      %v402 = vld [vmem:[#allocation2 + $0xc0] sm:$0xff]
      %v403 = vld [vmem:[#allocation2 + $0xc8] sm:$0xff]
      %v404 = vld [vmem:[#allocation2 + $0xd0] sm:$0xff]
      %v405 = vld [vmem:[#allocation2 + $0xd8] sm:$0xff]
      %v406 = vld [vmem:[#allocation2 + $0xe0] sm:$0xff]
      %v407 = vld [vmem:[#allocation2 + $0xe8] sm:$0xff]
      %v408 = vld [vmem:[#allocation2 + $0xf0] sm:$0xff]
      %v409 = vld [vmem:[#allocation2 + $0xf8] sm:$0xff]
      %v410 = vld [vmem:[#allocation2 + $0x100] sm:$0xff]
      %v411 = vld [vmem:[#allocation2 + $0x108] sm:$0xff]
      %v412 = vld [vmem:[#allocation2 + $0x110] sm:$0xff]
      %v413 = vld [vmem:[#allocation2 + $0x118] sm:$0xff]
      %v414 = vld [vmem:[#allocation2 + $0x120] sm:$0xff]
      %v415 = vld [vmem:[#allocation2 + $0x128] sm:$0xff]
      %v416 = vld [vmem:[#allocation2 + $0x130] sm:$0xff]
      %v417 = vld [vmem:[#allocation2 + $0x138] sm:$0xff]
      %v418 = vld [vmem:[#allocation2 + $0x140] sm:$0xff]
      %v419 = vld [vmem:[#allocation2 + $0x148] sm:$0xff]
      %v420 = vld [vmem:[#allocation2 + $0x150] sm:$0xff]
      %v421 = vld [vmem:[#allocation2 + $0x158] sm:$0xff]
      %v422 = vld [vmem:[#allocation2 + $0x160] sm:$0xff]
      %v423 = vld [vmem:[#allocation2 + $0x168] sm:$0xff]
      %v424 = vld [vmem:[#allocation2 + $0x170] sm:$0xff]
      %v425 = vld [vmem:[#allocation2 + $0x178] sm:$0xff]
      %v426 = vld [vmem:[#allocation2 + $0x180] sm:$0xff]
      %v427 = vld [vmem:[#allocation2 + $0x188] sm:$0xff]
      %v428 = vld [vmem:[#allocation2 + $0x190] sm:$0xff]
      %v429 = vld [vmem:[#allocation2 + $0x198] sm:$0xff]
      %v430 = vld [vmem:[#allocation2 + $0x1a0] sm:$0xff]
      %v431 = vld [vmem:[#allocation2 + $0x1a8] sm:$0xff]
      %v432 = vld [vmem:[#allocation2 + $0x1b0] sm:$0xff]
      %v433 = vld [vmem:[#allocation2 + $0x1b8] sm:$0xff]
      %v434 = vld [vmem:[#allocation2 + $0x1c0] sm:$0xff]
      %v435 = vld [vmem:[#allocation2 + $0x1c8] sm:$0xff]
      %v436 = vld [vmem:[#allocation2 + $0x1d0] sm:$0xff]
      %v437 = vld [vmem:[#allocation2 + $0x1d8] sm:$0xff]
      %v438 = vld [vmem:[#allocation2 + $0x1e0] sm:$0xff]
      %v439 = vld [vmem:[#allocation2 + $0x1e8] sm:$0xff]
      %v440 = vld [vmem:[#allocation2 + $0x1f0] sm:$0xff]
      %v441 = vld [vmem:[#allocation2 + $0x1f8] sm:$0xff]
      %v442 = vld [vmem:[%s281] sm:$0xff]
      %v443 = vld [vmem:[%s281 + $0x8] sm:$0xff]
      %v444 = vld [vmem:[%s281 + $0x10] sm:$0xff]
      %v445 = vld [vmem:[%s281 + $0x18] sm:$0xff]
      %v446 = vld [vmem:[%s281 + $0x20] sm:$0xff]
      %v447 = vld [vmem:[%s281 + $0x28] sm:$0xff]
      %v448 = vld [vmem:[%s281 + $0x30] sm:$0xff]
      %v449 = vld [vmem:[%s281 + $0x38] sm:$0xff]
      %v450 = vld [vmem:[%s281 + $0x40] sm:$0xff]
      %v451 = vld [vmem:[%s281 + $0x48] sm:$0xff]
      %v452 = vld [vmem:[%s281 + $0x50] sm:$0xff]
      %v453 = vld [vmem:[%s281 + $0x58] sm:$0xff]
      %v454 = vld [vmem:[%s281 + $0x60] sm:$0xff]
      %v455 = vld [vmem:[%s281 + $0x68] sm:$0xff]
      %v456 = vld [vmem:[%s281 + $0x70] sm:$0xff]
      %v457 = vld [vmem:[%s281 + $0x78] sm:$0xff]
      %v458 = vld [vmem:[%s281 + $0x80] sm:$0xff]
      %v459 = vld [vmem:[%s281 + $0x88] sm:$0xff]
      %v460 = vld [vmem:[%s281 + $0x90] sm:$0xff]
      %v461 = vld [vmem:[%s281 + $0x98] sm:$0xff]
      %v462 = vld [vmem:[%s281 + $0xa0] sm:$0xff]
      %v463 = vld [vmem:[%s281 + $0xa8] sm:$0xff]
      %v464 = vld [vmem:[%s281 + $0xb0] sm:$0xff]
      %v465 = vld [vmem:[%s281 + $0xb8] sm:$0xff]
      %v466 = vld [vmem:[%s281 + $0xc0] sm:$0xff]
      %v467 = vld [vmem:[%s281 + $0xc8] sm:$0xff]
      %v468 = vld [vmem:[%s281 + $0xd0] sm:$0xff]
      %v469 = vld [vmem:[%s281 + $0xd8] sm:$0xff]
      %v470 = vld [vmem:[%s281 + $0xe0] sm:$0xff]
      %v471 = vld [vmem:[%s281 + $0xe8] sm:$0xff]
      %v472 = vld [vmem:[%s281 + $0xf0] sm:$0xff]
      %v473 = vld [vmem:[%s281 + $0xf8] sm:$0xff]
      %v474 = vld [vmem:[%s281 + $0x100] sm:$0xff]
      %v475 = vld [vmem:[%s281 + $0x108] sm:$0xff]
      %v476 = vld [vmem:[%s281 + $0x110] sm:$0xff]
      %v477 = vld [vmem:[%s281 + $0x118] sm:$0xff]
      %v478 = vld [vmem:[%s281 + $0x120] sm:$0xff]
      %v479 = vld [vmem:[%s281 + $0x128] sm:$0xff]
      %v480 = vld [vmem:[%s281 + $0x130] sm:$0xff]
      %v481 = vld [vmem:[%s281 + $0x138] sm:$0xff]
      %v482 = vld [vmem:[%s281 + $0x140] sm:$0xff]
      %v483 = vld [vmem:[%s281 + $0x148] sm:$0xff]
      %v484 = vld [vmem:[%s281 + $0x150] sm:$0xff]
      %v485 = vld [vmem:[%s281 + $0x158] sm:$0xff]
      %v486 = vld [vmem:[%s281 + $0x160] sm:$0xff]
      %v487 = vld [vmem:[%s281 + $0x168] sm:$0xff]
      %v488 = vld [vmem:[%s281 + $0x170] sm:$0xff]
      %v489 = vld [vmem:[%s281 + $0x178] sm:$0xff]
      %v490 = vld [vmem:[%s281 + $0x180] sm:$0xff]
      %v491 = vld [vmem:[%s281 + $0x188] sm:$0xff]
      %v492 = vld [vmem:[%s281 + $0x190] sm:$0xff]
      %v493 = vld [vmem:[%s281 + $0x198] sm:$0xff]
      %v494 = vld [vmem:[%s281 + $0x1a0] sm:$0xff]
      %v495 = vld [vmem:[%s281 + $0x1a8] sm:$0xff]
      %v496 = vld [vmem:[%s281 + $0x1b0] sm:$0xff]
      %v497 = vld [vmem:[%s281 + $0x1b8] sm:$0xff]
      %v498 = vld [vmem:[%s281 + $0x1c0] sm:$0xff]
      %v499 = vld [vmem:[%s281 + $0x1c8] sm:$0xff]
      %v500 = vld [vmem:[%s281 + $0x1d0] sm:$0xff]
      %v501 = vld [vmem:[%s281 + $0x1d8] sm:$0xff]
      %v502 = vld [vmem:[%s281 + $0x1e0] sm:$0xff]
      %v503 = vld [vmem:[%s281 + $0x1e8] sm:$0xff]
      %v504 = vld [vmem:[%s281 + $0x1f0] sm:$0xff]
      %v505 = vld [vmem:[%s281 + $0x1f8] sm:$0xff]
      %v506 = vld [vmem:[%s291] sm:$0xf]
      %v507 = vld [vmem:[%s291 + $0x4] sm:$0xf]
      %v508 = vld [vmem:[%s291 + $0x8] sm:$0xf]
      %v509 = vld [vmem:[%s291 + $0xc] sm:$0xf]
      %v510 = vld [vmem:[%s291 + $0x10] sm:$0xf]
      %v511 = vld [vmem:[%s291 + $0x14] sm:$0xf]
      %v512 = vld [vmem:[%s291 + $0x18] sm:$0xf]
      %v513 = vld [vmem:[%s291 + $0x1c] sm:$0xf]
      %v514 = vld [vmem:[%s291 + $0x20] sm:$0xf]
      %v515 = vld [vmem:[%s291 + $0x24] sm:$0xf]
      %v516 = vld [vmem:[%s291 + $0x28] sm:$0xf]
      %v517 = vld [vmem:[%s291 + $0x2c] sm:$0xf]
      %v518 = vld [vmem:[%s291 + $0x30] sm:$0xf]
      %v519 = vld [vmem:[%s291 + $0x34] sm:$0xf]
      %v520 = vld [vmem:[%s291 + $0x38] sm:$0xf]
      %v521 = vld [vmem:[%s291 + $0x3c] sm:$0xf]
      %v522 = vld [vmem:[%s291 + $0x40] sm:$0xf]
      %v523 = vld [vmem:[%s291 + $0x44] sm:$0xf]
      %v524 = vld [vmem:[%s291 + $0x48] sm:$0x3]
      %v589 = vunpack.c.l.b16 %v442
      %v590 = vunpack.c.h.b16 %v442
      %v591 = vunpack.c.l.b16 %v443
      %v592 = vunpack.c.h.b16 %v443
      %v593 = vunpack.c.l.b16 %v444
      %v594 = vunpack.c.h.b16 %v444
      %v595 = vunpack.c.l.b16 %v445
      %v596 = vunpack.c.h.b16 %v445
      %v597 = vunpack.c.l.b16 %v446
      %v598 = vunpack.c.h.b16 %v446
      %v599 = vunpack.c.l.b16 %v447
      %v600 = vunpack.c.h.b16 %v447
      %v601 = vunpack.c.l.b16 %v448
      %v602 = vunpack.c.h.b16 %v448
      %v603 = vunpack.c.l.b16 %v449
      %v604 = vunpack.c.h.b16 %v449
      %v605 = vunpack.c.l.b16 %v450
      %v606 = vunpack.c.h.b16 %v450
      %v607 = vunpack.c.l.b16 %v451
      %v608 = vunpack.c.h.b16 %v451
      %v609 = vunpack.c.l.b16 %v452
      %v610 = vunpack.c.h.b16 %v452
      %v611 = vunpack.c.l.b16 %v453
      %v612 = vunpack.c.h.b16 %v453
      %v613 = vunpack.c.l.b16 %v454
      %v614 = vunpack.c.h.b16 %v454
      %v615 = vunpack.c.l.b16 %v455
      %v616 = vunpack.c.h.b16 %v455
      %v617 = vunpack.c.l.b16 %v456
      %v618 = vunpack.c.h.b16 %v456
      %v619 = vunpack.c.l.b16 %v457
      %v620 = vunpack.c.h.b16 %v457
      %v621 = vunpack.c.l.b16 %v458
      %v622 = vunpack.c.h.b16 %v458
      %v623 = vunpack.c.l.b16 %v459
      %v624 = vunpack.c.h.b16 %v459
      %v625 = vunpack.c.l.b16 %v460
      %v626 = vunpack.c.h.b16 %v460
      %v627 = vunpack.c.l.b16 %v461
      %v628 = vunpack.c.h.b16 %v461
      %v629 = vunpack.c.l.b16 %v462
      %v630 = vunpack.c.h.b16 %v462
      %v631 = vunpack.c.l.b16 %v463
      %v632 = vunpack.c.h.b16 %v463
      %v633 = vunpack.c.l.b16 %v464
      %v634 = vunpack.c.h.b16 %v464
      %v635 = vunpack.c.l.b16 %v465
      %v636 = vunpack.c.h.b16 %v465
      %v637 = vunpack.c.l.b16 %v466
      %v638 = vunpack.c.h.b16 %v466
      %v639 = vunpack.c.l.b16 %v467
      %v640 = vunpack.c.h.b16 %v467
      %v641 = vunpack.c.l.b16 %v468
      %v642 = vunpack.c.h.b16 %v468
      %v643 = vunpack.c.l.b16 %v469
      %v644 = vunpack.c.h.b16 %v469
      %v645 = vunpack.c.l.b16 %v470
      %v646 = vunpack.c.h.b16 %v470
      %v647 = vunpack.c.l.b16 %v471
      %v648 = vunpack.c.h.b16 %v471
      %v649 = vunpack.c.l.b16 %v472
      %v650 = vunpack.c.h.b16 %v472
      %v651 = vunpack.c.l.b16 %v473
      %v652 = vunpack.c.h.b16 %v473
      %v653 = vunpack.c.l.b16 %v474
      %v654 = vunpack.c.h.b16 %v474
      %v655 = vunpack.c.l.b16 %v475
      %v656 = vunpack.c.h.b16 %v475
      %v657 = vunpack.c.l.b16 %v476
      %v658 = vunpack.c.h.b16 %v476
      %v659 = vunpack.c.l.b16 %v477
      %v660 = vunpack.c.h.b16 %v477
      %v661 = vunpack.c.l.b16 %v478
      %v662 = vunpack.c.h.b16 %v478
      %v663 = vunpack.c.l.b16 %v479
      %v664 = vunpack.c.h.b16 %v479
      %v665 = vunpack.c.l.b16 %v480
      %v666 = vunpack.c.h.b16 %v480
      %v667 = vunpack.c.l.b16 %v481
      %v668 = vunpack.c.h.b16 %v481
      %v669 = vunpack.c.l.b16 %v482
      %v670 = vunpack.c.h.b16 %v482
      %v671 = vunpack.c.l.b16 %v483
      %v672 = vunpack.c.h.b16 %v483
      %v673 = vunpack.c.l.b16 %v484
      %v674 = vunpack.c.h.b16 %v484
      %v675 = vunpack.c.l.b16 %v485
      %v676 = vunpack.c.h.b16 %v485
      %v677 = vunpack.c.l.b16 %v486
      %v678 = vunpack.c.h.b16 %v486
      %v679 = vunpack.c.l.b16 %v487
      %v680 = vunpack.c.h.b16 %v487
      %v681 = vunpack.c.l.b16 %v488
      %v682 = vunpack.c.h.b16 %v488
      %v683 = vunpack.c.l.b16 %v489
      %v684 = vunpack.c.h.b16 %v489
      %v685 = vunpack.c.l.b16 %v490
      %v686 = vunpack.c.h.b16 %v490
      %v687 = vunpack.c.l.b16 %v491
      %v688 = vunpack.c.h.b16 %v491
      %v689 = vunpack.c.l.b16 %v492
      %v690 = vunpack.c.h.b16 %v492
      %v691 = vunpack.c.l.b16 %v493
      %v692 = vunpack.c.h.b16 %v493
      %v693 = vunpack.c.l.b16 %v494
      %v694 = vunpack.c.h.b16 %v494
      %v695 = vunpack.c.l.b16 %v495
      %v696 = vunpack.c.h.b16 %v495
      %v697 = vunpack.c.l.b16 %v496
      %v698 = vunpack.c.h.b16 %v496
      %v699 = vunpack.c.l.b16 %v497
      %v700 = vunpack.c.h.b16 %v497
      %v701 = vunpack.c.l.b16 %v498
      %v702 = vunpack.c.h.b16 %v498
      %v703 = vunpack.c.l.b16 %v499
      %v704 = vunpack.c.h.b16 %v499
      %v705 = vunpack.c.l.b16 %v500
      %v706 = vunpack.c.h.b16 %v500
      %v707 = vunpack.c.l.b16 %v501
      %v708 = vunpack.c.h.b16 %v501
      %v709 = vunpack.c.l.b16 %v502
      %v710 = vunpack.c.h.b16 %v502
      %v711 = vunpack.c.l.b16 %v503
      %v712 = vunpack.c.h.b16 %v503
      %v713 = vunpack.c.l.b16 %v504
      %v714 = vunpack.c.h.b16 %v504
      %v715 = vunpack.c.l.b16 %v505
      %v716 = vunpack.c.h.b16 %v505
      %v717 = vpack.c.b16 %v591, %v589
      %v718 = vpack.c.b16 %v592, %v590
      %v719 = vpack.c.b16 %v595, %v593
      %v720 = vpack.c.b16 %v596, %v594
      %v721 = vpack.c.b16 %v599, %v597
      %v722 = vpack.c.b16 %v600, %v598
      %v723 = vpack.c.b16 %v603, %v601
      %v724 = vpack.c.b16 %v604, %v602
      %v725 = vpack.c.b16 %v607, %v605
      %v726 = vpack.c.b16 %v608, %v606
      %v727 = vpack.c.b16 %v611, %v609
      %v728 = vpack.c.b16 %v612, %v610
      %v729 = vpack.c.b16 %v615, %v613
      %v730 = vpack.c.b16 %v616, %v614
      %v731 = vpack.c.b16 %v619, %v617
      %v732 = vpack.c.b16 %v620, %v618
      %v733 = vpack.c.b16 %v623, %v621
      %v734 = vpack.c.b16 %v624, %v622
      %v735 = vpack.c.b16 %v627, %v625
      %v736 = vpack.c.b16 %v628, %v626
      %v737 = vpack.c.b16 %v631, %v629
      %v738 = vpack.c.b16 %v632, %v630
      %v739 = vpack.c.b16 %v635, %v633
      %v740 = vpack.c.b16 %v636, %v634
      %v741 = vpack.c.b16 %v639, %v637
      %v742 = vpack.c.b16 %v640, %v638
      %v743 = vpack.c.b16 %v643, %v641
      %v744 = vpack.c.b16 %v644, %v642
      %v745 = vpack.c.b16 %v647, %v645
      %v746 = vpack.c.b16 %v648, %v646
      %v747 = vpack.c.b16 %v651, %v649
      %v748 = vpack.c.b16 %v652, %v650
      %v749 = vpack.c.b16 %v655, %v653
      %v750 = vpack.c.b16 %v656, %v654
      %v751 = vpack.c.b16 %v659, %v657
      %v752 = vpack.c.b16 %v660, %v658
      %v753 = vpack.c.b16 %v663, %v661
      %v754 = vpack.c.b16 %v664, %v662
      %v755 = vpack.c.b16 %v667, %v665
      %v756 = vpack.c.b16 %v668, %v666
      %v757 = vpack.c.b16 %v671, %v669
      %v758 = vpack.c.b16 %v672, %v670
      %v759 = vpack.c.b16 %v675, %v673
      %v760 = vpack.c.b16 %v676, %v674
      %v761 = vpack.c.b16 %v679, %v677
      %v762 = vpack.c.b16 %v680, %v678
      %v763 = vpack.c.b16 %v683, %v681
      %v764 = vpack.c.b16 %v684, %v682
      %v765 = vpack.c.b16 %v687, %v685
      %v766 = vpack.c.b16 %v688, %v686
      %v767 = vpack.c.b16 %v691, %v689
      %v768 = vpack.c.b16 %v692, %v690
      %v769 = vpack.c.b16 %v695, %v693
      %v770 = vpack.c.b16 %v696, %v694
      %v771 = vpack.c.b16 %v699, %v697
      %v772 = vpack.c.b16 %v700, %v698
      %v773 = vpack.c.b16 %v703, %v701
      %v774 = vpack.c.b16 %v704, %v702
      %v775 = vpack.c.b16 %v707, %v705
      %v776 = vpack.c.b16 %v708, %v706
      %v777 = vpack.c.b16 %v711, %v709
      %v778 = vpack.c.b16 %v712, %v710
      %v779 = vpack.c.b16 %v715, %v713
      %v780 = vpack.c.b16 %v716, %v714
      %v832 = vunpack.c.l.b16 %v506
      %v833 = vunpack.c.l.b16 %v507
      %v834 = vunpack.c.l.b16 %v508
      %v835 = vunpack.c.l.b16 %v509
      %v836 = vunpack.c.l.b16 %v510
      %v837 = vunpack.c.l.b16 %v511
      %v838 = vunpack.c.l.b16 %v512
      %v839 = vunpack.c.l.b16 %v513
      %v840 = vunpack.c.l.b16 %v514
      %v841 = vunpack.c.l.b16 %v515
      %v842 = vunpack.c.l.b16 %v516
      %v843 = vunpack.c.l.b16 %v517
      %v844 = vunpack.c.l.b16 %v518
      %v845 = vunpack.c.l.b16 %v519
      %v846 = vunpack.c.l.b16 %v520
      %v847 = vunpack.c.l.b16 %v521
      %v848 = vunpack.c.l.b16 %v522
      %v849 = vunpack.c.l.b16 %v523
      %v850 = vunpack.c.l.b16 %v524
      %v851 = vpack.c.b16 %v833, %v832
      %v852 = vpack.c.b16 %v835, %v834
      %v853 = vpack.c.b16 %v837, %v836
      %v854 = vpack.c.b16 %v839, %v838
      %v855 = vpack.c.b16 %v841, %v840
      %v856 = vpack.c.b16 %v843, %v842
      %v857 = vpack.c.b16 %v845, %v844
      %v858 = vpack.c.b16 %v847, %v846
      %v859 = vpack.c.b16 %v849, %v848
      %v860 = vpack.c.b16 %v850, %v850
      %vm870 = vcmask 154624
      %v872 = vsel %vm870, %v718, 0
      %v875 = vsel %vm870, %v720, 0
      %v878 = vsel %vm870, %v722, 0
      %v881 = vsel %vm870, %v724, 0
      %v884 = vsel %vm870, %v726, 0
      %v887 = vsel %vm870, %v728, 0
      %v890 = vsel %vm870, %v730, 0
      %v893 = vsel %vm870, %v732, 0
      %v896 = vsel %vm870, %v734, 0
      %v899 = vsel %vm870, %v736, 0
      %v902 = vsel %vm870, %v738, 0
      %v905 = vsel %vm870, %v740, 0
      %v908 = vsel %vm870, %v742, 0
      %v911 = vsel %vm870, %v744, 0
      %v914 = vsel %vm870, %v746, 0
      %v917 = vsel %vm870, %v748, 0
      %v920 = vsel %vm870, %v750, 0
      %v923 = vsel %vm870, %v752, 0
      %v926 = vsel %vm870, %v754, 0
      %v929 = vsel %vm870, %v756, 0
      %v932 = vsel %vm870, %v758, 0
      %v935 = vsel %vm870, %v760, 0
      %v938 = vsel %vm870, %v762, 0
      %v941 = vsel %vm870, %v764, 0
      %v944 = vsel %vm870, %v766, 0
      %v947 = vsel %vm870, %v768, 0
      %v950 = vsel %vm870, %v770, 0
      %v953 = vsel %vm870, %v772, 0
      %v956 = vsel %vm870, %v774, 0
      %v959 = vsel %vm870, %v776, 0
      %v962 = vsel %vm870, %v778, 0
      %v965 = vsel %vm870, %v780, 0
      %vm967 = vcmask 1040384
      %vm968 = vcmask 1041408
      %v969 = vsel %vm967, 4294967295, 65535
      %v970 = vsel %vm968, %v969, 0
      %v972 = vand.u32 %v860, %v970
      %974 = vmatprep.subr.bf16.mxu0 0
      %975 = vmatpush1.bf16.msra.mxu0 %v851
      %976 = vmatprep.subr.bf16.mxu0 0
      %977 = vmatpush1.bf16.msra.mxu0 %v852
      %978 = vmatprep.subr.bf16.mxu0 0
      %979 = vmatpush1.bf16.msra.mxu0 %v853
      %980 = vmatprep.subr.bf16.mxu0 0
      %981 = vmatpush1.bf16.msra.mxu0 %v854
      %982 = vmatprep.subr.bf16.mxu0 0
      %983 = vmatpush1.bf16.msra.mxu0 %v855
      %984 = vmatprep.subr.bf16.mxu0 0
      %985 = vmatpush1.bf16.msra.mxu0 %v856
      %986 = vmatprep.subr.bf16.mxu0 0
      %987 = vmatpush1.bf16.msra.mxu0 %v857
      %988 = vmatprep.subr.bf16.mxu0 0
      %989 = vmatpush1.bf16.msra.mxu0 %v858
      %990 = vmatprep.subr.bf16.mxu0 0
      %991 = vmatpush1.bf16.msra.mxu0 %v859
      %992 = vmatprep.subr.bf16.mxu0 0
      %993 = vmatpush1.bf16.msra.mxu0 %v972
      %994 = vmatprep.subr.bf16.mxu0 0
      %995 = vmatpush1.bf16.msra.mxu0 0
      %996 = vmatprep.subr.bf16.mxu0 0
      %997 = vmatpush1.bf16.msra.mxu0 0
      %998 = vmatprep.subr.bf16.mxu0 0
      %999 = vmatpush1.bf16.msra.mxu0 0
      %1000 = vmatprep.subr.bf16.mxu0 0
      %1001 = vmatpush1.bf16.msra.mxu0 0
      %1002 = vmatprep.subr.bf16.mxu0 0
      %1003 = vmatpush1.bf16.msra.mxu0 0
      %1004 = vmatprep.subr.bf16.mxu0 0
      %1005 = vmatpush1.bf16.msra.mxu0 0
      %1006 = vmatprep.mubr.bf16.mxu0 %v872
      %1007 = vmatmul.mubr.bf16.gmra.mrb[0].mxu0 %v717
      %v1008 = vpop.f32.mrb[0].mxu0
      %v1009 = vadd.f32 0.0, %v1008
      %v1010 = vpop.f32.mrb[0].mxu0
      %v1011 = vpop.f32.mrb[0].mxu0
      %v1012 = vadd.f32 0.0, %v1011
      %v1013 = vpop.f32.mrb[0].mxu0
      %1014 = vmatprep.mubr.bf16.mxu0 %v875
      %1015 = vmatmul.mubr.bf16.gmra.mrb[0].mxu0 %v719
      %v1016 = vpop.f32.mrb[0].mxu0
      %v1017 = vadd.f32 0.0, %v1016
      %v1018 = vpop.f32.mrb[0].mxu0
      %v1019 = vpop.f32.mrb[0].mxu0
      %v1020 = vadd.f32 0.0, %v1019
      %v1021 = vpop.f32.mrb[0].mxu0
      %1022 = vmatprep.mubr.bf16.mxu0 %v878
      %1023 = vmatmul.mubr.bf16.gmra.mrb[0].mxu0 %v721
      %v1024 = vpop.f32.mrb[0].mxu0
      %v1025 = vadd.f32 0.0, %v1024
      %v1026 = vpop.f32.mrb[0].mxu0
      %v1027 = vpop.f32.mrb[0].mxu0
      %v1028 = vadd.f32 0.0, %v1027
      %v1029 = vpop.f32.mrb[0].mxu0
      %1030 = vmatprep.mubr.bf16.mxu0 %v881
      %1031 = vmatmul.mubr.bf16.gmra.mrb[0].mxu0 %v723
      %v1032 = vpop.f32.mrb[0].mxu0
      %v1033 = vadd.f32 0.0, %v1032
      %v1034 = vpop.f32.mrb[0].mxu0
      %v1035 = vpop.f32.mrb[0].mxu0
      %v1036 = vadd.f32 0.0, %v1035
      %v1037 = vpop.f32.mrb[0].mxu0
      %1038 = vmatprep.mubr.bf16.mxu0 %v884
      %1039 = vmatmul.mubr.bf16.gmra.mrb[0].mxu0 %v725
      %v1040 = vpop.f32.mrb[0].mxu0
      %v1041 = vadd.f32 0.0, %v1040
      %v1042 = vpop.f32.mrb[0].mxu0
      %v1043 = vpop.f32.mrb[0].mxu0
      %v1044 = vadd.f32 0.0, %v1043
      %v1045 = vpop.f32.mrb[0].mxu0
      %1046 = vmatprep.mubr.bf16.mxu0 %v887
      %1047 = vmatmul.mubr.bf16.gmra.mrb[0].mxu0 %v727
      %v1048 = vpop.f32.mrb[0].mxu0
      %v1049 = vadd.f32 0.0, %v1048
      %v1050 = vpop.f32.mrb[0].mxu0
      %v1051 = vpop.f32.mrb[0].mxu0
      %v1052 = vadd.f32 0.0, %v1051
      %v1053 = vpop.f32.mrb[0].mxu0
      %1054 = vmatprep.mubr.bf16.mxu0 %v890
      %1055 = vmatmul.mubr.bf16.gmra.mrb[0].mxu0 %v729
      %v1056 = vpop.f32.mrb[0].mxu0
      %v1057 = vadd.f32 0.0, %v1056
      %v1058 = vpop.f32.mrb[0].mxu0
      %v1059 = vpop.f32.mrb[0].mxu0
      %v1060 = vadd.f32 0.0, %v1059
      %v1061 = vpop.f32.mrb[0].mxu0
      %1062 = vmatprep.mubr.bf16.mxu0 %v893
      %1063 = vmatmul.mubr.bf16.gmra.mrb[0].mxu0 %v731
      %v1064 = vpop.f32.mrb[0].mxu0
      %v1065 = vadd.f32 0.0, %v1064
      %v1066 = vpop.f32.mrb[0].mxu0
      %v1067 = vpop.f32.mrb[0].mxu0
      %v1068 = vadd.f32 0.0, %v1067
      %v1069 = vpop.f32.mrb[0].mxu0
      %1070 = vmatprep.mubr.bf16.mxu0 %v896
      %1071 = vmatmul.mubr.bf16.gmra.mrb[0].mxu0 %v733
      %v1072 = vpop.f32.mrb[0].mxu0
      %v1073 = vadd.f32 0.0, %v1072
      %v1074 = vpop.f32.mrb[0].mxu0
      %v1075 = vpop.f32.mrb[0].mxu0
      %v1076 = vadd.f32 0.0, %v1075
      %v1077 = vpop.f32.mrb[0].mxu0
      %1078 = vmatprep.mubr.bf16.mxu0 %v899
      %1079 = vmatmul.mubr.bf16.gmra.mrb[0].mxu0 %v735
      %v1080 = vpop.f32.mrb[0].mxu0
      %v1081 = vadd.f32 0.0, %v1080
      %v1082 = vpop.f32.mrb[0].mxu0
      %v1083 = vpop.f32.mrb[0].mxu0
      %v1084 = vadd.f32 0.0, %v1083
      %v1085 = vpop.f32.mrb[0].mxu0
      %1086 = vmatprep.mubr.bf16.mxu0 %v902
      %1087 = vmatmul.mubr.bf16.gmra.mrb[0].mxu0 %v737
      %v1088 = vpop.f32.mrb[0].mxu0
      %v1089 = vadd.f32 0.0, %v1088
      %v1090 = vpop.f32.mrb[0].mxu0
      %v1091 = vpop.f32.mrb[0].mxu0
      %v1092 = vadd.f32 0.0, %v1091
      %v1093 = vpop.f32.mrb[0].mxu0
      %1094 = vmatprep.mubr.bf16.mxu0 %v905
      %1095 = vmatmul.mubr.bf16.gmra.mrb[0].mxu0 %v739
      %v1096 = vpop.f32.mrb[0].mxu0
      %v1097 = vadd.f32 0.0, %v1096
      %v1098 = vpop.f32.mrb[0].mxu0
      %v1099 = vpop.f32.mrb[0].mxu0
      %v1100 = vadd.f32 0.0, %v1099
      %v1101 = vpop.f32.mrb[0].mxu0
      %1102 = vmatprep.mubr.bf16.mxu0 %v908
      %1103 = vmatmul.mubr.bf16.gmra.mrb[0].mxu0 %v741
      %v1104 = vpop.f32.mrb[0].mxu0
      %v1105 = vadd.f32 0.0, %v1104
      %v1106 = vpop.f32.mrb[0].mxu0
      %v1107 = vpop.f32.mrb[0].mxu0
      %v1108 = vadd.f32 0.0, %v1107
      %v1109 = vpop.f32.mrb[0].mxu0
      %1110 = vmatprep.mubr.bf16.mxu0 %v911
      %1111 = vmatmul.mubr.bf16.gmra.mrb[0].mxu0 %v743
      %v1112 = vpop.f32.mrb[0].mxu0
      %v1113 = vadd.f32 0.0, %v1112
      %v1114 = vpop.f32.mrb[0].mxu0
      %v1115 = vpop.f32.mrb[0].mxu0
      %v1116 = vadd.f32 0.0, %v1115
      %v1117 = vpop.f32.mrb[0].mxu0
      %1118 = vmatprep.mubr.bf16.mxu0 %v914
      %1119 = vmatmul.mubr.bf16.gmra.mrb[0].mxu0 %v745
      %v1120 = vpop.f32.mrb[0].mxu0
      %v1121 = vadd.f32 0.0, %v1120
      %v1122 = vpop.f32.mrb[0].mxu0
      %v1123 = vpop.f32.mrb[0].mxu0
      %v1124 = vadd.f32 0.0, %v1123
      %v1125 = vpop.f32.mrb[0].mxu0
      %1126 = vmatprep.mubr.bf16.mxu0 %v917
      %1127 = vmatmul.mubr.bf16.gmra.mrb[0].mxu0 %v747
      %v1128 = vpop.f32.mrb[0].mxu0
      %v1129 = vadd.f32 0.0, %v1128
      %v1130 = vpop.f32.mrb[0].mxu0
      %v1131 = vpop.f32.mrb[0].mxu0
      %v1132 = vadd.f32 0.0, %v1131
      %v1133 = vpop.f32.mrb[0].mxu0
      %1134 = vmatprep.mubr.bf16.mxu0 %v920
      %1135 = vmatmul.mubr.bf16.gmra.mrb[0].mxu0 %v749
      %v1136 = vpop.f32.mrb[0].mxu0
      %v1137 = vadd.f32 0.0, %v1136
      %v1138 = vpop.f32.mrb[0].mxu0
      %v1139 = vpop.f32.mrb[0].mxu0
      %v1140 = vadd.f32 0.0, %v1139
      %v1141 = vpop.f32.mrb[0].mxu0
      %1142 = vmatprep.mubr.bf16.mxu0 %v923
      %1143 = vmatmul.mubr.bf16.gmra.mrb[0].mxu0 %v751
      %v1144 = vpop.f32.mrb[0].mxu0
      %v1145 = vadd.f32 0.0, %v1144
      %v1146 = vpop.f32.mrb[0].mxu0
      %v1147 = vpop.f32.mrb[0].mxu0
      %v1148 = vadd.f32 0.0, %v1147
      %v1149 = vpop.f32.mrb[0].mxu0
      %1150 = vmatprep.mubr.bf16.mxu0 %v926
      %1151 = vmatmul.mubr.bf16.gmra.mrb[0].mxu0 %v753
      %v1152 = vpop.f32.mrb[0].mxu0
      %v1153 = vadd.f32 0.0, %v1152
      %v1154 = vpop.f32.mrb[0].mxu0
      %v1155 = vpop.f32.mrb[0].mxu0
      %v1156 = vadd.f32 0.0, %v1155
      %v1157 = vpop.f32.mrb[0].mxu0
      %1158 = vmatprep.mubr.bf16.mxu0 %v929
      %1159 = vmatmul.mubr.bf16.gmra.mrb[0].mxu0 %v755
      %v1160 = vpop.f32.mrb[0].mxu0
      %v1161 = vadd.f32 0.0, %v1160
      %v1162 = vpop.f32.mrb[0].mxu0
      %v1163 = vpop.f32.mrb[0].mxu0
      %v1164 = vadd.f32 0.0, %v1163
      %v1165 = vpop.f32.mrb[0].mxu0
      %1166 = vmatprep.mubr.bf16.mxu0 %v932
      %1167 = vmatmul.mubr.bf16.gmra.mrb[0].mxu0 %v757
      %v1168 = vpop.f32.mrb[0].mxu0
      %v1169 = vadd.f32 0.0, %v1168
      %v1170 = vpop.f32.mrb[0].mxu0
      %v1171 = vpop.f32.mrb[0].mxu0
      %v1172 = vadd.f32 0.0, %v1171
      %v1173 = vpop.f32.mrb[0].mxu0
      %1174 = vmatprep.mubr.bf16.mxu0 %v935
      %1175 = vmatmul.mubr.bf16.gmra.mrb[0].mxu0 %v759
      %v1176 = vpop.f32.mrb[0].mxu0
      %v1177 = vadd.f32 0.0, %v1176
      %v1178 = vpop.f32.mrb[0].mxu0
      %v1179 = vpop.f32.mrb[0].mxu0
      %v1180 = vadd.f32 0.0, %v1179
      %v1181 = vpop.f32.mrb[0].mxu0
      %1182 = vmatprep.mubr.bf16.mxu0 %v938
      %1183 = vmatmul.mubr.bf16.gmra.mrb[0].mxu0 %v761
      %v1184 = vpop.f32.mrb[0].mxu0
      %v1185 = vadd.f32 0.0, %v1184
      %v1186 = vpop.f32.mrb[0].mxu0
      %v1187 = vpop.f32.mrb[0].mxu0
      %v1188 = vadd.f32 0.0, %v1187
      %v1189 = vpop.f32.mrb[0].mxu0
      %1190 = vmatprep.mubr.bf16.mxu0 %v941
      %1191 = vmatmul.mubr.bf16.gmra.mrb[0].mxu0 %v763
      %v1192 = vpop.f32.mrb[0].mxu0
      %v1193 = vadd.f32 0.0, %v1192
      %v1194 = vpop.f32.mrb[0].mxu0
      %v1195 = vpop.f32.mrb[0].mxu0
      %v1196 = vadd.f32 0.0, %v1195
      %v1197 = vpop.f32.mrb[0].mxu0
      %1198 = vmatprep.mubr.bf16.mxu0 %v944
      %1199 = vmatmul.mubr.bf16.gmra.mrb[0].mxu0 %v765
      %v1200 = vpop.f32.mrb[0].mxu0
      %v1201 = vadd.f32 0.0, %v1200
      %v1202 = vpop.f32.mrb[0].mxu0
      %v1203 = vpop.f32.mrb[0].mxu0
      %v1204 = vadd.f32 0.0, %v1203
      %v1205 = vpop.f32.mrb[0].mxu0
      %1206 = vmatprep.mubr.bf16.mxu0 %v947
      %1207 = vmatmul.mubr.bf16.gmra.mrb[0].mxu0 %v767
      %v1208 = vpop.f32.mrb[0].mxu0
      %v1209 = vadd.f32 0.0, %v1208
      %v1210 = vpop.f32.mrb[0].mxu0
      %v1211 = vpop.f32.mrb[0].mxu0
      %v1212 = vadd.f32 0.0, %v1211
      %v1213 = vpop.f32.mrb[0].mxu0
      %1214 = vmatprep.mubr.bf16.mxu0 %v950
      %1215 = vmatmul.mubr.bf16.gmra.mrb[0].mxu0 %v769
      %v1216 = vpop.f32.mrb[0].mxu0
      %v1217 = vadd.f32 0.0, %v1216
      %v1218 = vpop.f32.mrb[0].mxu0
      %v1219 = vpop.f32.mrb[0].mxu0
      %v1220 = vadd.f32 0.0, %v1219
      %v1221 = vpop.f32.mrb[0].mxu0
      %1222 = vmatprep.mubr.bf16.mxu0 %v953
      %1223 = vmatmul.mubr.bf16.gmra.mrb[0].mxu0 %v771
      %v1224 = vpop.f32.mrb[0].mxu0
      %v1225 = vadd.f32 0.0, %v1224
      %v1226 = vpop.f32.mrb[0].mxu0
      %v1227 = vpop.f32.mrb[0].mxu0
      %v1228 = vadd.f32 0.0, %v1227
      %v1229 = vpop.f32.mrb[0].mxu0
      %1230 = vmatprep.mubr.bf16.mxu0 %v956
      %1231 = vmatmul.mubr.bf16.gmra.mrb[0].mxu0 %v773
      %v1232 = vpop.f32.mrb[0].mxu0
      %v1233 = vadd.f32 0.0, %v1232
      %v1234 = vpop.f32.mrb[0].mxu0
      %v1235 = vpop.f32.mrb[0].mxu0
      %v1236 = vadd.f32 0.0, %v1235
      %v1237 = vpop.f32.mrb[0].mxu0
      %1238 = vmatprep.mubr.bf16.mxu0 %v959
      %1239 = vmatmul.mubr.bf16.gmra.mrb[0].mxu0 %v775
      %v1240 = vpop.f32.mrb[0].mxu0
      %v1241 = vadd.f32 0.0, %v1240
      %v1242 = vpop.f32.mrb[0].mxu0
      %v1243 = vpop.f32.mrb[0].mxu0
      %v1244 = vadd.f32 0.0, %v1243
      %v1245 = vpop.f32.mrb[0].mxu0
      %1246 = vmatprep.mubr.bf16.mxu0 %v962
      %1247 = vmatmul.mubr.bf16.gmra.mrb[0].mxu0 %v777
      %v1248 = vpop.f32.mrb[0].mxu0
      %v1249 = vadd.f32 0.0, %v1248
      %v1250 = vpop.f32.mrb[0].mxu0
      %v1251 = vpop.f32.mrb[0].mxu0
      %v1252 = vadd.f32 0.0, %v1251
      %v1253 = vpop.f32.mrb[0].mxu0
      %1254 = vmatprep.mubr.bf16.mxu0 %v965
      %1255 = vmatmul.mubr.bf16.gmra.mrb[0].mxu0 %v779
      %v1256 = vpop.f32.mrb[0].mxu0
      %v1257 = vadd.f32 0.0, %v1256
      %v1258 = vpop.f32.mrb[0].mxu0
      %v1259 = vpop.f32.mrb[0].mxu0
      %v1260 = vadd.f32 0.0, %v1259
      %v1261 = vpop.f32.mrb[0].mxu0
      %1262 = vdwg.mxu0
      %v1263 = vadd.f32 %v378, %v1009
      %v1264 = vadd.f32 %v379, %v1012
      %v1265 = vadd.f32 %v380, %v1017
      %v1266 = vadd.f32 %v381, %v1020
      %v1267 = vadd.f32 %v382, %v1025
      %v1268 = vadd.f32 %v383, %v1028
      %v1269 = vadd.f32 %v384, %v1033
      %v1270 = vadd.f32 %v385, %v1036
      %v1271 = vadd.f32 %v386, %v1041
      %v1272 = vadd.f32 %v387, %v1044
      %v1273 = vadd.f32 %v388, %v1049
      %v1274 = vadd.f32 %v389, %v1052
      %v1275 = vadd.f32 %v390, %v1057
      %v1276 = vadd.f32 %v391, %v1060
      %v1277 = vadd.f32 %v392, %v1065
      %v1278 = vadd.f32 %v393, %v1068
      %v1279 = vadd.f32 %v394, %v1073
      %v1280 = vadd.f32 %v395, %v1076
      %v1281 = vadd.f32 %v396, %v1081
      %v1282 = vadd.f32 %v397, %v1084
      %v1283 = vadd.f32 %v398, %v1089
      %v1284 = vadd.f32 %v399, %v1092
      %v1285 = vadd.f32 %v400, %v1097
      %v1286 = vadd.f32 %v401, %v1100
      %v1287 = vadd.f32 %v402, %v1105
      %v1288 = vadd.f32 %v403, %v1108
      %v1289 = vadd.f32 %v404, %v1113
      %v1290 = vadd.f32 %v405, %v1116
      %v1291 = vadd.f32 %v406, %v1121
      %v1292 = vadd.f32 %v407, %v1124
      %v1293 = vadd.f32 %v408, %v1129
      %v1294 = vadd.f32 %v409, %v1132
      %v1295 = vadd.f32 %v410, %v1137
      %v1296 = vadd.f32 %v411, %v1140
      %v1297 = vadd.f32 %v412, %v1145
      %v1298 = vadd.f32 %v413, %v1148
      %v1299 = vadd.f32 %v414, %v1153
      %v1300 = vadd.f32 %v415, %v1156
      %v1301 = vadd.f32 %v416, %v1161
      %v1302 = vadd.f32 %v417, %v1164
      %v1303 = vadd.f32 %v418, %v1169
      %v1304 = vadd.f32 %v419, %v1172
      %v1305 = vadd.f32 %v420, %v1177
      %v1306 = vadd.f32 %v421, %v1180
      %v1307 = vadd.f32 %v422, %v1185
      %v1308 = vadd.f32 %v423, %v1188
      %v1309 = vadd.f32 %v424, %v1193
      %v1310 = vadd.f32 %v425, %v1196
      %v1311 = vadd.f32 %v426, %v1201
      %v1312 = vadd.f32 %v427, %v1204
      %v1313 = vadd.f32 %v428, %v1209
      %v1314 = vadd.f32 %v429, %v1212
      %v1315 = vadd.f32 %v430, %v1217
      %v1316 = vadd.f32 %v431, %v1220
      %v1317 = vadd.f32 %v432, %v1225
      %v1318 = vadd.f32 %v433, %v1228
      %v1319 = vadd.f32 %v434, %v1233
      %v1320 = vadd.f32 %v435, %v1236
      %v1321 = vadd.f32 %v436, %v1241
      %v1322 = vadd.f32 %v437, %v1244
      %v1323 = vadd.f32 %v438, %v1249
      %v1324 = vadd.f32 %v439, %v1252
      %v1325 = vadd.f32 %v440, %v1257
      %v1326 = vadd.f32 %v441, %v1260
      %vm1327 = vcmask 523264
      %1328 = vst.msk [vmem:[#allocation2] sm:$0xff] %vm1327, %v1263
      %1329 = vst.msk [vmem:[#allocation2 + $0x8] sm:$0xff] %vm1327, %v1264
      %1330 = vst.msk [vmem:[#allocation2 + $0x10] sm:$0xff] %vm1327, %v1265
      %1331 = vst.msk [vmem:[#allocation2 + $0x18] sm:$0xff] %vm1327, %v1266
      %1332 = vst.msk [vmem:[#allocation2 + $0x20] sm:$0xff] %vm1327, %v1267
      %1333 = vst.msk [vmem:[#allocation2 + $0x28] sm:$0xff] %vm1327, %v1268
      %1334 = vst.msk [vmem:[#allocation2 + $0x30] sm:$0xff] %vm1327, %v1269
      %1335 = vst.msk [vmem:[#allocation2 + $0x38] sm:$0xff] %vm1327, %v1270
      %1336 = vst.msk [vmem:[#allocation2 + $0x40] sm:$0xff] %vm1327, %v1271
      %1337 = vst.msk [vmem:[#allocation2 + $0x48] sm:$0xff] %vm1327, %v1272
      %1338 = vst.msk [vmem:[#allocation2 + $0x50] sm:$0xff] %vm1327, %v1273
      %1339 = vst.msk [vmem:[#allocation2 + $0x58] sm:$0xff] %vm1327, %v1274
      %1340 = vst.msk [vmem:[#allocation2 + $0x60] sm:$0xff] %vm1327, %v1275
      %1341 = vst.msk [vmem:[#allocation2 + $0x68] sm:$0xff] %vm1327, %v1276
      %1342 = vst.msk [vmem:[#allocation2 + $0x70] sm:$0xff] %vm1327, %v1277
      %1343 = vst.msk [vmem:[#allocation2 + $0x78] sm:$0xff] %vm1327, %v1278
      %1344 = vst.msk [vmem:[#allocation2 + $0x80] sm:$0xff] %vm1327, %v1279
      %1345 = vst.msk [vmem:[#allocation2 + $0x88] sm:$0xff] %vm1327, %v1280
      %1346 = vst.msk [vmem:[#allocation2 + $0x90] sm:$0xff] %vm1327, %v1281
      %1347 = vst.msk [vmem:[#allocation2 + $0x98] sm:$0xff] %vm1327, %v1282
      %1348 = vst.msk [vmem:[#allocation2 + $0xa0] sm:$0xff] %vm1327, %v1283
      %1349 = vst.msk [vmem:[#allocation2 + $0xa8] sm:$0xff] %vm1327, %v1284
      %1350 = vst.msk [vmem:[#allocation2 + $0xb0] sm:$0xff] %vm1327, %v1285
      %1351 = vst.msk [vmem:[#allocation2 + $0xb8] sm:$0xff] %vm1327, %v1286
      %1352 = vst.msk [vmem:[#allocation2 + $0xc0] sm:$0xff] %vm1327, %v1287
      %1353 = vst.msk [vmem:[#allocation2 + $0xc8] sm:$0xff] %vm1327, %v1288
      %1354 = vst.msk [vmem:[#allocation2 + $0xd0] sm:$0xff] %vm1327, %v1289
      %1355 = vst.msk [vmem:[#allocation2 + $0xd8] sm:$0xff] %vm1327, %v1290
      %1356 = vst.msk [vmem:[#allocation2 + $0xe0] sm:$0xff] %vm1327, %v1291
      %1357 = vst.msk [vmem:[#allocation2 + $0xe8] sm:$0xff] %vm1327, %v1292
      %1358 = vst.msk [vmem:[#allocation2 + $0xf0] sm:$0xff] %vm1327, %v1293
      %1359 = vst.msk [vmem:[#allocation2 + $0xf8] sm:$0xff] %vm1327, %v1294
      %1360 = vst.msk [vmem:[#allocation2 + $0x100] sm:$0xff] %vm1327, %v1295
      %1361 = vst.msk [vmem:[#allocation2 + $0x108] sm:$0xff] %vm1327, %v1296
      %1362 = vst.msk [vmem:[#allocation2 + $0x110] sm:$0xff] %vm1327, %v1297
      %1363 = vst.msk [vmem:[#allocation2 + $0x118] sm:$0xff] %vm1327, %v1298
      %1364 = vst.msk [vmem:[#allocation2 + $0x120] sm:$0xff] %vm1327, %v1299
      %1365 = vst.msk [vmem:[#allocation2 + $0x128] sm:$0xff] %vm1327, %v1300
      %1366 = vst.msk [vmem:[#allocation2 + $0x130] sm:$0xff] %vm1327, %v1301
      %1367 = vst.msk [vmem:[#allocation2 + $0x138] sm:$0xff] %vm1327, %v1302
      %1368 = vst.msk [vmem:[#allocation2 + $0x140] sm:$0xff] %vm1327, %v1303
      %1369 = vst.msk [vmem:[#allocation2 + $0x148] sm:$0xff] %vm1327, %v1304
      %1370 = vst.msk [vmem:[#allocation2 + $0x150] sm:$0xff] %vm1327, %v1305
      %1371 = vst.msk [vmem:[#allocation2 + $0x158] sm:$0xff] %vm1327, %v1306
      %1372 = vst.msk [vmem:[#allocation2 + $0x160] sm:$0xff] %vm1327, %v1307
      %1373 = vst.msk [vmem:[#allocation2 + $0x168] sm:$0xff] %vm1327, %v1308
      %1374 = vst.msk [vmem:[#allocation2 + $0x170] sm:$0xff] %vm1327, %v1309
      %1375 = vst.msk [vmem:[#allocation2 + $0x178] sm:$0xff] %vm1327, %v1310
      %1376 = vst.msk [vmem:[#allocation2 + $0x180] sm:$0xff] %vm1327, %v1311
      %1377 = vst.msk [vmem:[#allocation2 + $0x188] sm:$0xff] %vm1327, %v1312
      %1378 = vst.msk [vmem:[#allocation2 + $0x190] sm:$0xff] %vm1327, %v1313
      %1379 = vst.msk [vmem:[#allocation2 + $0x198] sm:$0xff] %vm1327, %v1314
      %1380 = vst.msk [vmem:[#allocation2 + $0x1a0] sm:$0xff] %vm1327, %v1315
      %1381 = vst.msk [vmem:[#allocation2 + $0x1a8] sm:$0xff] %vm1327, %v1316
      %1382 = vst.msk [vmem:[#allocation2 + $0x1b0] sm:$0xff] %vm1327, %v1317
      %1383 = vst.msk [vmem:[#allocation2 + $0x1b8] sm:$0xff] %vm1327, %v1318
      %1384 = vst.msk [vmem:[#allocation2 + $0x1c0] sm:$0xff] %vm1327, %v1319
      %1385 = vst.msk [vmem:[#allocation2 + $0x1c8] sm:$0xff] %vm1327, %v1320
      %1386 = vst.msk [vmem:[#allocation2 + $0x1d0] sm:$0xff] %vm1327, %v1321
      %1387 = vst.msk [vmem:[#allocation2 + $0x1d8] sm:$0xff] %vm1327, %v1322
      %1388 = vst.msk [vmem:[#allocation2 + $0x1e0] sm:$0xff] %vm1327, %v1323
      %1389 = vst.msk [vmem:[#allocation2 + $0x1e8] sm:$0xff] %vm1327, %v1324
      %1390 = vst.msk [vmem:[#allocation2 + $0x1f0] sm:$0xff] %vm1327, %v1325
      %1391 = vst.msk [vmem:[#allocation2 + $0x1f8] sm:$0xff] %vm1327, %v1326
      // Predicated region
      $region41: #{_stem_fwd.2} parent=35 // pred_check
        %p1392 = pneg %p309
      $region42: #{_stem_fwd.2} parent=35 // pred_check_branch
        %1394 = sbr.rel (%p1392) target = $region44
      $region43: #{_stem_fwd.2} parent=35 // pred_region
        %v1395 = vld [vmem:[#allocation2] sm:$0xff]
        %v1396 = vld [vmem:[#allocation2 + $0x8] sm:$0xff]
        %v1397 = vld [vmem:[#allocation2 + $0x10] sm:$0xff]
        %v1398 = vld [vmem:[#allocation2 + $0x18] sm:$0xff]
        %v1399 = vld [vmem:[#allocation2 + $0x20] sm:$0xff]
        %v1400 = vld [vmem:[#allocation2 + $0x28] sm:$0xff]
        %v1401 = vld [vmem:[#allocation2 + $0x30] sm:$0xff]
        %v1402 = vld [vmem:[#allocation2 + $0x38] sm:$0xff]
        %v1403 = vld [vmem:[#allocation2 + $0x40] sm:$0xff]
        %v1404 = vld [vmem:[#allocation2 + $0x48] sm:$0xff]
        %v1405 = vld [vmem:[#allocation2 + $0x50] sm:$0xff]
        %v1406 = vld [vmem:[#allocation2 + $0x58] sm:$0xff]
        %v1407 = vld [vmem:[#allocation2 + $0x60] sm:$0xff]
        %v1408 = vld [vmem:[#allocation2 + $0x68] sm:$0xff]
        %v1409 = vld [vmem:[#allocation2 + $0x70] sm:$0xff]
        %v1410 = vld [vmem:[#allocation2 + $0x78] sm:$0xff]
        %v1411 = vld [vmem:[#allocation2 + $0x80] sm:$0xff]
        %v1412 = vld [vmem:[#allocation2 + $0x88] sm:$0xff]
        %v1413 = vld [vmem:[#allocation2 + $0x90] sm:$0xff]
        %v1414 = vld [vmem:[#allocation2 + $0x98] sm:$0xff]
        %v1415 = vld [vmem:[#allocation2 + $0xa0] sm:$0xff]
        %v1416 = vld [vmem:[#allocation2 + $0xa8] sm:$0xff]
        %v1417 = vld [vmem:[#allocation2 + $0xb0] sm:$0xff]
        %v1418 = vld [vmem:[#allocation2 + $0xb8] sm:$0xff]
        %v1419 = vld [vmem:[#allocation2 + $0xc0] sm:$0xff]
        %v1420 = vld [vmem:[#allocation2 + $0xc8] sm:$0xff]
        %v1421 = vld [vmem:[#allocation2 + $0xd0] sm:$0xff]
        %v1422 = vld [vmem:[#allocation2 + $0xd8] sm:$0xff]
        %v1423 = vld [vmem:[#allocation2 + $0xe0] sm:$0xff]
        %v1424 = vld [vmem:[#allocation2 + $0xe8] sm:$0xff]
        %v1425 = vld [vmem:[#allocation2 + $0xf0] sm:$0xff]
        %v1426 = vld [vmem:[#allocation2 + $0xf8] sm:$0xff]
        %v1427 = vld [vmem:[#allocation2 + $0x100] sm:$0xff]
        %v1428 = vld [vmem:[#allocation2 + $0x108] sm:$0xff]
        %v1429 = vld [vmem:[#allocation2 + $0x110] sm:$0xff]
        %v1430 = vld [vmem:[#allocation2 + $0x118] sm:$0xff]
        %v1431 = vld [vmem:[#allocation2 + $0x120] sm:$0xff]
        %v1432 = vld [vmem:[#allocation2 + $0x128] sm:$0xff]
        %v1433 = vld [vmem:[#allocation2 + $0x130] sm:$0xff]
        %v1434 = vld [vmem:[#allocation2 + $0x138] sm:$0xff]
        %v1435 = vld [vmem:[#allocation2 + $0x140] sm:$0xff]
        %v1436 = vld [vmem:[#allocation2 + $0x148] sm:$0xff]
        %v1437 = vld [vmem:[#allocation2 + $0x150] sm:$0xff]
        %v1438 = vld [vmem:[#allocation2 + $0x158] sm:$0xff]
        %v1439 = vld [vmem:[#allocation2 + $0x160] sm:$0xff]
        %v1440 = vld [vmem:[#allocation2 + $0x168] sm:$0xff]
        %v1441 = vld [vmem:[#allocation2 + $0x170] sm:$0xff]
        %v1442 = vld [vmem:[#allocation2 + $0x178] sm:$0xff]
        %v1443 = vld [vmem:[#allocation2 + $0x180] sm:$0xff]
        %v1444 = vld [vmem:[#allocation2 + $0x188] sm:$0xff]
        %v1445 = vld [vmem:[#allocation2 + $0x190] sm:$0xff]
        %v1446 = vld [vmem:[#allocation2 + $0x198] sm:$0xff]
        %v1447 = vld [vmem:[#allocation2 + $0x1a0] sm:$0xff]
        %v1448 = vld [vmem:[#allocation2 + $0x1a8] sm:$0xff]
        %v1449 = vld [vmem:[#allocation2 + $0x1b0] sm:$0xff]
        %v1450 = vld [vmem:[#allocation2 + $0x1b8] sm:$0xff]
        %v1451 = vld [vmem:[#allocation2 + $0x1c0] sm:$0xff]
        %v1452 = vld [vmem:[#allocation2 + $0x1c8] sm:$0xff]
        %v1453 = vld [vmem:[#allocation2 + $0x1d0] sm:$0xff]
        %v1454 = vld [vmem:[#allocation2 + $0x1d8] sm:$0xff]
        %v1455 = vld [vmem:[#allocation2 + $0x1e0] sm:$0xff]
        %v1456 = vld [vmem:[#allocation2 + $0x1e8] sm:$0xff]
        %v1457 = vld [vmem:[#allocation2 + $0x1f0] sm:$0xff]
        %v1458 = vld [vmem:[#allocation2 + $0x1f8] sm:$0xff]
        %v1459 = vld [vmem:[%s295] sm:$0x1]
        %v1461 = vlaneseq
        %v1462 = vshrl.u32 %v1461, 7
        %v1463 = vsub.s32 0, %v1462
        %v1464 = vrot.slane %v1459, %v1463
        %v1466 = vmul.f32 %v1395, %v1464
        %v1467 = vmul.f32 %v1396, %v1464
        %v1468 = vmul.f32 %v1397, %v1464
        %v1469 = vmul.f32 %v1398, %v1464
        %v1470 = vmul.f32 %v1399, %v1464
        %v1471 = vmul.f32 %v1400, %v1464
        %v1472 = vmul.f32 %v1401, %v1464
        %v1473 = vmul.f32 %v1402, %v1464
        %v1474 = vmul.f32 %v1403, %v1464
        %v1475 = vmul.f32 %v1404, %v1464
        %v1476 = vmul.f32 %v1405, %v1464
        %v1477 = vmul.f32 %v1406, %v1464
        %v1478 = vmul.f32 %v1407, %v1464
        %v1479 = vmul.f32 %v1408, %v1464
        %v1480 = vmul.f32 %v1409, %v1464
        %v1481 = vmul.f32 %v1410, %v1464
        %v1482 = vmul.f32 %v1411, %v1464
        %v1483 = vmul.f32 %v1412, %v1464
        %v1484 = vmul.f32 %v1413, %v1464
        %v1485 = vmul.f32 %v1414, %v1464
        %v1486 = vmul.f32 %v1415, %v1464
        %v1487 = vmul.f32 %v1416, %v1464
        %v1488 = vmul.f32 %v1417, %v1464
        %v1489 = vmul.f32 %v1418, %v1464
        %v1490 = vmul.f32 %v1419, %v1464
        %v1491 = vmul.f32 %v1420, %v1464
        %v1492 = vmul.f32 %v1421, %v1464
        %v1493 = vmul.f32 %v1422, %v1464
        %v1494 = vmul.f32 %v1423, %v1464
        %v1495 = vmul.f32 %v1424, %v1464
        %v1496 = vmul.f32 %v1425, %v1464
        %v1497 = vmul.f32 %v1426, %v1464
        %v1498 = vmul.f32 %v1427, %v1464
        %v1499 = vmul.f32 %v1428, %v1464
        %v1500 = vmul.f32 %v1429, %v1464
        %v1501 = vmul.f32 %v1430, %v1464
        %v1502 = vmul.f32 %v1431, %v1464
        %v1503 = vmul.f32 %v1432, %v1464
        %v1504 = vmul.f32 %v1433, %v1464
        %v1505 = vmul.f32 %v1434, %v1464
        %v1506 = vmul.f32 %v1435, %v1464
        %v1507 = vmul.f32 %v1436, %v1464
        %v1508 = vmul.f32 %v1437, %v1464
        %v1509 = vmul.f32 %v1438, %v1464
        %v1510 = vmul.f32 %v1439, %v1464
        %v1511 = vmul.f32 %v1440, %v1464
        %v1512 = vmul.f32 %v1441, %v1464
        %v1513 = vmul.f32 %v1442, %v1464
        %v1514 = vmul.f32 %v1443, %v1464
        %v1515 = vmul.f32 %v1444, %v1464
        %v1516 = vmul.f32 %v1445, %v1464
        %v1517 = vmul.f32 %v1446, %v1464
        %v1518 = vmul.f32 %v1447, %v1464
        %v1519 = vmul.f32 %v1448, %v1464
        %v1520 = vmul.f32 %v1449, %v1464
        %v1521 = vmul.f32 %v1450, %v1464
        %v1522 = vmul.f32 %v1451, %v1464
        %v1523 = vmul.f32 %v1452, %v1464
        %v1524 = vmul.f32 %v1453, %v1464
        %v1525 = vmul.f32 %v1454, %v1464
        %v1526 = vmul.f32 %v1455, %v1464
        %v1527 = vmul.f32 %v1456, %v1464
        %v1528 = vmul.f32 %v1457, %v1464
        %v1529 = vmul.f32 %v1458, %v1464
        %v1530 = vld [vmem:[%s298] sm:$0x1]
        %v1532 = vlaneseq
        %v1533 = vshrl.u32 %v1532, 7
        %v1534 = vsub.s32 0, %v1533
        %v1535 = vrot.slane %v1530, %v1534
        %v1537 = vadd.f32 %v1466, %v1535
        %v1538 = vadd.f32 %v1467, %v1535
        %v1539 = vadd.f32 %v1468, %v1535
        %v1540 = vadd.f32 %v1469, %v1535
        %v1541 = vadd.f32 %v1470, %v1535
        %v1542 = vadd.f32 %v1471, %v1535
        %v1543 = vadd.f32 %v1472, %v1535
        %v1544 = vadd.f32 %v1473, %v1535
        %v1545 = vadd.f32 %v1474, %v1535
        %v1546 = vadd.f32 %v1475, %v1535
        %v1547 = vadd.f32 %v1476, %v1535
        %v1548 = vadd.f32 %v1477, %v1535
        %v1549 = vadd.f32 %v1478, %v1535
        %v1550 = vadd.f32 %v1479, %v1535
        %v1551 = vadd.f32 %v1480, %v1535
        %v1552 = vadd.f32 %v1481, %v1535
        %v1553 = vadd.f32 %v1482, %v1535
        %v1554 = vadd.f32 %v1483, %v1535
        %v1555 = vadd.f32 %v1484, %v1535
        %v1556 = vadd.f32 %v1485, %v1535
        %v1557 = vadd.f32 %v1486, %v1535
        %v1558 = vadd.f32 %v1487, %v1535
        %v1559 = vadd.f32 %v1488, %v1535
        %v1560 = vadd.f32 %v1489, %v1535
        %v1561 = vadd.f32 %v1490, %v1535
        %v1562 = vadd.f32 %v1491, %v1535
        %v1563 = vadd.f32 %v1492, %v1535
        %v1564 = vadd.f32 %v1493, %v1535
        %v1565 = vadd.f32 %v1494, %v1535
        %v1566 = vadd.f32 %v1495, %v1535
        %v1567 = vadd.f32 %v1496, %v1535
        %v1568 = vadd.f32 %v1497, %v1535
        %v1569 = vadd.f32 %v1498, %v1535
        %v1570 = vadd.f32 %v1499, %v1535
        %v1571 = vadd.f32 %v1500, %v1535
        %v1572 = vadd.f32 %v1501, %v1535
        %v1573 = vadd.f32 %v1502, %v1535
        %v1574 = vadd.f32 %v1503, %v1535
        %v1575 = vadd.f32 %v1504, %v1535
        %v1576 = vadd.f32 %v1505, %v1535
        %v1577 = vadd.f32 %v1506, %v1535
        %v1578 = vadd.f32 %v1507, %v1535
        %v1579 = vadd.f32 %v1508, %v1535
        %v1580 = vadd.f32 %v1509, %v1535
        %v1581 = vadd.f32 %v1510, %v1535
        %v1582 = vadd.f32 %v1511, %v1535
        %v1583 = vadd.f32 %v1512, %v1535
        %v1584 = vadd.f32 %v1513, %v1535
        %v1585 = vadd.f32 %v1514, %v1535
        %v1586 = vadd.f32 %v1515, %v1535
        %v1587 = vadd.f32 %v1516, %v1535
        %v1588 = vadd.f32 %v1517, %v1535
        %v1589 = vadd.f32 %v1518, %v1535
        %v1590 = vadd.f32 %v1519, %v1535
        %v1591 = vadd.f32 %v1520, %v1535
        %v1592 = vadd.f32 %v1521, %v1535
        %v1593 = vadd.f32 %v1522, %v1535
        %v1594 = vadd.f32 %v1523, %v1535
        %v1595 = vadd.f32 %v1524, %v1535
        %v1596 = vadd.f32 %v1525, %v1535
        %v1597 = vadd.f32 %v1526, %v1535
        %v1598 = vadd.f32 %v1527, %v1535
        %v1599 = vadd.f32 %v1528, %v1535
        %v1600 = vadd.f32 %v1529, %v1535
        %v1601 = vmax.f32 %v1537, 0.0
        %v1602 = vmax.f32 %v1538, 0.0
        %v1603 = vmax.f32 %v1539, 0.0
        %v1604 = vmax.f32 %v1540, 0.0
        %v1605 = vmax.f32 %v1541, 0.0
        %v1606 = vmax.f32 %v1542, 0.0
        %v1607 = vmax.f32 %v1543, 0.0
        %v1608 = vmax.f32 %v1544, 0.0
        %v1609 = vmax.f32 %v1545, 0.0
        %v1610 = vmax.f32 %v1546, 0.0
        %v1611 = vmax.f32 %v1547, 0.0
        %v1612 = vmax.f32 %v1548, 0.0
        %v1613 = vmax.f32 %v1549, 0.0
        %v1614 = vmax.f32 %v1550, 0.0
        %v1615 = vmax.f32 %v1551, 0.0
        %v1616 = vmax.f32 %v1552, 0.0
        %v1617 = vmax.f32 %v1553, 0.0
        %v1618 = vmax.f32 %v1554, 0.0
        %v1619 = vmax.f32 %v1555, 0.0
        %v1620 = vmax.f32 %v1556, 0.0
        %v1621 = vmax.f32 %v1557, 0.0
        %v1622 = vmax.f32 %v1558, 0.0
        %v1623 = vmax.f32 %v1559, 0.0
        %v1624 = vmax.f32 %v1560, 0.0
        %v1625 = vmax.f32 %v1561, 0.0
        %v1626 = vmax.f32 %v1562, 0.0
        %v1627 = vmax.f32 %v1563, 0.0
        %v1628 = vmax.f32 %v1564, 0.0
        %v1629 = vmax.f32 %v1565, 0.0
        %v1630 = vmax.f32 %v1566, 0.0
        %v1631 = vmax.f32 %v1567, 0.0
        %v1632 = vmax.f32 %v1568, 0.0
        %v1633 = vmax.f32 %v1569, 0.0
        %v1634 = vmax.f32 %v1570, 0.0
        %v1635 = vmax.f32 %v1571, 0.0
        %v1636 = vmax.f32 %v1572, 0.0
        %v1637 = vmax.f32 %v1573, 0.0
        %v1638 = vmax.f32 %v1574, 0.0
        %v1639 = vmax.f32 %v1575, 0.0
        %v1640 = vmax.f32 %v1576, 0.0
        %v1641 = vmax.f32 %v1577, 0.0
        %v1642 = vmax.f32 %v1578, 0.0
        %v1643 = vmax.f32 %v1579, 0.0
        %v1644 = vmax.f32 %v1580, 0.0
        %v1645 = vmax.f32 %v1581, 0.0
        %v1646 = vmax.f32 %v1582, 0.0
        %v1647 = vmax.f32 %v1583, 0.0
        %v1648 = vmax.f32 %v1584, 0.0
        %v1649 = vmax.f32 %v1585, 0.0
        %v1650 = vmax.f32 %v1586, 0.0
        %v1651 = vmax.f32 %v1587, 0.0
        %v1652 = vmax.f32 %v1588, 0.0
        %v1653 = vmax.f32 %v1589, 0.0
        %v1654 = vmax.f32 %v1590, 0.0
        %v1655 = vmax.f32 %v1591, 0.0
        %v1656 = vmax.f32 %v1592, 0.0
        %v1657 = vmax.f32 %v1593, 0.0
        %v1658 = vmax.f32 %v1594, 0.0
        %v1659 = vmax.f32 %v1595, 0.0
        %v1660 = vmax.f32 %v1596, 0.0
        %v1661 = vmax.f32 %v1597, 0.0
        %v1662 = vmax.f32 %v1598, 0.0
        %v1663 = vmax.f32 %v1599, 0.0
        %v1664 = vmax.f32 %v1600, 0.0
        %v1665 = vpack.c.bf16 %v1602, %v1601
        %v1666 = vpack.c.bf16 %v1604, %v1603
        %v1667 = vpack.c.bf16 %v1606, %v1605
        %v1668 = vpack.c.bf16 %v1608, %v1607
        %v1669 = vpack.c.bf16 %v1610, %v1609
        %v1670 = vpack.c.bf16 %v1612, %v1611
        %v1671 = vpack.c.bf16 %v1614, %v1613
        %v1672 = vpack.c.bf16 %v1616, %v1615
        %v1673 = vpack.c.bf16 %v1618, %v1617
        %v1674 = vpack.c.bf16 %v1620, %v1619
        %v1675 = vpack.c.bf16 %v1622, %v1621
        %v1676 = vpack.c.bf16 %v1624, %v1623
        %v1677 = vpack.c.bf16 %v1626, %v1625
        %v1678 = vpack.c.bf16 %v1628, %v1627
        %v1679 = vpack.c.bf16 %v1630, %v1629
        %v1680 = vpack.c.bf16 %v1632, %v1631
        %v1681 = vpack.c.bf16 %v1634, %v1633
        %v1682 = vpack.c.bf16 %v1636, %v1635
        %v1683 = vpack.c.bf16 %v1638, %v1637
        %v1684 = vpack.c.bf16 %v1640, %v1639
        %v1685 = vpack.c.bf16 %v1642, %v1641
        %v1686 = vpack.c.bf16 %v1644, %v1643
        %v1687 = vpack.c.bf16 %v1646, %v1645
        %v1688 = vpack.c.bf16 %v1648, %v1647
        %v1689 = vpack.c.bf16 %v1650, %v1649
        %v1690 = vpack.c.bf16 %v1652, %v1651
        %v1691 = vpack.c.bf16 %v1654, %v1653
        %v1692 = vpack.c.bf16 %v1656, %v1655
        %v1693 = vpack.c.bf16 %v1658, %v1657
        %v1694 = vpack.c.bf16 %v1660, %v1659
        %v1695 = vpack.c.bf16 %v1662, %v1661
        %v1696 = vpack.c.bf16 %v1664, %v1663
        %v1729 = vunpack.c.l.b16 %v1665
        %v1730 = vunpack.c.h.b16 %v1665
        %v1731 = vunpack.c.l.b16 %v1666
        %v1732 = vunpack.c.h.b16 %v1666
        %v1733 = vunpack.c.l.b16 %v1667
        %v1734 = vunpack.c.h.b16 %v1667
        %v1735 = vunpack.c.l.b16 %v1668
        %v1736 = vunpack.c.h.b16 %v1668
        %v1737 = vunpack.c.l.b16 %v1669
        %v1738 = vunpack.c.h.b16 %v1669
        %v1739 = vunpack.c.l.b16 %v1670
        %v1740 = vunpack.c.h.b16 %v1670
        %v1741 = vunpack.c.l.b16 %v1671
        %v1742 = vunpack.c.h.b16 %v1671
        %v1743 = vunpack.c.l.b16 %v1672
        %v1744 = vunpack.c.h.b16 %v1672
        %v1745 = vunpack.c.l.b16 %v1673
        %v1746 = vunpack.c.h.b16 %v1673
        %v1747 = vunpack.c.l.b16 %v1674
        %v1748 = vunpack.c.h.b16 %v1674
        %v1749 = vunpack.c.l.b16 %v1675
        %v1750 = vunpack.c.h.b16 %v1675
        %v1751 = vunpack.c.l.b16 %v1676
        %v1752 = vunpack.c.h.b16 %v1676
        %v1753 = vunpack.c.l.b16 %v1677
        %v1754 = vunpack.c.h.b16 %v1677
        %v1755 = vunpack.c.l.b16 %v1678
        %v1756 = vunpack.c.h.b16 %v1678
        %v1757 = vunpack.c.l.b16 %v1679
        %v1758 = vunpack.c.h.b16 %v1679
        %v1759 = vunpack.c.l.b16 %v1680
        %v1760 = vunpack.c.h.b16 %v1680
        %v1761 = vunpack.c.l.b16 %v1681
        %v1762 = vunpack.c.h.b16 %v1681
        %v1763 = vunpack.c.l.b16 %v1682
        %v1764 = vunpack.c.h.b16 %v1682
        %v1765 = vunpack.c.l.b16 %v1683
        %v1766 = vunpack.c.h.b16 %v1683
        %v1767 = vunpack.c.l.b16 %v1684
        %v1768 = vunpack.c.h.b16 %v1684
        %v1769 = vunpack.c.l.b16 %v1685
        %v1770 = vunpack.c.h.b16 %v1685
        %v1771 = vunpack.c.l.b16 %v1686
        %v1772 = vunpack.c.h.b16 %v1686
        %v1773 = vunpack.c.l.b16 %v1687
        %v1774 = vunpack.c.h.b16 %v1687
        %v1775 = vunpack.c.l.b16 %v1688
        %v1776 = vunpack.c.h.b16 %v1688
        %v1777 = vunpack.c.l.b16 %v1689
        %v1778 = vunpack.c.h.b16 %v1689
        %v1779 = vunpack.c.l.b16 %v1690
        %v1780 = vunpack.c.h.b16 %v1690
        %v1781 = vunpack.c.l.b16 %v1691
        %v1782 = vunpack.c.h.b16 %v1691
        %v1783 = vunpack.c.l.b16 %v1692
        %v1784 = vunpack.c.h.b16 %v1692
        %v1785 = vunpack.c.l.b16 %v1693
        %v1786 = vunpack.c.h.b16 %v1693
        %v1787 = vunpack.c.l.b16 %v1694
        %v1788 = vunpack.c.h.b16 %v1694
        %v1789 = vunpack.c.l.b16 %v1695
        %v1790 = vunpack.c.h.b16 %v1695
        %v1791 = vunpack.c.l.b16 %v1696
        %v1792 = vunpack.c.h.b16 %v1696
        %v1793 = vpack.c.b16 %v1729, %v1729
        %v1794 = vpack.c.b16 %v1730, %v1730
        %v1795 = vpack.c.b16 %v1731, %v1731
        %v1796 = vpack.c.b16 %v1732, %v1732
        %v1797 = vpack.c.b16 %v1733, %v1733
        %v1798 = vpack.c.b16 %v1734, %v1734
        %v1799 = vpack.c.b16 %v1735, %v1735
        %v1800 = vpack.c.b16 %v1736, %v1736
        %v1801 = vpack.c.b16 %v1737, %v1737
        %v1802 = vpack.c.b16 %v1738, %v1738
        %v1803 = vpack.c.b16 %v1739, %v1739
        %v1804 = vpack.c.b16 %v1740, %v1740
        %v1805 = vpack.c.b16 %v1741, %v1741
        %v1806 = vpack.c.b16 %v1742, %v1742
        %v1807 = vpack.c.b16 %v1743, %v1743
        %v1808 = vpack.c.b16 %v1744, %v1744
        %v1809 = vpack.c.b16 %v1745, %v1745
        %v1810 = vpack.c.b16 %v1746, %v1746
        %v1811 = vpack.c.b16 %v1747, %v1747
        %v1812 = vpack.c.b16 %v1748, %v1748
        %v1813 = vpack.c.b16 %v1749, %v1749
        %v1814 = vpack.c.b16 %v1750, %v1750
        %v1815 = vpack.c.b16 %v1751, %v1751
        %v1816 = vpack.c.b16 %v1752, %v1752
        %v1817 = vpack.c.b16 %v1753, %v1753
        %v1818 = vpack.c.b16 %v1754, %v1754
        %v1819 = vpack.c.b16 %v1755, %v1755
        %v1820 = vpack.c.b16 %v1756, %v1756
        %v1821 = vpack.c.b16 %v1757, %v1757
        %v1822 = vpack.c.b16 %v1758, %v1758
        %v1823 = vpack.c.b16 %v1759, %v1759
        %v1824 = vpack.c.b16 %v1760, %v1760
        %v1825 = vpack.c.b16 %v1761, %v1761
        %v1826 = vpack.c.b16 %v1762, %v1762
        %v1827 = vpack.c.b16 %v1763, %v1763
        %v1828 = vpack.c.b16 %v1764, %v1764
        %v1829 = vpack.c.b16 %v1765, %v1765
        %v1830 = vpack.c.b16 %v1766, %v1766
        %v1831 = vpack.c.b16 %v1767, %v1767
        %v1832 = vpack.c.b16 %v1768, %v1768
        %v1833 = vpack.c.b16 %v1769, %v1769
        %v1834 = vpack.c.b16 %v1770, %v1770
        %v1835 = vpack.c.b16 %v1771, %v1771
        %v1836 = vpack.c.b16 %v1772, %v1772
        %v1837 = vpack.c.b16 %v1773, %v1773
        %v1838 = vpack.c.b16 %v1774, %v1774
        %v1839 = vpack.c.b16 %v1775, %v1775
        %v1840 = vpack.c.b16 %v1776, %v1776
        %v1841 = vpack.c.b16 %v1777, %v1777
        %v1842 = vpack.c.b16 %v1778, %v1778
        %v1843 = vpack.c.b16 %v1779, %v1779
        %v1844 = vpack.c.b16 %v1780, %v1780
        %v1845 = vpack.c.b16 %v1781, %v1781
        %v1846 = vpack.c.b16 %v1782, %v1782
        %v1847 = vpack.c.b16 %v1783, %v1783
        %v1848 = vpack.c.b16 %v1784, %v1784
        %v1849 = vpack.c.b16 %v1785, %v1785
        %v1850 = vpack.c.b16 %v1786, %v1786
        %v1851 = vpack.c.b16 %v1787, %v1787
        %v1852 = vpack.c.b16 %v1788, %v1788
        %v1853 = vpack.c.b16 %v1789, %v1789
        %v1854 = vpack.c.b16 %v1790, %v1790
        %v1855 = vpack.c.b16 %v1791, %v1791
        %v1856 = vpack.c.b16 %v1792, %v1792
        %vm1921 = vcmask 519168
        %1922 = vst.msk [vmem:[%s306] sm:$0xf] %vm1921, %v1793
        %1923 = vst.msk [vmem:[%s306 + $0x4] sm:$0xf] %vm1921, %v1794
        %1924 = vst.msk [vmem:[%s306 + $0x8] sm:$0xf] %vm1921, %v1795
        %1925 = vst.msk [vmem:[%s306 + $0xc] sm:$0xf] %vm1921, %v1796
        %1926 = vst.msk [vmem:[%s306 + $0x10] sm:$0xf] %vm1921, %v1797
        %1927 = vst.msk [vmem:[%s306 + $0x14] sm:$0xf] %vm1921, %v1798
        %1928 = vst.msk [vmem:[%s306 + $0x18] sm:$0xf] %vm1921, %v1799
        %1929 = vst.msk [vmem:[%s306 + $0x1c] sm:$0xf] %vm1921, %v1800
        %1930 = vst.msk [vmem:[%s306 + $0x20] sm:$0xf] %vm1921, %v1801
        %1931 = vst.msk [vmem:[%s306 + $0x24] sm:$0xf] %vm1921, %v1802
        %1932 = vst.msk [vmem:[%s306 + $0x28] sm:$0xf] %vm1921, %v1803
        %1933 = vst.msk [vmem:[%s306 + $0x2c] sm:$0xf] %vm1921, %v1804
        %1934 = vst.msk [vmem:[%s306 + $0x30] sm:$0xf] %vm1921, %v1805
        %1935 = vst.msk [vmem:[%s306 + $0x34] sm:$0xf] %vm1921, %v1806
        %1936 = vst.msk [vmem:[%s306 + $0x38] sm:$0xf] %vm1921, %v1807
        %1937 = vst.msk [vmem:[%s306 + $0x3c] sm:$0xf] %vm1921, %v1808
        %1938 = vst.msk [vmem:[%s306 + $0x40] sm:$0xf] %vm1921, %v1809
        %1939 = vst.msk [vmem:[%s306 + $0x44] sm:$0xf] %vm1921, %v1810
        %1940 = vst.msk [vmem:[%s306 + $0x48] sm:$0xf] %vm1921, %v1811
        %1941 = vst.msk [vmem:[%s306 + $0x4c] sm:$0xf] %vm1921, %v1812
        %1942 = vst.msk [vmem:[%s306 + $0x50] sm:$0xf] %vm1921, %v1813
        %1943 = vst.msk [vmem:[%s306 + $0x54] sm:$0xf] %vm1921, %v1814
        %1944 = vst.msk [vmem:[%s306 + $0x58] sm:$0xf] %vm1921, %v1815
        %1945 = vst.msk [vmem:[%s306 + $0x5c] sm:$0xf] %vm1921, %v1816
        %1946 = vst.msk [vmem:[%s306 + $0x60] sm:$0xf] %vm1921, %v1817
        %1947 = vst.msk [vmem:[%s306 + $0x64] sm:$0xf] %vm1921, %v1818
        %1948 = vst.msk [vmem:[%s306 + $0x68] sm:$0xf] %vm1921, %v1819
        %1949 = vst.msk [vmem:[%s306 + $0x6c] sm:$0xf] %vm1921, %v1820
        %1950 = vst.msk [vmem:[%s306 + $0x70] sm:$0xf] %vm1921, %v1821
        %1951 = vst.msk [vmem:[%s306 + $0x74] sm:$0xf] %vm1921, %v1822
        %1952 = vst.msk [vmem:[%s306 + $0x78] sm:$0xf] %vm1921, %v1823
        %1953 = vst.msk [vmem:[%s306 + $0x7c] sm:$0xf] %vm1921, %v1824
        %1954 = vst.msk [vmem:[%s306 + $0x80] sm:$0xf] %vm1921, %v1825
        %1955 = vst.msk [vmem:[%s306 + $0x84] sm:$0xf] %vm1921, %v1826
        %1956 = vst.msk [vmem:[%s306 + $0x88] sm:$0xf] %vm1921, %v1827
        %1957 = vst.msk [vmem:[%s306 + $0x8c] sm:$0xf] %vm1921, %v1828
        %1958 = vst.msk [vmem:[%s306 + $0x90] sm:$0xf] %vm1921, %v1829
        %1959 = vst.msk [vmem:[%s306 + $0x94] sm:$0xf] %vm1921, %v1830
        %1960 = vst.msk [vmem:[%s306 + $0x98] sm:$0xf] %vm1921, %v1831
        %1961 = vst.msk [vmem:[%s306 + $0x9c] sm:$0xf] %vm1921, %v1832
        %1962 = vst.msk [vmem:[%s306 + $0xa0] sm:$0xf] %vm1921, %v1833
        %1963 = vst.msk [vmem:[%s306 + $0xa4] sm:$0xf] %vm1921, %v1834
        %1964 = vst.msk [vmem:[%s306 + $0xa8] sm:$0xf] %vm1921, %v1835
        %1965 = vst.msk [vmem:[%s306 + $0xac] sm:$0xf] %vm1921, %v1836
        %1966 = vst.msk [vmem:[%s306 + $0xb0] sm:$0xf] %vm1921, %v1837
        %1967 = vst.msk [vmem:[%s306 + $0xb4] sm:$0xf] %vm1921, %v1838
        %1968 = vst.msk [vmem:[%s306 + $0xb8] sm:$0xf] %vm1921, %v1839
        %1969 = vst.msk [vmem:[%s306 + $0xbc] sm:$0xf] %vm1921, %v1840
        %1970 = vst.msk [vmem:[%s306 + $0xc0] sm:$0xf] %vm1921, %v1841
        %1971 = vst.msk [vmem:[%s306 + $0xc4] sm:$0xf] %vm1921, %v1842
        %1972 = vst.msk [vmem:[%s306 + $0xc8] sm:$0xf] %vm1921, %v1843
        %1973 = vst.msk [vmem:[%s306 + $0xcc] sm:$0xf] %vm1921, %v1844
        %1974 = vst.msk [vmem:[%s306 + $0xd0] sm:$0xf] %vm1921, %v1845
        %1975 = vst.msk [vmem:[%s306 + $0xd4] sm:$0xf] %vm1921, %v1846
        %1976 = vst.msk [vmem:[%s306 + $0xd8] sm:$0xf] %vm1921, %v1847
        %1977 = vst.msk [vmem:[%s306 + $0xdc] sm:$0xf] %vm1921, %v1848
        %1978 = vst.msk [vmem:[%s306 + $0xe0] sm:$0xf] %vm1921, %v1849
        %1979 = vst.msk [vmem:[%s306 + $0xe4] sm:$0xf] %vm1921, %v1850
        %1980 = vst.msk [vmem:[%s306 + $0xe8] sm:$0xf] %vm1921, %v1851
        %1981 = vst.msk [vmem:[%s306 + $0xec] sm:$0xf] %vm1921, %v1852
        %1982 = vst.msk [vmem:[%s306 + $0xf0] sm:$0xf] %vm1921, %v1853
        %1983 = vst.msk [vmem:[%s306 + $0xf4] sm:$0xf] %vm1921, %v1854
        %1984 = vst.msk [vmem:[%s306 + $0xf8] sm:$0xf] %vm1921, %v1855
        %1985 = vst.msk [vmem:[%s306 + $0xfc] sm:$0xf] %vm1921, %v1856
      $region44: #{_stem_fwd.2} parent=35 // pred_fallthru
        _
      %s1986 = smul.u32 64, %s20
      %p1987 = scmp.lt.s32.totalorder %s1986, 255
      %s1988 = scalar_select %p1987, %s1986, 255
      %p1989 = scmp.lt.s32.totalorder %s21, 0
      %s1990 = scalar_select %p1989, %s21, 0
      %s1991 = sadd.s32 %s1990, %s1988
      %s1992 = smul.addr %s1991, 4
      %s1993 = scalar_lea.vmem %s4, %s1992
      // Predicated region
      $region45: #{_stem_fwd.2} parent=35 // pred_check
        %p1994 = pneg %p162
      $region46: #{_stem_fwd.2} parent=35 // pred_check_branch
        %1996 = sbr.rel (%p1994) target = $region48
      $region47: #{_stem_fwd.2} parent=35 // pred_region
        %s1997 = smul.u32 64, %s20
      $region48: #{_stem_fwd.2} parent=35 // pred_fallthru
        _
    $region36: #{_stem_fwd.2} parent=5 // pred_fallthru
      _
    %p1998 = scmp.le.s32.totalorder 2, %s10
    // Predicated region
    $region49: #{_stem_fwd.2} parent=5 // pred_check
      %p1999 = pneg %p1998
    $region50: #{_stem_fwd.2} parent=5 // pred_check_branch
      %2001 = sbr.rel (%p1999) target = $region52
    $region51: #{_stem_fwd.2} parent=5 // pred_region
      %s2002 = ssub.s32 %s10, 2
      // Predicated region
      $region53: #{_stem_fwd.2} parent=51 // pred_check
        %p2003 = pneg %p168
      $region54: #{_stem_fwd.2} parent=51 // pred_check_branch
        %2005 = sbr.rel (%p2003) target = $region56
      $region55: #{_stem_fwd.2} parent=51 // pred_region
        %s2006 = smul.u32 64, %s23
        %p2007 = scmp.lt.s32.totalorder %s2006, 255
        %s2008 = scalar_select %p2007, %s2006, 255
        %p2009 = scmp.lt.s32.totalorder %s24, 0
        %s2010 = scalar_select %p2009, %s24, 0
        %s2011 = sadd.s32 %s2010, %s2008
        %s2012 = smul.addr %s2011, 4
        %s2013 = scalar_lea.vmem %s4, %s2012
      $region56: #{_stem_fwd.2} parent=51 // pred_fallthru
        _
    $region52: #{_stem_fwd.2} parent=5 // pred_fallthru
      _
  $region6: #{_stem_fwd.2} parent=0 // loop_footer
    %s14 = sadd.s32 1, %s10
  $region7: #{_stem_fwd.2} parent=0 // loop_footer_branch
    %9 = sbr.rel target = $region3
  $region8: #{_stem_fwd.2} parent=0 // loop_exit
    _

// kernel: _stem_fwd.3
$region0: #{_stem_fwd.3}
  #allocation0 [shape = 'u32[]', space=smem, size = 0x4, offset = 0x4, fixed_abs, tag = 'smem constant byte address 0x4 - core index']
  #allocation1 [shape = 'u32[144,128]{1,0:T(1,128)}', space=vmem, size = 0x12000, scoped, tag = 'internal scratch']
  %s0 = inlined_call_operand.vmem [shape: bf16[9,512,64], index: 0, kind: input, shape index: {}]
  %s1 = inlined_call_operand.hbm [shape: bf16[512,64], index: 1, kind: output, shape index: {}]
  %s2 = sld [smem:[#allocation0]]
  $region14: #{_stem_fwd.3} parent=0
    _
  %s4 = ssub.s32 1, %s2
  %s5 = scalar_select 0, %s4, %s2
  $region1: #{_stem_fwd.3} parent=0
    #allocation2 [shape = 'u8[131072]{0}', space=vmem, size = 0x20000, scoped, tag = 'output window, operand 0, single buffered']
    #allocation3 [shape = 's32[1]{0}', space=sflag, size = 0x4, scoped, tag = 'scoped memory for _stem_fwd.3']
    %6 = vsyncpa [#allocation3], 0
    // Predicated region
    $region2: #{_stem_fwd.3} parent=1 // pred_check
      _
    $region3: #{_stem_fwd.3} parent=1 // pred_check_branch
      %8 = sbr.rel (0) target = $region5
    $region4: #{_stem_fwd.3} parent=1 // pred_region
      _
    $region5: #{_stem_fwd.3} parent=1 // pred_fallthru
      _
    %v10 = vld [vmem:[%s0] sm:$0xf]
    %v11 = vld [vmem:[%s0 + $0x4] sm:$0xf]
    %v12 = vld [vmem:[%s0 + $0x8] sm:$0xf]
    %v13 = vld [vmem:[%s0 + $0xc] sm:$0xf]
    %v14 = vld [vmem:[%s0 + $0x10] sm:$0xf]
    %v15 = vld [vmem:[%s0 + $0x14] sm:$0xf]
    %v16 = vld [vmem:[%s0 + $0x18] sm:$0xf]
    %v17 = vld [vmem:[%s0 + $0x1c] sm:$0xf]
    %v18 = vld [vmem:[%s0 + $0x20] sm:$0xf]
    %v19 = vld [vmem:[%s0 + $0x24] sm:$0xf]
    %v20 = vld [vmem:[%s0 + $0x28] sm:$0xf]
    %v21 = vld [vmem:[%s0 + $0x2c] sm:$0xf]
    %v22 = vld [vmem:[%s0 + $0x30] sm:$0xf]
    %v23 = vld [vmem:[%s0 + $0x34] sm:$0xf]
    %v24 = vld [vmem:[%s0 + $0x38] sm:$0xf]
    %v25 = vld [vmem:[%s0 + $0x3c] sm:$0xf]
    %v26 = vld [vmem:[%s0 + $0x40] sm:$0xf]
    %v27 = vld [vmem:[%s0 + $0x44] sm:$0xf]
    %v28 = vld [vmem:[%s0 + $0x48] sm:$0xf]
    %v29 = vld [vmem:[%s0 + $0x4c] sm:$0xf]
    %v30 = vld [vmem:[%s0 + $0x50] sm:$0xf]
    %v31 = vld [vmem:[%s0 + $0x54] sm:$0xf]
    %v32 = vld [vmem:[%s0 + $0x58] sm:$0xf]
    %v33 = vld [vmem:[%s0 + $0x5c] sm:$0xf]
    %v34 = vld [vmem:[%s0 + $0x60] sm:$0xf]
    %v35 = vld [vmem:[%s0 + $0x64] sm:$0xf]
    %v36 = vld [vmem:[%s0 + $0x68] sm:$0xf]
    %v37 = vld [vmem:[%s0 + $0x6c] sm:$0xf]
    %v38 = vld [vmem:[%s0 + $0x70] sm:$0xf]
    %v39 = vld [vmem:[%s0 + $0x74] sm:$0xf]
    %v40 = vld [vmem:[%s0 + $0x78] sm:$0xf]
    %v41 = vld [vmem:[%s0 + $0x7c] sm:$0xf]
    %v42 = vld [vmem:[%s0 + $0x80] sm:$0xf]
    %v43 = vld [vmem:[%s0 + $0x84] sm:$0xf]
    %v44 = vld [vmem:[%s0 + $0x88] sm:$0xf]
    %v45 = vld [vmem:[%s0 + $0x8c] sm:$0xf]
    %v46 = vld [vmem:[%s0 + $0x90] sm:$0xf]
    %v47 = vld [vmem:[%s0 + $0x94] sm:$0xf]
    %v48 = vld [vmem:[%s0 + $0x98] sm:$0xf]
    %v49 = vld [vmem:[%s0 + $0x9c] sm:$0xf]
    %v50 = vld [vmem:[%s0 + $0xa0] sm:$0xf]
    %v51 = vld [vmem:[%s0 + $0xa4] sm:$0xf]
    %v52 = vld [vmem:[%s0 + $0xa8] sm:$0xf]
    %v53 = vld [vmem:[%s0 + $0xac] sm:$0xf]
    %v54 = vld [vmem:[%s0 + $0xb0] sm:$0xf]
    %v55 = vld [vmem:[%s0 + $0xb4] sm:$0xf]
    %v56 = vld [vmem:[%s0 + $0xb8] sm:$0xf]
    %v57 = vld [vmem:[%s0 + $0xbc] sm:$0xf]
    %v58 = vld [vmem:[%s0 + $0xc0] sm:$0xf]
    %v59 = vld [vmem:[%s0 + $0xc4] sm:$0xf]
    %v60 = vld [vmem:[%s0 + $0xc8] sm:$0xf]
    %v61 = vld [vmem:[%s0 + $0xcc] sm:$0xf]
    %v62 = vld [vmem:[%s0 + $0xd0] sm:$0xf]
    %v63 = vld [vmem:[%s0 + $0xd4] sm:$0xf]
    %v64 = vld [vmem:[%s0 + $0xd8] sm:$0xf]
    %v65 = vld [vmem:[%s0 + $0xdc] sm:$0xf]
    %v66 = vld [vmem:[%s0 + $0xe0] sm:$0xf]
    %v67 = vld [vmem:[%s0 + $0xe4] sm:$0xf]
    %v68 = vld [vmem:[%s0 + $0xe8] sm:$0xf]
    %v69 = vld [vmem:[%s0 + $0xec] sm:$0xf]
    %v70 = vld [vmem:[%s0 + $0xf0] sm:$0xf]
    %v71 = vld [vmem:[%s0 + $0xf4] sm:$0xf]
    %v72 = vld [vmem:[%s0 + $0xf8] sm:$0xf]
    %v73 = vld [vmem:[%s0 + $0xfc] sm:$0xf]
    %v74 = vld [vmem:[%s0 + $0x100] sm:$0xf]
    %v75 = vld [vmem:[%s0 + $0x104] sm:$0xf]
    %v76 = vld [vmem:[%s0 + $0x108] sm:$0xf]
    %v77 = vld [vmem:[%s0 + $0x10c] sm:$0xf]
    %v78 = vld [vmem:[%s0 + $0x110] sm:$0xf]
    %v79 = vld [vmem:[%s0 + $0x114] sm:$0xf]
    %v80 = vld [vmem:[%s0 + $0x118] sm:$0xf]
    %v81 = vld [vmem:[%s0 + $0x11c] sm:$0xf]
    %v82 = vld [vmem:[%s0 + $0x120] sm:$0xf]
    %v83 = vld [vmem:[%s0 + $0x124] sm:$0xf]
    %v84 = vld [vmem:[%s0 + $0x128] sm:$0xf]
    %v85 = vld [vmem:[%s0 + $0x12c] sm:$0xf]
    %v86 = vld [vmem:[%s0 + $0x130] sm:$0xf]
    %v87 = vld [vmem:[%s0 + $0x134] sm:$0xf]
    %v88 = vld [vmem:[%s0 + $0x138] sm:$0xf]
    %v89 = vld [vmem:[%s0 + $0x13c] sm:$0xf]
    %v90 = vld [vmem:[%s0 + $0x140] sm:$0xf]
    %v91 = vld [vmem:[%s0 + $0x144] sm:$0xf]
    %v92 = vld [vmem:[%s0 + $0x148] sm:$0xf]
    %v93 = vld [vmem:[%s0 + $0x14c] sm:$0xf]
    %v94 = vld [vmem:[%s0 + $0x150] sm:$0xf]
    %v95 = vld [vmem:[%s0 + $0x154] sm:$0xf]
    %v96 = vld [vmem:[%s0 + $0x158] sm:$0xf]
    %v97 = vld [vmem:[%s0 + $0x15c] sm:$0xf]
    %v98 = vld [vmem:[%s0 + $0x160] sm:$0xf]
    %v99 = vld [vmem:[%s0 + $0x164] sm:$0xf]
    %v100 = vld [vmem:[%s0 + $0x168] sm:$0xf]
    %v101 = vld [vmem:[%s0 + $0x16c] sm:$0xf]
    %v102 = vld [vmem:[%s0 + $0x170] sm:$0xf]
    %v103 = vld [vmem:[%s0 + $0x174] sm:$0xf]
    %v104 = vld [vmem:[%s0 + $0x178] sm:$0xf]
    %v105 = vld [vmem:[%s0 + $0x17c] sm:$0xf]
    %v106 = vld [vmem:[%s0 + $0x180] sm:$0xf]
    %v107 = vld [vmem:[%s0 + $0x184] sm:$0xf]
    %v108 = vld [vmem:[%s0 + $0x188] sm:$0xf]
    %v109 = vld [vmem:[%s0 + $0x18c] sm:$0xf]
    %v110 = vld [vmem:[%s0 + $0x190] sm:$0xf]
    %v111 = vld [vmem:[%s0 + $0x194] sm:$0xf]
    %v112 = vld [vmem:[%s0 + $0x198] sm:$0xf]
    %v113 = vld [vmem:[%s0 + $0x19c] sm:$0xf]
    %v114 = vld [vmem:[%s0 + $0x1a0] sm:$0xf]
    %v115 = vld [vmem:[%s0 + $0x1a4] sm:$0xf]
    %v116 = vld [vmem:[%s0 + $0x1a8] sm:$0xf]
    %v117 = vld [vmem:[%s0 + $0x1ac] sm:$0xf]
    %v118 = vld [vmem:[%s0 + $0x1b0] sm:$0xf]
    %v119 = vld [vmem:[%s0 + $0x1b4] sm:$0xf]
    %v120 = vld [vmem:[%s0 + $0x1b8] sm:$0xf]
    %v121 = vld [vmem:[%s0 + $0x1bc] sm:$0xf]
    %v122 = vld [vmem:[%s0 + $0x1c0] sm:$0xf]
    %v123 = vld [vmem:[%s0 + $0x1c4] sm:$0xf]
    %v124 = vld [vmem:[%s0 + $0x1c8] sm:$0xf]
    %v125 = vld [vmem:[%s0 + $0x1cc] sm:$0xf]
    %v126 = vld [vmem:[%s0 + $0x1d0] sm:$0xf]
    %v127 = vld [vmem:[%s0 + $0x1d4] sm:$0xf]
    %v128 = vld [vmem:[%s0 + $0x1d8] sm:$0xf]
    %v129 = vld [vmem:[%s0 + $0x1dc] sm:$0xf]
    %v130 = vld [vmem:[%s0 + $0x1e0] sm:$0xf]
    %v131 = vld [vmem:[%s0 + $0x1e4] sm:$0xf]
    %v132 = vld [vmem:[%s0 + $0x1e8] sm:$0xf]
    %v133 = vld [vmem:[%s0 + $0x1ec] sm:$0xf]
    %v134 = vld [vmem:[%s0 + $0x1f0] sm:$0xf]
    %v135 = vld [vmem:[%s0 + $0x1f4] sm:$0xf]
    %v136 = vld [vmem:[%s0 + $0x1f8] sm:$0xf]
    %v137 = vld [vmem:[%s0 + $0x1fc] sm:$0xf]
    %v138 = vld [vmem:[%s0 + $0x200] sm:$0xf]
    %v139 = vld [vmem:[%s0 + $0x204] sm:$0xf]
    %v140 = vld [vmem:[%s0 + $0x208] sm:$0xf]
    %v141 = vld [vmem:[%s0 + $0x20c] sm:$0xf]
    %v142 = vld [vmem:[%s0 + $0x210] sm:$0xf]
    %v143 = vld [vmem:[%s0 + $0x214] sm:$0xf]
    %v144 = vld [vmem:[%s0 + $0x218] sm:$0xf]
    %v145 = vld [vmem:[%s0 + $0x21c] sm:$0xf]
    %v146 = vld [vmem:[%s0 + $0x220] sm:$0xf]
    %v147 = vld [vmem:[%s0 + $0x224] sm:$0xf]
    %v148 = vld [vmem:[%s0 + $0x228] sm:$0xf]
    %v149 = vld [vmem:[%s0 + $0x22c] sm:$0xf]
    %v150 = vld [vmem:[%s0 + $0x230] sm:$0xf]
    %v151 = vld [vmem:[%s0 + $0x234] sm:$0xf]
    %v152 = vld [vmem:[%s0 + $0x238] sm:$0xf]
    %v153 = vld [vmem:[%s0 + $0x23c] sm:$0xf]
    %v154 = vld [vmem:[%s0 + $0x240] sm:$0xf]
    %v155 = vld [vmem:[%s0 + $0x244] sm:$0xf]
    %v156 = vld [vmem:[%s0 + $0x248] sm:$0xf]
    %v157 = vld [vmem:[%s0 + $0x24c] sm:$0xf]
    %v158 = vld [vmem:[%s0 + $0x250] sm:$0xf]
    %v159 = vld [vmem:[%s0 + $0x254] sm:$0xf]
    %v160 = vld [vmem:[%s0 + $0x258] sm:$0xf]
    %v161 = vld [vmem:[%s0 + $0x25c] sm:$0xf]
    %v162 = vld [vmem:[%s0 + $0x260] sm:$0xf]
    %v163 = vld [vmem:[%s0 + $0x264] sm:$0xf]
    %v164 = vld [vmem:[%s0 + $0x268] sm:$0xf]
    %v165 = vld [vmem:[%s0 + $0x26c] sm:$0xf]
    %v166 = vld [vmem:[%s0 + $0x270] sm:$0xf]
    %v167 = vld [vmem:[%s0 + $0x274] sm:$0xf]
    %v168 = vld [vmem:[%s0 + $0x278] sm:$0xf]
    %v169 = vld [vmem:[%s0 + $0x27c] sm:$0xf]
    %v170 = vld [vmem:[%s0 + $0x280] sm:$0xf]
    %v171 = vld [vmem:[%s0 + $0x284] sm:$0xf]
    %v172 = vld [vmem:[%s0 + $0x288] sm:$0xf]
    %v173 = vld [vmem:[%s0 + $0x28c] sm:$0xf]
    %v174 = vld [vmem:[%s0 + $0x290] sm:$0xf]
    %v175 = vld [vmem:[%s0 + $0x294] sm:$0xf]
    %v176 = vld [vmem:[%s0 + $0x298] sm:$0xf]
    %v177 = vld [vmem:[%s0 + $0x29c] sm:$0xf]
    %v178 = vld [vmem:[%s0 + $0x2a0] sm:$0xf]
    %v179 = vld [vmem:[%s0 + $0x2a4] sm:$0xf]
    %v180 = vld [vmem:[%s0 + $0x2a8] sm:$0xf]
    %v181 = vld [vmem:[%s0 + $0x2ac] sm:$0xf]
    %v182 = vld [vmem:[%s0 + $0x2b0] sm:$0xf]
    %v183 = vld [vmem:[%s0 + $0x2b4] sm:$0xf]
    %v184 = vld [vmem:[%s0 + $0x2b8] sm:$0xf]
    %v185 = vld [vmem:[%s0 + $0x2bc] sm:$0xf]
    %v186 = vld [vmem:[%s0 + $0x2c0] sm:$0xf]
    %v187 = vld [vmem:[%s0 + $0x2c4] sm:$0xf]
    %v188 = vld [vmem:[%s0 + $0x2c8] sm:$0xf]
    %v189 = vld [vmem:[%s0 + $0x2cc] sm:$0xf]
    %v190 = vld [vmem:[%s0 + $0x2d0] sm:$0xf]
    %v191 = vld [vmem:[%s0 + $0x2d4] sm:$0xf]
    %v192 = vld [vmem:[%s0 + $0x2d8] sm:$0xf]
    %v193 = vld [vmem:[%s0 + $0x2dc] sm:$0xf]
    %v194 = vld [vmem:[%s0 + $0x2e0] sm:$0xf]
    %v195 = vld [vmem:[%s0 + $0x2e4] sm:$0xf]
    %v196 = vld [vmem:[%s0 + $0x2e8] sm:$0xf]
    %v197 = vld [vmem:[%s0 + $0x2ec] sm:$0xf]
    %v198 = vld [vmem:[%s0 + $0x2f0] sm:$0xf]
    %v199 = vld [vmem:[%s0 + $0x2f4] sm:$0xf]
    %v200 = vld [vmem:[%s0 + $0x2f8] sm:$0xf]
    %v201 = vld [vmem:[%s0 + $0x2fc] sm:$0xf]
    %v202 = vld [vmem:[%s0 + $0x300] sm:$0xf]
    %v203 = vld [vmem:[%s0 + $0x304] sm:$0xf]
    %v204 = vld [vmem:[%s0 + $0x308] sm:$0xf]
    %v205 = vld [vmem:[%s0 + $0x30c] sm:$0xf]
    %v206 = vld [vmem:[%s0 + $0x310] sm:$0xf]
    %v207 = vld [vmem:[%s0 + $0x314] sm:$0xf]
    %v208 = vld [vmem:[%s0 + $0x318] sm:$0xf]
    %v209 = vld [vmem:[%s0 + $0x31c] sm:$0xf]
    %v210 = vld [vmem:[%s0 + $0x320] sm:$0xf]
    %v211 = vld [vmem:[%s0 + $0x324] sm:$0xf]
    %v212 = vld [vmem:[%s0 + $0x328] sm:$0xf]
    %v213 = vld [vmem:[%s0 + $0x32c] sm:$0xf]
    %v214 = vld [vmem:[%s0 + $0x330] sm:$0xf]
    %v215 = vld [vmem:[%s0 + $0x334] sm:$0xf]
    %v216 = vld [vmem:[%s0 + $0x338] sm:$0xf]
    %v217 = vld [vmem:[%s0 + $0x33c] sm:$0xf]
    %v218 = vld [vmem:[%s0 + $0x340] sm:$0xf]
    %v219 = vld [vmem:[%s0 + $0x344] sm:$0xf]
    %v220 = vld [vmem:[%s0 + $0x348] sm:$0xf]
    %v221 = vld [vmem:[%s0 + $0x34c] sm:$0xf]
    %v222 = vld [vmem:[%s0 + $0x350] sm:$0xf]
    %v223 = vld [vmem:[%s0 + $0x354] sm:$0xf]
    %v224 = vld [vmem:[%s0 + $0x358] sm:$0xf]
    %v225 = vld [vmem:[%s0 + $0x35c] sm:$0xf]
    %v226 = vld [vmem:[%s0 + $0x360] sm:$0xf]
    %v227 = vld [vmem:[%s0 + $0x364] sm:$0xf]
    %v228 = vld [vmem:[%s0 + $0x368] sm:$0xf]
    %v229 = vld [vmem:[%s0 + $0x36c] sm:$0xf]
    %v230 = vld [vmem:[%s0 + $0x370] sm:$0xf]
    %v231 = vld [vmem:[%s0 + $0x374] sm:$0xf]
    %v232 = vld [vmem:[%s0 + $0x378] sm:$0xf]
    %v233 = vld [vmem:[%s0 + $0x37c] sm:$0xf]
    %v234 = vld [vmem:[%s0 + $0x380] sm:$0xf]
    %v235 = vld [vmem:[%s0 + $0x384] sm:$0xf]
    %v236 = vld [vmem:[%s0 + $0x388] sm:$0xf]
    %v237 = vld [vmem:[%s0 + $0x38c] sm:$0xf]
    %v238 = vld [vmem:[%s0 + $0x390] sm:$0xf]
    %v239 = vld [vmem:[%s0 + $0x394] sm:$0xf]
    %v240 = vld [vmem:[%s0 + $0x398] sm:$0xf]
    %v241 = vld [vmem:[%s0 + $0x39c] sm:$0xf]
    %v242 = vld [vmem:[%s0 + $0x3a0] sm:$0xf]
    %v243 = vld [vmem:[%s0 + $0x3a4] sm:$0xf]
    %v244 = vld [vmem:[%s0 + $0x3a8] sm:$0xf]
    %v245 = vld [vmem:[%s0 + $0x3ac] sm:$0xf]
    %v246 = vld [vmem:[%s0 + $0x3b0] sm:$0xf]
    %v247 = vld [vmem:[%s0 + $0x3b4] sm:$0xf]
    %v248 = vld [vmem:[%s0 + $0x3b8] sm:$0xf]
    %v249 = vld [vmem:[%s0 + $0x3bc] sm:$0xf]
    %v250 = vld [vmem:[%s0 + $0x3c0] sm:$0xf]
    %v251 = vld [vmem:[%s0 + $0x3c4] sm:$0xf]
    %v252 = vld [vmem:[%s0 + $0x3c8] sm:$0xf]
    %v253 = vld [vmem:[%s0 + $0x3cc] sm:$0xf]
    %v254 = vld [vmem:[%s0 + $0x3d0] sm:$0xf]
    %v255 = vld [vmem:[%s0 + $0x3d4] sm:$0xf]
    %v256 = vld [vmem:[%s0 + $0x3d8] sm:$0xf]
    %v257 = vld [vmem:[%s0 + $0x3dc] sm:$0xf]
    %v258 = vld [vmem:[%s0 + $0x3e0] sm:$0xf]
    %v259 = vld [vmem:[%s0 + $0x3e4] sm:$0xf]
    %v260 = vld [vmem:[%s0 + $0x3e8] sm:$0xf]
    %v261 = vld [vmem:[%s0 + $0x3ec] sm:$0xf]
    %v262 = vld [vmem:[%s0 + $0x3f0] sm:$0xf]
    %v263 = vld [vmem:[%s0 + $0x3f4] sm:$0xf]
    %v264 = vld [vmem:[%s0 + $0x3f8] sm:$0xf]
    %v265 = vld [vmem:[%s0 + $0x3fc] sm:$0xf]
    %v266 = vld [vmem:[%s0 + $0x400] sm:$0xf]
    %v267 = vld [vmem:[%s0 + $0x404] sm:$0xf]
    %v268 = vld [vmem:[%s0 + $0x408] sm:$0xf]
    %v269 = vld [vmem:[%s0 + $0x40c] sm:$0xf]
    %v270 = vld [vmem:[%s0 + $0x410] sm:$0xf]
    %v271 = vld [vmem:[%s0 + $0x414] sm:$0xf]
    %v272 = vld [vmem:[%s0 + $0x418] sm:$0xf]
    %v273 = vld [vmem:[%s0 + $0x41c] sm:$0xf]
    %v274 = vld [vmem:[%s0 + $0x420] sm:$0xf]
    %v275 = vld [vmem:[%s0 + $0x424] sm:$0xf]
    %v276 = vld [vmem:[%s0 + $0x428] sm:$0xf]
    %v277 = vld [vmem:[%s0 + $0x42c] sm:$0xf]
    %v278 = vld [vmem:[%s0 + $0x430] sm:$0xf]
    %v279 = vld [vmem:[%s0 + $0x434] sm:$0xf]
    %v280 = vld [vmem:[%s0 + $0x438] sm:$0xf]
    %v281 = vld [vmem:[%s0 + $0x43c] sm:$0xf]
    %v282 = vld [vmem:[%s0 + $0x440] sm:$0xf]
    %v283 = vld [vmem:[%s0 + $0x444] sm:$0xf]
    %v284 = vld [vmem:[%s0 + $0x448] sm:$0xf]
    %v285 = vld [vmem:[%s0 + $0x44c] sm:$0xf]
    %v286 = vld [vmem:[%s0 + $0x450] sm:$0xf]
    %v287 = vld [vmem:[%s0 + $0x454] sm:$0xf]
    %v288 = vld [vmem:[%s0 + $0x458] sm:$0xf]
    %v289 = vld [vmem:[%s0 + $0x45c] sm:$0xf]
    %v290 = vld [vmem:[%s0 + $0x460] sm:$0xf]
    %v291 = vld [vmem:[%s0 + $0x464] sm:$0xf]
    %v292 = vld [vmem:[%s0 + $0x468] sm:$0xf]
    %v293 = vld [vmem:[%s0 + $0x46c] sm:$0xf]
    %v294 = vld [vmem:[%s0 + $0x470] sm:$0xf]
    %v295 = vld [vmem:[%s0 + $0x474] sm:$0xf]
    %v296 = vld [vmem:[%s0 + $0x478] sm:$0xf]
    %v297 = vld [vmem:[%s0 + $0x47c] sm:$0xf]
    %v298 = vld [vmem:[%s0 + $0x480] sm:$0xf]
    %v299 = vld [vmem:[%s0 + $0x484] sm:$0xf]
    %v300 = vld [vmem:[%s0 + $0x488] sm:$0xf]
    %v301 = vld [vmem:[%s0 + $0x48c] sm:$0xf]
    %v302 = vld [vmem:[%s0 + $0x490] sm:$0xf]
    %v303 = vld [vmem:[%s0 + $0x494] sm:$0xf]
    %v304 = vld [vmem:[%s0 + $0x498] sm:$0xf]
    %v305 = vld [vmem:[%s0 + $0x49c] sm:$0xf]
    %v306 = vld [vmem:[%s0 + $0x4a0] sm:$0xf]
    %v307 = vld [vmem:[%s0 + $0x4a4] sm:$0xf]
    %v308 = vld [vmem:[%s0 + $0x4a8] sm:$0xf]
    %v309 = vld [vmem:[%s0 + $0x4ac] sm:$0xf]
    %v310 = vld [vmem:[%s0 + $0x4b0] sm:$0xf]
    %v311 = vld [vmem:[%s0 + $0x4b4] sm:$0xf]
    %v312 = vld [vmem:[%s0 + $0x4b8] sm:$0xf]
    %v313 = vld [vmem:[%s0 + $0x4bc] sm:$0xf]
    %v314 = vld [vmem:[%s0 + $0x4c0] sm:$0xf]
    %v315 = vld [vmem:[%s0 + $0x4c4] sm:$0xf]
    %v316 = vld [vmem:[%s0 + $0x4c8] sm:$0xf]
    %v317 = vld [vmem:[%s0 + $0x4cc] sm:$0xf]
    %v318 = vld [vmem:[%s0 + $0x4d0] sm:$0xf]
    %v319 = vld [vmem:[%s0 + $0x4d4] sm:$0xf]
    %v320 = vld [vmem:[%s0 + $0x4d8] sm:$0xf]
    %v321 = vld [vmem:[%s0 + $0x4dc] sm:$0xf]
    %v322 = vld [vmem:[%s0 + $0x4e0] sm:$0xf]
    %v323 = vld [vmem:[%s0 + $0x4e4] sm:$0xf]
    %v324 = vld [vmem:[%s0 + $0x4e8] sm:$0xf]
    %v325 = vld [vmem:[%s0 + $0x4ec] sm:$0xf]
    %v326 = vld [vmem:[%s0 + $0x4f0] sm:$0xf]
    %v327 = vld [vmem:[%s0 + $0x4f4] sm:$0xf]
    %v328 = vld [vmem:[%s0 + $0x4f8] sm:$0xf]
    %v329 = vld [vmem:[%s0 + $0x4fc] sm:$0xf]
    %v330 = vld [vmem:[%s0 + $0x500] sm:$0xf]
    %v331 = vld [vmem:[%s0 + $0x504] sm:$0xf]
    %v332 = vld [vmem:[%s0 + $0x508] sm:$0xf]
    %v333 = vld [vmem:[%s0 + $0x50c] sm:$0xf]
    %v334 = vld [vmem:[%s0 + $0x510] sm:$0xf]
    %v335 = vld [vmem:[%s0 + $0x514] sm:$0xf]
    %v336 = vld [vmem:[%s0 + $0x518] sm:$0xf]
    %v337 = vld [vmem:[%s0 + $0x51c] sm:$0xf]
    %v338 = vld [vmem:[%s0 + $0x520] sm:$0xf]
    %v339 = vld [vmem:[%s0 + $0x524] sm:$0xf]
    %v340 = vld [vmem:[%s0 + $0x528] sm:$0xf]
    %v341 = vld [vmem:[%s0 + $0x52c] sm:$0xf]
    %v342 = vld [vmem:[%s0 + $0x530] sm:$0xf]
    %v343 = vld [vmem:[%s0 + $0x534] sm:$0xf]
    %v344 = vld [vmem:[%s0 + $0x538] sm:$0xf]
    %v345 = vld [vmem:[%s0 + $0x53c] sm:$0xf]
    %v346 = vld [vmem:[%s0 + $0x540] sm:$0xf]
    %v347 = vld [vmem:[%s0 + $0x544] sm:$0xf]
    %v348 = vld [vmem:[%s0 + $0x548] sm:$0xf]
    %v349 = vld [vmem:[%s0 + $0x54c] sm:$0xf]
    %v350 = vld [vmem:[%s0 + $0x550] sm:$0xf]
    %v351 = vld [vmem:[%s0 + $0x554] sm:$0xf]
    %v352 = vld [vmem:[%s0 + $0x558] sm:$0xf]
    %v353 = vld [vmem:[%s0 + $0x55c] sm:$0xf]
    %v354 = vld [vmem:[%s0 + $0x560] sm:$0xf]
    %v355 = vld [vmem:[%s0 + $0x564] sm:$0xf]
    %v356 = vld [vmem:[%s0 + $0x568] sm:$0xf]
    %v357 = vld [vmem:[%s0 + $0x56c] sm:$0xf]
    %v358 = vld [vmem:[%s0 + $0x570] sm:$0xf]
    %v359 = vld [vmem:[%s0 + $0x574] sm:$0xf]
    %v360 = vld [vmem:[%s0 + $0x578] sm:$0xf]
    %v361 = vld [vmem:[%s0 + $0x57c] sm:$0xf]
    %v362 = vld [vmem:[%s0 + $0x580] sm:$0xf]
    %v363 = vld [vmem:[%s0 + $0x584] sm:$0xf]
    %v364 = vld [vmem:[%s0 + $0x588] sm:$0xf]
    %v365 = vld [vmem:[%s0 + $0x58c] sm:$0xf]
    %v366 = vld [vmem:[%s0 + $0x590] sm:$0xf]
    %v367 = vld [vmem:[%s0 + $0x594] sm:$0xf]
    %v368 = vld [vmem:[%s0 + $0x598] sm:$0xf]
    %v369 = vld [vmem:[%s0 + $0x59c] sm:$0xf]
    %v370 = vld [vmem:[%s0 + $0x5a0] sm:$0xf]
    %v371 = vld [vmem:[%s0 + $0x5a4] sm:$0xf]
    %v372 = vld [vmem:[%s0 + $0x5a8] sm:$0xf]
    %v373 = vld [vmem:[%s0 + $0x5ac] sm:$0xf]
    %v374 = vld [vmem:[%s0 + $0x5b0] sm:$0xf]
    %v375 = vld [vmem:[%s0 + $0x5b4] sm:$0xf]
    %v376 = vld [vmem:[%s0 + $0x5b8] sm:$0xf]
    %v377 = vld [vmem:[%s0 + $0x5bc] sm:$0xf]
    %v378 = vld [vmem:[%s0 + $0x5c0] sm:$0xf]
    %v379 = vld [vmem:[%s0 + $0x5c4] sm:$0xf]
    %v380 = vld [vmem:[%s0 + $0x5c8] sm:$0xf]
    %v381 = vld [vmem:[%s0 + $0x5cc] sm:$0xf]
    %v382 = vld [vmem:[%s0 + $0x5d0] sm:$0xf]
    %v383 = vld [vmem:[%s0 + $0x5d4] sm:$0xf]
    %v384 = vld [vmem:[%s0 + $0x5d8] sm:$0xf]
    %v385 = vld [vmem:[%s0 + $0x5dc] sm:$0xf]
    %v386 = vld [vmem:[%s0 + $0x5e0] sm:$0xf]
    %v387 = vld [vmem:[%s0 + $0x5e4] sm:$0xf]
    %v388 = vld [vmem:[%s0 + $0x5e8] sm:$0xf]
    %v389 = vld [vmem:[%s0 + $0x5ec] sm:$0xf]
    %v390 = vld [vmem:[%s0 + $0x5f0] sm:$0xf]
    %v391 = vld [vmem:[%s0 + $0x5f4] sm:$0xf]
    %v392 = vld [vmem:[%s0 + $0x5f8] sm:$0xf]
    %v393 = vld [vmem:[%s0 + $0x5fc] sm:$0xf]
    %v394 = vld [vmem:[%s0 + $0x600] sm:$0xf]
    %v395 = vld [vmem:[%s0 + $0x604] sm:$0xf]
    %v396 = vld [vmem:[%s0 + $0x608] sm:$0xf]
    %v397 = vld [vmem:[%s0 + $0x60c] sm:$0xf]
    %v398 = vld [vmem:[%s0 + $0x610] sm:$0xf]
    %v399 = vld [vmem:[%s0 + $0x614] sm:$0xf]
    %v400 = vld [vmem:[%s0 + $0x618] sm:$0xf]
    %v401 = vld [vmem:[%s0 + $0x61c] sm:$0xf]
    %v402 = vld [vmem:[%s0 + $0x620] sm:$0xf]
    %v403 = vld [vmem:[%s0 + $0x624] sm:$0xf]
    %v404 = vld [vmem:[%s0 + $0x628] sm:$0xf]
    %v405 = vld [vmem:[%s0 + $0x62c] sm:$0xf]
    %v406 = vld [vmem:[%s0 + $0x630] sm:$0xf]
    %v407 = vld [vmem:[%s0 + $0x634] sm:$0xf]
    %v408 = vld [vmem:[%s0 + $0x638] sm:$0xf]
    %v409 = vld [vmem:[%s0 + $0x63c] sm:$0xf]
    %v410 = vld [vmem:[%s0 + $0x640] sm:$0xf]
    %v411 = vld [vmem:[%s0 + $0x644] sm:$0xf]
    %v412 = vld [vmem:[%s0 + $0x648] sm:$0xf]
    %v413 = vld [vmem:[%s0 + $0x64c] sm:$0xf]
    %v414 = vld [vmem:[%s0 + $0x650] sm:$0xf]
    %v415 = vld [vmem:[%s0 + $0x654] sm:$0xf]
    %v416 = vld [vmem:[%s0 + $0x658] sm:$0xf]
    %v417 = vld [vmem:[%s0 + $0x65c] sm:$0xf]
    %v418 = vld [vmem:[%s0 + $0x660] sm:$0xf]
    %v419 = vld [vmem:[%s0 + $0x664] sm:$0xf]
    %v420 = vld [vmem:[%s0 + $0x668] sm:$0xf]
    %v421 = vld [vmem:[%s0 + $0x66c] sm:$0xf]
    %v422 = vld [vmem:[%s0 + $0x670] sm:$0xf]
    %v423 = vld [vmem:[%s0 + $0x674] sm:$0xf]
    %v424 = vld [vmem:[%s0 + $0x678] sm:$0xf]
    %v425 = vld [vmem:[%s0 + $0x67c] sm:$0xf]
    %v426 = vld [vmem:[%s0 + $0x680] sm:$0xf]
    %v427 = vld [vmem:[%s0 + $0x684] sm:$0xf]
    %v428 = vld [vmem:[%s0 + $0x688] sm:$0xf]
    %v429 = vld [vmem:[%s0 + $0x68c] sm:$0xf]
    %v430 = vld [vmem:[%s0 + $0x690] sm:$0xf]
    %v431 = vld [vmem:[%s0 + $0x694] sm:$0xf]
    %v432 = vld [vmem:[%s0 + $0x698] sm:$0xf]
    %v433 = vld [vmem:[%s0 + $0x69c] sm:$0xf]
    %v434 = vld [vmem:[%s0 + $0x6a0] sm:$0xf]
    %v435 = vld [vmem:[%s0 + $0x6a4] sm:$0xf]
    %v436 = vld [vmem:[%s0 + $0x6a8] sm:$0xf]
    %v437 = vld [vmem:[%s0 + $0x6ac] sm:$0xf]
    %v438 = vld [vmem:[%s0 + $0x6b0] sm:$0xf]
    %v439 = vld [vmem:[%s0 + $0x6b4] sm:$0xf]
    %v440 = vld [vmem:[%s0 + $0x6b8] sm:$0xf]
    %v441 = vld [vmem:[%s0 + $0x6bc] sm:$0xf]
    %v442 = vld [vmem:[%s0 + $0x6c0] sm:$0xf]
    %v443 = vld [vmem:[%s0 + $0x6c4] sm:$0xf]
    %v444 = vld [vmem:[%s0 + $0x6c8] sm:$0xf]
    %v445 = vld [vmem:[%s0 + $0x6cc] sm:$0xf]
    %v446 = vld [vmem:[%s0 + $0x6d0] sm:$0xf]
    %v447 = vld [vmem:[%s0 + $0x6d4] sm:$0xf]
    %v448 = vld [vmem:[%s0 + $0x6d8] sm:$0xf]
    %v449 = vld [vmem:[%s0 + $0x6dc] sm:$0xf]
    %v450 = vld [vmem:[%s0 + $0x6e0] sm:$0xf]
    %v451 = vld [vmem:[%s0 + $0x6e4] sm:$0xf]
    %v452 = vld [vmem:[%s0 + $0x6e8] sm:$0xf]
    %v453 = vld [vmem:[%s0 + $0x6ec] sm:$0xf]
    %v454 = vld [vmem:[%s0 + $0x6f0] sm:$0xf]
    %v455 = vld [vmem:[%s0 + $0x6f4] sm:$0xf]
    %v456 = vld [vmem:[%s0 + $0x6f8] sm:$0xf]
    %v457 = vld [vmem:[%s0 + $0x6fc] sm:$0xf]
    %v458 = vld [vmem:[%s0 + $0x700] sm:$0xf]
    %v459 = vld [vmem:[%s0 + $0x704] sm:$0xf]
    %v460 = vld [vmem:[%s0 + $0x708] sm:$0xf]
    %v461 = vld [vmem:[%s0 + $0x70c] sm:$0xf]
    %v462 = vld [vmem:[%s0 + $0x710] sm:$0xf]
    %v463 = vld [vmem:[%s0 + $0x714] sm:$0xf]
    %v464 = vld [vmem:[%s0 + $0x718] sm:$0xf]
    %v465 = vld [vmem:[%s0 + $0x71c] sm:$0xf]
    %v466 = vld [vmem:[%s0 + $0x720] sm:$0xf]
    %v467 = vld [vmem:[%s0 + $0x724] sm:$0xf]
    %v468 = vld [vmem:[%s0 + $0x728] sm:$0xf]
    %v469 = vld [vmem:[%s0 + $0x72c] sm:$0xf]
    %v470 = vld [vmem:[%s0 + $0x730] sm:$0xf]
    %v471 = vld [vmem:[%s0 + $0x734] sm:$0xf]
    %v472 = vld [vmem:[%s0 + $0x738] sm:$0xf]
    %v473 = vld [vmem:[%s0 + $0x73c] sm:$0xf]
    %v474 = vld [vmem:[%s0 + $0x740] sm:$0xf]
    %v475 = vld [vmem:[%s0 + $0x744] sm:$0xf]
    %v476 = vld [vmem:[%s0 + $0x748] sm:$0xf]
    %v477 = vld [vmem:[%s0 + $0x74c] sm:$0xf]
    %v478 = vld [vmem:[%s0 + $0x750] sm:$0xf]
    %v479 = vld [vmem:[%s0 + $0x754] sm:$0xf]
    %v480 = vld [vmem:[%s0 + $0x758] sm:$0xf]
    %v481 = vld [vmem:[%s0 + $0x75c] sm:$0xf]
    %v482 = vld [vmem:[%s0 + $0x760] sm:$0xf]
    %v483 = vld [vmem:[%s0 + $0x764] sm:$0xf]
    %v484 = vld [vmem:[%s0 + $0x768] sm:$0xf]
    %v485 = vld [vmem:[%s0 + $0x76c] sm:$0xf]
    %v486 = vld [vmem:[%s0 + $0x770] sm:$0xf]
    %v487 = vld [vmem:[%s0 + $0x774] sm:$0xf]
    %v488 = vld [vmem:[%s0 + $0x778] sm:$0xf]
    %v489 = vld [vmem:[%s0 + $0x77c] sm:$0xf]
    %v490 = vld [vmem:[%s0 + $0x780] sm:$0xf]
    %v491 = vld [vmem:[%s0 + $0x784] sm:$0xf]
    %v492 = vld [vmem:[%s0 + $0x788] sm:$0xf]
    %v493 = vld [vmem:[%s0 + $0x78c] sm:$0xf]
    %v494 = vld [vmem:[%s0 + $0x790] sm:$0xf]
    %v495 = vld [vmem:[%s0 + $0x794] sm:$0xf]
    %v496 = vld [vmem:[%s0 + $0x798] sm:$0xf]
    %v497 = vld [vmem:[%s0 + $0x79c] sm:$0xf]
    %v498 = vld [vmem:[%s0 + $0x7a0] sm:$0xf]
    %v499 = vld [vmem:[%s0 + $0x7a4] sm:$0xf]
    %v500 = vld [vmem:[%s0 + $0x7a8] sm:$0xf]
    %v501 = vld [vmem:[%s0 + $0x7ac] sm:$0xf]
    %v502 = vld [vmem:[%s0 + $0x7b0] sm:$0xf]
    %v503 = vld [vmem:[%s0 + $0x7b4] sm:$0xf]
    %v504 = vld [vmem:[%s0 + $0x7b8] sm:$0xf]
    %v505 = vld [vmem:[%s0 + $0x7bc] sm:$0xf]
    %v506 = vld [vmem:[%s0 + $0x7c0] sm:$0xf]
    %v507 = vld [vmem:[%s0 + $0x7c4] sm:$0xf]
    %v508 = vld [vmem:[%s0 + $0x7c8] sm:$0xf]
    %v509 = vld [vmem:[%s0 + $0x7cc] sm:$0xf]
    %v510 = vld [vmem:[%s0 + $0x7d0] sm:$0xf]
    %v511 = vld [vmem:[%s0 + $0x7d4] sm:$0xf]
    %v512 = vld [vmem:[%s0 + $0x7d8] sm:$0xf]
    %v513 = vld [vmem:[%s0 + $0x7dc] sm:$0xf]
    %v514 = vld [vmem:[%s0 + $0x7e0] sm:$0xf]
    %v515 = vld [vmem:[%s0 + $0x7e4] sm:$0xf]
    %v516 = vld [vmem:[%s0 + $0x7e8] sm:$0xf]
    %v517 = vld [vmem:[%s0 + $0x7ec] sm:$0xf]
    %v518 = vld [vmem:[%s0 + $0x7f0] sm:$0xf]
    %v519 = vld [vmem:[%s0 + $0x7f4] sm:$0xf]
    %v520 = vld [vmem:[%s0 + $0x7f8] sm:$0xf]
    %v521 = vld [vmem:[%s0 + $0x7fc] sm:$0xf]
    %v522 = vld [vmem:[%s0 + $0x800] sm:$0xf]
    %v523 = vld [vmem:[%s0 + $0x804] sm:$0xf]
    %v524 = vld [vmem:[%s0 + $0x808] sm:$0xf]
    %v525 = vld [vmem:[%s0 + $0x80c] sm:$0xf]
    %v526 = vld [vmem:[%s0 + $0x810] sm:$0xf]
    %v527 = vld [vmem:[%s0 + $0x814] sm:$0xf]
    %v528 = vld [vmem:[%s0 + $0x818] sm:$0xf]
    %v529 = vld [vmem:[%s0 + $0x81c] sm:$0xf]
    %v530 = vld [vmem:[%s0 + $0x820] sm:$0xf]
    %v531 = vld [vmem:[%s0 + $0x824] sm:$0xf]
    %v532 = vld [vmem:[%s0 + $0x828] sm:$0xf]
    %v533 = vld [vmem:[%s0 + $0x82c] sm:$0xf]
    %v534 = vld [vmem:[%s0 + $0x830] sm:$0xf]
    %v535 = vld [vmem:[%s0 + $0x834] sm:$0xf]
    %v536 = vld [vmem:[%s0 + $0x838] sm:$0xf]
    %v537 = vld [vmem:[%s0 + $0x83c] sm:$0xf]
    %v538 = vld [vmem:[%s0 + $0x840] sm:$0xf]
    %v539 = vld [vmem:[%s0 + $0x844] sm:$0xf]
    %v540 = vld [vmem:[%s0 + $0x848] sm:$0xf]
    %v541 = vld [vmem:[%s0 + $0x84c] sm:$0xf]
    %v542 = vld [vmem:[%s0 + $0x850] sm:$0xf]
    %v543 = vld [vmem:[%s0 + $0x854] sm:$0xf]
    %v544 = vld [vmem:[%s0 + $0x858] sm:$0xf]
    %v545 = vld [vmem:[%s0 + $0x85c] sm:$0xf]
    %v546 = vld [vmem:[%s0 + $0x860] sm:$0xf]
    %v547 = vld [vmem:[%s0 + $0x864] sm:$0xf]
    %v548 = vld [vmem:[%s0 + $0x868] sm:$0xf]
    %v549 = vld [vmem:[%s0 + $0x86c] sm:$0xf]
    %v550 = vld [vmem:[%s0 + $0x870] sm:$0xf]
    %v551 = vld [vmem:[%s0 + $0x874] sm:$0xf]
    %v552 = vld [vmem:[%s0 + $0x878] sm:$0xf]
    %v553 = vld [vmem:[%s0 + $0x87c] sm:$0xf]
    %v554 = vld [vmem:[%s0 + $0x880] sm:$0xf]
    %v555 = vld [vmem:[%s0 + $0x884] sm:$0xf]
    %v556 = vld [vmem:[%s0 + $0x888] sm:$0xf]
    %v557 = vld [vmem:[%s0 + $0x88c] sm:$0xf]
    %v558 = vld [vmem:[%s0 + $0x890] sm:$0xf]
    %v559 = vld [vmem:[%s0 + $0x894] sm:$0xf]
    %v560 = vld [vmem:[%s0 + $0x898] sm:$0xf]
    %v561 = vld [vmem:[%s0 + $0x89c] sm:$0xf]
    %v562 = vld [vmem:[%s0 + $0x8a0] sm:$0xf]
    %v563 = vld [vmem:[%s0 + $0x8a4] sm:$0xf]
    %v564 = vld [vmem:[%s0 + $0x8a8] sm:$0xf]
    %v565 = vld [vmem:[%s0 + $0x8ac] sm:$0xf]
    %v566 = vld [vmem:[%s0 + $0x8b0] sm:$0xf]
    %v567 = vld [vmem:[%s0 + $0x8b4] sm:$0xf]
    %v568 = vld [vmem:[%s0 + $0x8b8] sm:$0xf]
    %v569 = vld [vmem:[%s0 + $0x8bc] sm:$0xf]
    %v570 = vld [vmem:[%s0 + $0x8c0] sm:$0xf]
    %v571 = vld [vmem:[%s0 + $0x8c4] sm:$0xf]
    %v572 = vld [vmem:[%s0 + $0x8c8] sm:$0xf]
    %v573 = vld [vmem:[%s0 + $0x8cc] sm:$0xf]
    %v574 = vld [vmem:[%s0 + $0x8d0] sm:$0xf]
    %v575 = vld [vmem:[%s0 + $0x8d4] sm:$0xf]
    %v576 = vld [vmem:[%s0 + $0x8d8] sm:$0xf]
    %v577 = vld [vmem:[%s0 + $0x8dc] sm:$0xf]
    %v578 = vld [vmem:[%s0 + $0x8e0] sm:$0xf]
    %v579 = vld [vmem:[%s0 + $0x8e4] sm:$0xf]
    %v580 = vld [vmem:[%s0 + $0x8e8] sm:$0xf]
    %v581 = vld [vmem:[%s0 + $0x8ec] sm:$0xf]
    %v582 = vld [vmem:[%s0 + $0x8f0] sm:$0xf]
    %v583 = vld [vmem:[%s0 + $0x8f4] sm:$0xf]
    %v584 = vld [vmem:[%s0 + $0x8f8] sm:$0xf]
    %v585 = vld [vmem:[%s0 + $0x8fc] sm:$0xf]
    %vm586 = vcmask 519168
    %v589 = vsel %vm586, %v10, 4286644096
    %v592 = vsel %vm586, %v74, 4286644096
    %v594 = vmax.bf16 %v589, %v592
    %v596 = vsel %vm586, %v138, 4286644096
    %v598 = vmax.bf16 %v594, %v596
    %v600 = vsel %vm586, %v202, 4286644096
    %v602 = vmax.bf16 %v598, %v600
    %v604 = vsel %vm586, %v266, 4286644096
    %v606 = vmax.bf16 %v602, %v604
    %v608 = vsel %vm586, %v330, 4286644096
    %v610 = vmax.bf16 %v606, %v608
    %v612 = vsel %vm586, %v394, 4286644096
    %v614 = vmax.bf16 %v610, %v612
    %v616 = vsel %vm586, %v458, 4286644096
    %v618 = vmax.bf16 %v614, %v616
    %v620 = vsel %vm586, %v522, 4286644096
    %v622 = vmax.bf16 %v618, %v620
    %v624 = vsel %vm586, %v11, 4286644096
    %v627 = vsel %vm586, %v75, 4286644096
    %v629 = vmax.bf16 %v624, %v627
    %v631 = vsel %vm586, %v139, 4286644096
    %v633 = vmax.bf16 %v629, %v631
    %v635 = vsel %vm586, %v203, 4286644096
    %v637 = vmax.bf16 %v633, %v635
    %v639 = vsel %vm586, %v267, 4286644096
    %v641 = vmax.bf16 %v637, %v639
    %v643 = vsel %vm586, %v331, 4286644096
    %v645 = vmax.bf16 %v641, %v643
    %v647 = vsel %vm586, %v395, 4286644096
    %v649 = vmax.bf16 %v645, %v647
    %v651 = vsel %vm586, %v459, 4286644096
    %v653 = vmax.bf16 %v649, %v651
    %v655 = vsel %vm586, %v523, 4286644096
    %v657 = vmax.bf16 %v653, %v655
    %v659 = vsel %vm586, %v12, 4286644096
    %v662 = vsel %vm586, %v76, 4286644096
    %v664 = vmax.bf16 %v659, %v662
    %v666 = vsel %vm586, %v140, 4286644096
    %v668 = vmax.bf16 %v664, %v666
    %v670 = vsel %vm586, %v204, 4286644096
    %v672 = vmax.bf16 %v668, %v670
    %v674 = vsel %vm586, %v268, 4286644096
    %v676 = vmax.bf16 %v672, %v674
    %v678 = vsel %vm586, %v332, 4286644096
    %v680 = vmax.bf16 %v676, %v678
    %v682 = vsel %vm586, %v396, 4286644096
    %v684 = vmax.bf16 %v680, %v682
    %v686 = vsel %vm586, %v460, 4286644096
    %v688 = vmax.bf16 %v684, %v686
    %v690 = vsel %vm586, %v524, 4286644096
    %v692 = vmax.bf16 %v688, %v690
    %v694 = vsel %vm586, %v13, 4286644096
    %v697 = vsel %vm586, %v77, 4286644096
    %v699 = vmax.bf16 %v694, %v697
    %v701 = vsel %vm586, %v141, 4286644096
    %v703 = vmax.bf16 %v699, %v701
    %v705 = vsel %vm586, %v205, 4286644096
    %v707 = vmax.bf16 %v703, %v705
    %v709 = vsel %vm586, %v269, 4286644096
    %v711 = vmax.bf16 %v707, %v709
    %v713 = vsel %vm586, %v333, 4286644096
    %v715 = vmax.bf16 %v711, %v713
    %v717 = vsel %vm586, %v397, 4286644096
    %v719 = vmax.bf16 %v715, %v717
    %v721 = vsel %vm586, %v461, 4286644096
    %v723 = vmax.bf16 %v719, %v721
    %v725 = vsel %vm586, %v525, 4286644096
    %v727 = vmax.bf16 %v723, %v725
    %v729 = vsel %vm586, %v14, 4286644096
    %v732 = vsel %vm586, %v78, 4286644096
    %v734 = vmax.bf16 %v729, %v732
    %v736 = vsel %vm586, %v142, 4286644096
    %v738 = vmax.bf16 %v734, %v736
    %v740 = vsel %vm586, %v206, 4286644096
    %v742 = vmax.bf16 %v738, %v740
    %v744 = vsel %vm586, %v270, 4286644096
    %v746 = vmax.bf16 %v742, %v744
    %v748 = vsel %vm586, %v334, 4286644096
    %v750 = vmax.bf16 %v746, %v748
    %v752 = vsel %vm586, %v398, 4286644096
    %v754 = vmax.bf16 %v750, %v752
    %v756 = vsel %vm586, %v462, 4286644096
    %v758 = vmax.bf16 %v754, %v756
    %v760 = vsel %vm586, %v526, 4286644096
    %v762 = vmax.bf16 %v758, %v760
    %v764 = vsel %vm586, %v15, 4286644096
    %v767 = vsel %vm586, %v79, 4286644096
    %v769 = vmax.bf16 %v764, %v767
    %v771 = vsel %vm586, %v143, 4286644096
    %v773 = vmax.bf16 %v769, %v771
    %v775 = vsel %vm586, %v207, 4286644096
    %v777 = vmax.bf16 %v773, %v775
    %v779 = vsel %vm586, %v271, 4286644096
    %v781 = vmax.bf16 %v777, %v779
    %v783 = vsel %vm586, %v335, 4286644096
    %v785 = vmax.bf16 %v781, %v783
    %v787 = vsel %vm586, %v399, 4286644096
    %v789 = vmax.bf16 %v785, %v787
    %v791 = vsel %vm586, %v463, 4286644096
    %v793 = vmax.bf16 %v789, %v791
    %v795 = vsel %vm586, %v527, 4286644096
    %v797 = vmax.bf16 %v793, %v795
    %v799 = vsel %vm586, %v16, 4286644096
    %v802 = vsel %vm586, %v80, 4286644096
    %v804 = vmax.bf16 %v799, %v802
    %v806 = vsel %vm586, %v144, 4286644096
    %v808 = vmax.bf16 %v804, %v806
    %v810 = vsel %vm586, %v208, 4286644096
    %v812 = vmax.bf16 %v808, %v810
    %v814 = vsel %vm586, %v272, 4286644096
    %v816 = vmax.bf16 %v812, %v814
    %v818 = vsel %vm586, %v336, 4286644096
    %v820 = vmax.bf16 %v816, %v818
    %v822 = vsel %vm586, %v400, 4286644096
    %v824 = vmax.bf16 %v820, %v822
    %v826 = vsel %vm586, %v464, 4286644096
    %v828 = vmax.bf16 %v824, %v826
    %v830 = vsel %vm586, %v528, 4286644096
    %v832 = vmax.bf16 %v828, %v830
    %v834 = vsel %vm586, %v17, 4286644096
    %v837 = vsel %vm586, %v81, 4286644096
    %v839 = vmax.bf16 %v834, %v837
    %v841 = vsel %vm586, %v145, 4286644096
    %v843 = vmax.bf16 %v839, %v841
    %v845 = vsel %vm586, %v209, 4286644096
    %v847 = vmax.bf16 %v843, %v845
    %v849 = vsel %vm586, %v273, 4286644096
    %v851 = vmax.bf16 %v847, %v849
    %v853 = vsel %vm586, %v337, 4286644096
    %v855 = vmax.bf16 %v851, %v853
    %v857 = vsel %vm586, %v401, 4286644096
    %v859 = vmax.bf16 %v855, %v857
    %v861 = vsel %vm586, %v465, 4286644096
    %v863 = vmax.bf16 %v859, %v861
    %v865 = vsel %vm586, %v529, 4286644096
    %v867 = vmax.bf16 %v863, %v865
    %v869 = vsel %vm586, %v18, 4286644096
    %v872 = vsel %vm586, %v82, 4286644096
    %v874 = vmax.bf16 %v869, %v872
    %v876 = vsel %vm586, %v146, 4286644096
    %v878 = vmax.bf16 %v874, %v876
    %v880 = vsel %vm586, %v210, 4286644096
    %v882 = vmax.bf16 %v878, %v880
    %v884 = vsel %vm586, %v274, 4286644096
    %v886 = vmax.bf16 %v882, %v884
    %v888 = vsel %vm586, %v338, 4286644096
    %v890 = vmax.bf16 %v886, %v888
    %v892 = vsel %vm586, %v402, 4286644096
    %v894 = vmax.bf16 %v890, %v892
    %v896 = vsel %vm586, %v466, 4286644096
    %v898 = vmax.bf16 %v894, %v896
    %v900 = vsel %vm586, %v530, 4286644096
    %v902 = vmax.bf16 %v898, %v900
    %v904 = vsel %vm586, %v19, 4286644096
    %v907 = vsel %vm586, %v83, 4286644096
    %v909 = vmax.bf16 %v904, %v907
    %v911 = vsel %vm586, %v147, 4286644096
    %v913 = vmax.bf16 %v909, %v911
    %v915 = vsel %vm586, %v211, 4286644096
    %v917 = vmax.bf16 %v913, %v915
    %v919 = vsel %vm586, %v275, 4286644096
    %v921 = vmax.bf16 %v917, %v919
    %v923 = vsel %vm586, %v339, 4286644096
    %v925 = vmax.bf16 %v921, %v923
    %v927 = vsel %vm586, %v403, 4286644096
    %v929 = vmax.bf16 %v925, %v927
    %v931 = vsel %vm586, %v467, 4286644096
    %v933 = vmax.bf16 %v929, %v931
    %v935 = vsel %vm586, %v531, 4286644096
    %v937 = vmax.bf16 %v933, %v935
    %v939 = vsel %vm586, %v20, 4286644096
    %v942 = vsel %vm586, %v84, 4286644096
    %v944 = vmax.bf16 %v939, %v942
    %v946 = vsel %vm586, %v148, 4286644096
    %v948 = vmax.bf16 %v944, %v946
    %v950 = vsel %vm586, %v212, 4286644096
    %v952 = vmax.bf16 %v948, %v950
    %v954 = vsel %vm586, %v276, 4286644096
    %v956 = vmax.bf16 %v952, %v954
    %v958 = vsel %vm586, %v340, 4286644096
    %v960 = vmax.bf16 %v956, %v958
    %v962 = vsel %vm586, %v404, 4286644096
    %v964 = vmax.bf16 %v960, %v962
    %v966 = vsel %vm586, %v468, 4286644096
    %v968 = vmax.bf16 %v964, %v966
    %v970 = vsel %vm586, %v532, 4286644096
    %v972 = vmax.bf16 %v968, %v970
    %v974 = vsel %vm586, %v21, 4286644096
    %v977 = vsel %vm586, %v85, 4286644096
    %v979 = vmax.bf16 %v974, %v977
    %v981 = vsel %vm586, %v149, 4286644096
    %v983 = vmax.bf16 %v979, %v981
    %v985 = vsel %vm586, %v213, 4286644096
    %v987 = vmax.bf16 %v983, %v985
    %v989 = vsel %vm586, %v277, 4286644096
    %v991 = vmax.bf16 %v987, %v989
    %v993 = vsel %vm586, %v341, 4286644096
    %v995 = vmax.bf16 %v991, %v993
    %v997 = vsel %vm586, %v405, 4286644096
    %v999 = vmax.bf16 %v995, %v997
    %v1001 = vsel %vm586, %v469, 4286644096
    %v1003 = vmax.bf16 %v999, %v1001
    %v1005 = vsel %vm586, %v533, 4286644096
    %v1007 = vmax.bf16 %v1003, %v1005
    %v1009 = vsel %vm586, %v22, 4286644096
    %v1012 = vsel %vm586, %v86, 4286644096
    %v1014 = vmax.bf16 %v1009, %v1012
    %v1016 = vsel %vm586, %v150, 4286644096
    %v1018 = vmax.bf16 %v1014, %v1016
    %v1020 = vsel %vm586, %v214, 4286644096
    %v1022 = vmax.bf16 %v1018, %v1020
    %v1024 = vsel %vm586, %v278, 4286644096
    %v1026 = vmax.bf16 %v1022, %v1024
    %v1028 = vsel %vm586, %v342, 4286644096
    %v1030 = vmax.bf16 %v1026, %v1028
    %v1032 = vsel %vm586, %v406, 4286644096
    %v1034 = vmax.bf16 %v1030, %v1032
    %v1036 = vsel %vm586, %v470, 4286644096
    %v1038 = vmax.bf16 %v1034, %v1036
    %v1040 = vsel %vm586, %v534, 4286644096
    %v1042 = vmax.bf16 %v1038, %v1040
    %v1044 = vsel %vm586, %v23, 4286644096
    %v1047 = vsel %vm586, %v87, 4286644096
    %v1049 = vmax.bf16 %v1044, %v1047
    %v1051 = vsel %vm586, %v151, 4286644096
    %v1053 = vmax.bf16 %v1049, %v1051
    %v1055 = vsel %vm586, %v215, 4286644096
    %v1057 = vmax.bf16 %v1053, %v1055
    %v1059 = vsel %vm586, %v279, 4286644096
    %v1061 = vmax.bf16 %v1057, %v1059
    %v1063 = vsel %vm586, %v343, 4286644096
    %v1065 = vmax.bf16 %v1061, %v1063
    %v1067 = vsel %vm586, %v407, 4286644096
    %v1069 = vmax.bf16 %v1065, %v1067
    %v1071 = vsel %vm586, %v471, 4286644096
    %v1073 = vmax.bf16 %v1069, %v1071
    %v1075 = vsel %vm586, %v535, 4286644096
    %v1077 = vmax.bf16 %v1073, %v1075
    %v1079 = vsel %vm586, %v24, 4286644096
    %v1082 = vsel %vm586, %v88, 4286644096
    %v1084 = vmax.bf16 %v1079, %v1082
    %v1086 = vsel %vm586, %v152, 4286644096
    %v1088 = vmax.bf16 %v1084, %v1086
    %v1090 = vsel %vm586, %v216, 4286644096
    %v1092 = vmax.bf16 %v1088, %v1090
    %v1094 = vsel %vm586, %v280, 4286644096
    %v1096 = vmax.bf16 %v1092, %v1094
    %v1098 = vsel %vm586, %v344, 4286644096
    %v1100 = vmax.bf16 %v1096, %v1098
    %v1102 = vsel %vm586, %v408, 4286644096
    %v1104 = vmax.bf16 %v1100, %v1102
    %v1106 = vsel %vm586, %v472, 4286644096
    %v1108 = vmax.bf16 %v1104, %v1106
    %v1110 = vsel %vm586, %v536, 4286644096
    %v1112 = vmax.bf16 %v1108, %v1110
    %v1114 = vsel %vm586, %v25, 4286644096
    %v1117 = vsel %vm586, %v89, 4286644096
    %v1119 = vmax.bf16 %v1114, %v1117
    %v1121 = vsel %vm586, %v153, 4286644096
    %v1123 = vmax.bf16 %v1119, %v1121
    %v1125 = vsel %vm586, %v217, 4286644096
    %v1127 = vmax.bf16 %v1123, %v1125
    %v1129 = vsel %vm586, %v281, 4286644096
    %v1131 = vmax.bf16 %v1127, %v1129
    %v1133 = vsel %vm586, %v345, 4286644096
    %v1135 = vmax.bf16 %v1131, %v1133
    %v1137 = vsel %vm586, %v409, 4286644096
    %v1139 = vmax.bf16 %v1135, %v1137
    %v1141 = vsel %vm586, %v473, 4286644096
    %v1143 = vmax.bf16 %v1139, %v1141
    %v1145 = vsel %vm586, %v537, 4286644096
    %v1147 = vmax.bf16 %v1143, %v1145
    %v1149 = vsel %vm586, %v26, 4286644096
    %v1152 = vsel %vm586, %v90, 4286644096
    %v1154 = vmax.bf16 %v1149, %v1152
    %v1156 = vsel %vm586, %v154, 4286644096
    %v1158 = vmax.bf16 %v1154, %v1156
    %v1160 = vsel %vm586, %v218, 4286644096
    %v1162 = vmax.bf16 %v1158, %v1160
    %v1164 = vsel %vm586, %v282, 4286644096
    %v1166 = vmax.bf16 %v1162, %v1164
    %v1168 = vsel %vm586, %v346, 4286644096
    %v1170 = vmax.bf16 %v1166, %v1168
    %v1172 = vsel %vm586, %v410, 4286644096
    %v1174 = vmax.bf16 %v1170, %v1172
    %v1176 = vsel %vm586, %v474, 4286644096
    %v1178 = vmax.bf16 %v1174, %v1176
    %v1180 = vsel %vm586, %v538, 4286644096
    %v1182 = vmax.bf16 %v1178, %v1180
    %v1184 = vsel %vm586, %v27, 4286644096
    %v1187 = vsel %vm586, %v91, 4286644096
    %v1189 = vmax.bf16 %v1184, %v1187
    %v1191 = vsel %vm586, %v155, 4286644096
    %v1193 = vmax.bf16 %v1189, %v1191
    %v1195 = vsel %vm586, %v219, 4286644096
    %v1197 = vmax.bf16 %v1193, %v1195
    %v1199 = vsel %vm586, %v283, 4286644096
    %v1201 = vmax.bf16 %v1197, %v1199
    %v1203 = vsel %vm586, %v347, 4286644096
    %v1205 = vmax.bf16 %v1201, %v1203
    %v1207 = vsel %vm586, %v411, 4286644096
    %v1209 = vmax.bf16 %v1205, %v1207
    %v1211 = vsel %vm586, %v475, 4286644096
    %v1213 = vmax.bf16 %v1209, %v1211
    %v1215 = vsel %vm586, %v539, 4286644096
    %v1217 = vmax.bf16 %v1213, %v1215
    %v1219 = vsel %vm586, %v28, 4286644096
    %v1222 = vsel %vm586, %v92, 4286644096
    %v1224 = vmax.bf16 %v1219, %v1222
    %v1226 = vsel %vm586, %v156, 4286644096
    %v1228 = vmax.bf16 %v1224, %v1226
    %v1230 = vsel %vm586, %v220, 4286644096
    %v1232 = vmax.bf16 %v1228, %v1230
    %v1234 = vsel %vm586, %v284, 4286644096
    %v1236 = vmax.bf16 %v1232, %v1234
    %v1238 = vsel %vm586, %v348, 4286644096
    %v1240 = vmax.bf16 %v1236, %v1238
    %v1242 = vsel %vm586, %v412, 4286644096
    %v1244 = vmax.bf16 %v1240, %v1242
    %v1246 = vsel %vm586, %v476, 4286644096
    %v1248 = vmax.bf16 %v1244, %v1246
    %v1250 = vsel %vm586, %v540, 4286644096
    %v1252 = vmax.bf16 %v1248, %v1250
    %v1254 = vsel %vm586, %v29, 4286644096
    %v1257 = vsel %vm586, %v93, 4286644096
    %v1259 = vmax.bf16 %v1254, %v1257
    %v1261 = vsel %vm586, %v157, 4286644096
    %v1263 = vmax.bf16 %v1259, %v1261
    %v1265 = vsel %vm586, %v221, 4286644096
    %v1267 = vmax.bf16 %v1263, %v1265
    %v1269 = vsel %vm586, %v285, 4286644096
    %v1271 = vmax.bf16 %v1267, %v1269
    %v1273 = vsel %vm586, %v349, 4286644096
    %v1275 = vmax.bf16 %v1271, %v1273
    %v1277 = vsel %vm586, %v413, 4286644096
    %v1279 = vmax.bf16 %v1275, %v1277
    %v1281 = vsel %vm586, %v477, 4286644096
    %v1283 = vmax.bf16 %v1279, %v1281
    %v1285 = vsel %vm586, %v541, 4286644096
    %v1287 = vmax.bf16 %v1283, %v1285
    %v1289 = vsel %vm586, %v30, 4286644096
    %v1292 = vsel %vm586, %v94, 4286644096
    %v1294 = vmax.bf16 %v1289, %v1292
    %v1296 = vsel %vm586, %v158, 4286644096
    %v1298 = vmax.bf16 %v1294, %v1296
    %v1300 = vsel %vm586, %v222, 4286644096
    %v1302 = vmax.bf16 %v1298, %v1300
    %v1304 = vsel %vm586, %v286, 4286644096
    %v1306 = vmax.bf16 %v1302, %v1304
    %v1308 = vsel %vm586, %v350, 4286644096
    %v1310 = vmax.bf16 %v1306, %v1308
    %v1312 = vsel %vm586, %v414, 4286644096
    %v1314 = vmax.bf16 %v1310, %v1312
    %v1316 = vsel %vm586, %v478, 4286644096
    %v1318 = vmax.bf16 %v1314, %v1316
    %v1320 = vsel %vm586, %v542, 4286644096
    %v1322 = vmax.bf16 %v1318, %v1320
    %v1324 = vsel %vm586, %v31, 4286644096
    %v1327 = vsel %vm586, %v95, 4286644096
    %v1329 = vmax.bf16 %v1324, %v1327
    %v1331 = vsel %vm586, %v159, 4286644096
    %v1333 = vmax.bf16 %v1329, %v1331
    %v1335 = vsel %vm586, %v223, 4286644096
    %v1337 = vmax.bf16 %v1333, %v1335
    %v1339 = vsel %vm586, %v287, 4286644096
    %v1341 = vmax.bf16 %v1337, %v1339
    %v1343 = vsel %vm586, %v351, 4286644096
    %v1345 = vmax.bf16 %v1341, %v1343
    %v1347 = vsel %vm586, %v415, 4286644096
    %v1349 = vmax.bf16 %v1345, %v1347
    %v1351 = vsel %vm586, %v479, 4286644096
    %v1353 = vmax.bf16 %v1349, %v1351
    %v1355 = vsel %vm586, %v543, 4286644096
    %v1357 = vmax.bf16 %v1353, %v1355
    %v1359 = vsel %vm586, %v32, 4286644096
    %v1362 = vsel %vm586, %v96, 4286644096
    %v1364 = vmax.bf16 %v1359, %v1362
    %v1366 = vsel %vm586, %v160, 4286644096
    %v1368 = vmax.bf16 %v1364, %v1366
    %v1370 = vsel %vm586, %v224, 4286644096
    %v1372 = vmax.bf16 %v1368, %v1370
    %v1374 = vsel %vm586, %v288, 4286644096
    %v1376 = vmax.bf16 %v1372, %v1374
    %v1378 = vsel %vm586, %v352, 4286644096
    %v1380 = vmax.bf16 %v1376, %v1378
    %v1382 = vsel %vm586, %v416, 4286644096
    %v1384 = vmax.bf16 %v1380, %v1382
    %v1386 = vsel %vm586, %v480, 4286644096
    %v1388 = vmax.bf16 %v1384, %v1386
    %v1390 = vsel %vm586, %v544, 4286644096
    %v1392 = vmax.bf16 %v1388, %v1390
    %v1394 = vsel %vm586, %v33, 4286644096
    %v1397 = vsel %vm586, %v97, 4286644096
    %v1399 = vmax.bf16 %v1394, %v1397
    %v1401 = vsel %vm586, %v161, 4286644096
    %v1403 = vmax.bf16 %v1399, %v1401
    %v1405 = vsel %vm586, %v225, 4286644096
    %v1407 = vmax.bf16 %v1403, %v1405
    %v1409 = vsel %vm586, %v289, 4286644096
    %v1411 = vmax.bf16 %v1407, %v1409
    %v1413 = vsel %vm586, %v353, 4286644096
    %v1415 = vmax.bf16 %v1411, %v1413
    %v1417 = vsel %vm586, %v417, 4286644096
    %v1419 = vmax.bf16 %v1415, %v1417
    %v1421 = vsel %vm586, %v481, 4286644096
    %v1423 = vmax.bf16 %v1419, %v1421
    %v1425 = vsel %vm586, %v545, 4286644096
    %v1427 = vmax.bf16 %v1423, %v1425
    %v1429 = vsel %vm586, %v34, 4286644096
    %v1432 = vsel %vm586, %v98, 4286644096
    %v1434 = vmax.bf16 %v1429, %v1432
    %v1436 = vsel %vm586, %v162, 4286644096
    %v1438 = vmax.bf16 %v1434, %v1436
    %v1440 = vsel %vm586, %v226, 4286644096
    %v1442 = vmax.bf16 %v1438, %v1440
    %v1444 = vsel %vm586, %v290, 4286644096
    %v1446 = vmax.bf16 %v1442, %v1444
    %v1448 = vsel %vm586, %v354, 4286644096
    %v1450 = vmax.bf16 %v1446, %v1448
    %v1452 = vsel %vm586, %v418, 4286644096
    %v1454 = vmax.bf16 %v1450, %v1452
    %v1456 = vsel %vm586, %v482, 4286644096
    %v1458 = vmax.bf16 %v1454, %v1456
    %v1460 = vsel %vm586, %v546, 4286644096
    %v1462 = vmax.bf16 %v1458, %v1460
    %v1464 = vsel %vm586, %v35, 4286644096
    %v1467 = vsel %vm586, %v99, 4286644096
    %v1469 = vmax.bf16 %v1464, %v1467
    %v1471 = vsel %vm586, %v163, 4286644096
    %v1473 = vmax.bf16 %v1469, %v1471
    %v1475 = vsel %vm586, %v227, 4286644096
    %v1477 = vmax.bf16 %v1473, %v1475
    %v1479 = vsel %vm586, %v291, 4286644096
    %v1481 = vmax.bf16 %v1477, %v1479
    %v1483 = vsel %vm586, %v355, 4286644096
    %v1485 = vmax.bf16 %v1481, %v1483
    %v1487 = vsel %vm586, %v419, 4286644096
    %v1489 = vmax.bf16 %v1485, %v1487
    %v1491 = vsel %vm586, %v483, 4286644096
    %v1493 = vmax.bf16 %v1489, %v1491
    %v1495 = vsel %vm586, %v547, 4286644096
    %v1497 = vmax.bf16 %v1493, %v1495
    %v1499 = vsel %vm586, %v36, 4286644096
    %v1502 = vsel %vm586, %v100, 4286644096
    %v1504 = vmax.bf16 %v1499, %v1502
    %v1506 = vsel %vm586, %v164, 4286644096
    %v1508 = vmax.bf16 %v1504, %v1506
    %v1510 = vsel %vm586, %v228, 4286644096
    %v1512 = vmax.bf16 %v1508, %v1510
    %v1514 = vsel %vm586, %v292, 4286644096
    %v1516 = vmax.bf16 %v1512, %v1514
    %v1518 = vsel %vm586, %v356, 4286644096
    %v1520 = vmax.bf16 %v1516, %v1518
    %v1522 = vsel %vm586, %v420, 4286644096
    %v1524 = vmax.bf16 %v1520, %v1522
    %v1526 = vsel %vm586, %v484, 4286644096
    %v1528 = vmax.bf16 %v1524, %v1526
    %v1530 = vsel %vm586, %v548, 4286644096
    %v1532 = vmax.bf16 %v1528, %v1530
    %v1534 = vsel %vm586, %v37, 4286644096
    %v1537 = vsel %vm586, %v101, 4286644096
    %v1539 = vmax.bf16 %v1534, %v1537
    %v1541 = vsel %vm586, %v165, 4286644096
    %v1543 = vmax.bf16 %v1539, %v1541
    %v1545 = vsel %vm586, %v229, 4286644096
    %v1547 = vmax.bf16 %v1543, %v1545
    %v1549 = vsel %vm586, %v293, 4286644096
    %v1551 = vmax.bf16 %v1547, %v1549
    %v1553 = vsel %vm586, %v357, 4286644096
    %v1555 = vmax.bf16 %v1551, %v1553
    %v1557 = vsel %vm586, %v421, 4286644096
    %v1559 = vmax.bf16 %v1555, %v1557
    %v1561 = vsel %vm586, %v485, 4286644096
    %v1563 = vmax.bf16 %v1559, %v1561
    %v1565 = vsel %vm586, %v549, 4286644096
    %v1567 = vmax.bf16 %v1563, %v1565
    %v1569 = vsel %vm586, %v38, 4286644096
    %v1572 = vsel %vm586, %v102, 4286644096
    %v1574 = vmax.bf16 %v1569, %v1572
    %v1576 = vsel %vm586, %v166, 4286644096
    %v1578 = vmax.bf16 %v1574, %v1576
    %v1580 = vsel %vm586, %v230, 4286644096
    %v1582 = vmax.bf16 %v1578, %v1580
    %v1584 = vsel %vm586, %v294, 4286644096
    %v1586 = vmax.bf16 %v1582, %v1584
    %v1588 = vsel %vm586, %v358, 4286644096
    %v1590 = vmax.bf16 %v1586, %v1588
    %v1592 = vsel %vm586, %v422, 4286644096
    %v1594 = vmax.bf16 %v1590, %v1592
    %v1596 = vsel %vm586, %v486, 4286644096
    %v1598 = vmax.bf16 %v1594, %v1596
    %v1600 = vsel %vm586, %v550, 4286644096
    %v1602 = vmax.bf16 %v1598, %v1600
    %v1604 = vsel %vm586, %v39, 4286644096
    %v1607 = vsel %vm586, %v103, 4286644096
    %v1609 = vmax.bf16 %v1604, %v1607
    %v1611 = vsel %vm586, %v167, 4286644096
    %v1613 = vmax.bf16 %v1609, %v1611
    %v1615 = vsel %vm586, %v231, 4286644096
    %v1617 = vmax.bf16 %v1613, %v1615
    %v1619 = vsel %vm586, %v295, 4286644096
    %v1621 = vmax.bf16 %v1617, %v1619
    %v1623 = vsel %vm586, %v359, 4286644096
    %v1625 = vmax.bf16 %v1621, %v1623
    %v1627 = vsel %vm586, %v423, 4286644096
    %v1629 = vmax.bf16 %v1625, %v1627
    %v1631 = vsel %vm586, %v487, 4286644096
    %v1633 = vmax.bf16 %v1629, %v1631
    %v1635 = vsel %vm586, %v551, 4286644096
    %v1637 = vmax.bf16 %v1633, %v1635
    %v1639 = vsel %vm586, %v40, 4286644096
    %v1642 = vsel %vm586, %v104, 4286644096
    %v1644 = vmax.bf16 %v1639, %v1642
    %v1646 = vsel %vm586, %v168, 4286644096
    %v1648 = vmax.bf16 %v1644, %v1646
    %v1650 = vsel %vm586, %v232, 4286644096
    %v1652 = vmax.bf16 %v1648, %v1650
    %v1654 = vsel %vm586, %v296, 4286644096
    %v1656 = vmax.bf16 %v1652, %v1654
    %v1658 = vsel %vm586, %v360, 4286644096
    %v1660 = vmax.bf16 %v1656, %v1658
    %v1662 = vsel %vm586, %v424, 4286644096
    %v1664 = vmax.bf16 %v1660, %v1662
    %v1666 = vsel %vm586, %v488, 4286644096
    %v1668 = vmax.bf16 %v1664, %v1666
    %v1670 = vsel %vm586, %v552, 4286644096
    %v1672 = vmax.bf16 %v1668, %v1670
    %v1674 = vsel %vm586, %v41, 4286644096
    %v1677 = vsel %vm586, %v105, 4286644096
    %v1679 = vmax.bf16 %v1674, %v1677
    %v1681 = vsel %vm586, %v169, 4286644096
    %v1683 = vmax.bf16 %v1679, %v1681
    %v1685 = vsel %vm586, %v233, 4286644096
    %v1687 = vmax.bf16 %v1683, %v1685
    %v1689 = vsel %vm586, %v297, 4286644096
    %v1691 = vmax.bf16 %v1687, %v1689
    %v1693 = vsel %vm586, %v361, 4286644096
    %v1695 = vmax.bf16 %v1691, %v1693
    %v1697 = vsel %vm586, %v425, 4286644096
    %v1699 = vmax.bf16 %v1695, %v1697
    %v1701 = vsel %vm586, %v489, 4286644096
    %v1703 = vmax.bf16 %v1699, %v1701
    %v1705 = vsel %vm586, %v553, 4286644096
    %v1707 = vmax.bf16 %v1703, %v1705
    %v1709 = vsel %vm586, %v42, 4286644096
    %v1712 = vsel %vm586, %v106, 4286644096
    %v1714 = vmax.bf16 %v1709, %v1712
    %v1716 = vsel %vm586, %v170, 4286644096
    %v1718 = vmax.bf16 %v1714, %v1716
    %v1720 = vsel %vm586, %v234, 4286644096
    %v1722 = vmax.bf16 %v1718, %v1720
    %v1724 = vsel %vm586, %v298, 4286644096
    %v1726 = vmax.bf16 %v1722, %v1724
    %v1728 = vsel %vm586, %v362, 4286644096
    %v1730 = vmax.bf16 %v1726, %v1728
    %v1732 = vsel %vm586, %v426, 4286644096
    %v1734 = vmax.bf16 %v1730, %v1732
    %v1736 = vsel %vm586, %v490, 4286644096
    %v1738 = vmax.bf16 %v1734, %v1736
    %v1740 = vsel %vm586, %v554, 4286644096
    %v1742 = vmax.bf16 %v1738, %v1740
    %v1744 = vsel %vm586, %v43, 4286644096
    %v1747 = vsel %vm586, %v107, 4286644096
    %v1749 = vmax.bf16 %v1744, %v1747
    %v1751 = vsel %vm586, %v171, 4286644096
    %v1753 = vmax.bf16 %v1749, %v1751
    %v1755 = vsel %vm586, %v235, 4286644096
    %v1757 = vmax.bf16 %v1753, %v1755
    %v1759 = vsel %vm586, %v299, 4286644096
    %v1761 = vmax.bf16 %v1757, %v1759
    %v1763 = vsel %vm586, %v363, 4286644096
    %v1765 = vmax.bf16 %v1761, %v1763
    %v1767 = vsel %vm586, %v427, 4286644096
    %v1769 = vmax.bf16 %v1765, %v1767
    %v1771 = vsel %vm586, %v491, 4286644096
    %v1773 = vmax.bf16 %v1769, %v1771
    %v1775 = vsel %vm586, %v555, 4286644096
    %v1777 = vmax.bf16 %v1773, %v1775
    %v1779 = vsel %vm586, %v44, 4286644096
    %v1782 = vsel %vm586, %v108, 4286644096
    %v1784 = vmax.bf16 %v1779, %v1782
    %v1786 = vsel %vm586, %v172, 4286644096
    %v1788 = vmax.bf16 %v1784, %v1786
    %v1790 = vsel %vm586, %v236, 4286644096
    %v1792 = vmax.bf16 %v1788, %v1790
    %v1794 = vsel %vm586, %v300, 4286644096
    %v1796 = vmax.bf16 %v1792, %v1794
    %v1798 = vsel %vm586, %v364, 4286644096
    %v1800 = vmax.bf16 %v1796, %v1798
    %v1802 = vsel %vm586, %v428, 4286644096
    %v1804 = vmax.bf16 %v1800, %v1802
    %v1806 = vsel %vm586, %v492, 4286644096
    %v1808 = vmax.bf16 %v1804, %v1806
    %v1810 = vsel %vm586, %v556, 4286644096
    %v1812 = vmax.bf16 %v1808, %v1810
    %v1814 = vsel %vm586, %v45, 4286644096
    %v1817 = vsel %vm586, %v109, 4286644096
    %v1819 = vmax.bf16 %v1814, %v1817
    %v1821 = vsel %vm586, %v173, 4286644096
    %v1823 = vmax.bf16 %v1819, %v1821
    %v1825 = vsel %vm586, %v237, 4286644096
    %v1827 = vmax.bf16 %v1823, %v1825
    %v1829 = vsel %vm586, %v301, 4286644096
    %v1831 = vmax.bf16 %v1827, %v1829
    %v1833 = vsel %vm586, %v365, 4286644096
    %v1835 = vmax.bf16 %v1831, %v1833
    %v1837 = vsel %vm586, %v429, 4286644096
    %v1839 = vmax.bf16 %v1835, %v1837
    %v1841 = vsel %vm586, %v493, 4286644096
    %v1843 = vmax.bf16 %v1839, %v1841
    %v1845 = vsel %vm586, %v557, 4286644096
    %v1847 = vmax.bf16 %v1843, %v1845
    %v1849 = vsel %vm586, %v46, 4286644096
    %v1852 = vsel %vm586, %v110, 4286644096
    %v1854 = vmax.bf16 %v1849, %v1852
    %v1856 = vsel %vm586, %v174, 4286644096
    %v1858 = vmax.bf16 %v1854, %v1856
    %v1860 = vsel %vm586, %v238, 4286644096
    %v1862 = vmax.bf16 %v1858, %v1860
    %v1864 = vsel %vm586, %v302, 4286644096
    %v1866 = vmax.bf16 %v1862, %v1864
    %v1868 = vsel %vm586, %v366, 4286644096
    %v1870 = vmax.bf16 %v1866, %v1868
    %v1872 = vsel %vm586, %v430, 4286644096
    %v1874 = vmax.bf16 %v1870, %v1872
    %v1876 = vsel %vm586, %v494, 4286644096
    %v1878 = vmax.bf16 %v1874, %v1876
    %v1880 = vsel %vm586, %v558, 4286644096
    %v1882 = vmax.bf16 %v1878, %v1880
    %v1884 = vsel %vm586, %v47, 4286644096
    %v1887 = vsel %vm586, %v111, 4286644096
    %v1889 = vmax.bf16 %v1884, %v1887
    %v1891 = vsel %vm586, %v175, 4286644096
    %v1893 = vmax.bf16 %v1889, %v1891
    %v1895 = vsel %vm586, %v239, 4286644096
    %v1897 = vmax.bf16 %v1893, %v1895
    %v1899 = vsel %vm586, %v303, 4286644096
    %v1901 = vmax.bf16 %v1897, %v1899
    %v1903 = vsel %vm586, %v367, 4286644096
    %v1905 = vmax.bf16 %v1901, %v1903
    %v1907 = vsel %vm586, %v431, 4286644096
    %v1909 = vmax.bf16 %v1905, %v1907
    %v1911 = vsel %vm586, %v495, 4286644096
    %v1913 = vmax.bf16 %v1909, %v1911
    %v1915 = vsel %vm586, %v559, 4286644096
    %v1917 = vmax.bf16 %v1913, %v1915
    %v1919 = vsel %vm586, %v48, 4286644096
    %v1922 = vsel %vm586, %v112, 4286644096
    %v1924 = vmax.bf16 %v1919, %v1922
    %v1926 = vsel %vm586, %v176, 4286644096
    %v1928 = vmax.bf16 %v1924, %v1926
    %v1930 = vsel %vm586, %v240, 4286644096
    %v1932 = vmax.bf16 %v1928, %v1930
    %v1934 = vsel %vm586, %v304, 4286644096
    %v1936 = vmax.bf16 %v1932, %v1934
    %v1938 = vsel %vm586, %v368, 4286644096
    %v1940 = vmax.bf16 %v1936, %v1938
    %v1942 = vsel %vm586, %v432, 4286644096
    %v1944 = vmax.bf16 %v1940, %v1942
    %v1946 = vsel %vm586, %v496, 4286644096
    %v1948 = vmax.bf16 %v1944, %v1946
    %v1950 = vsel %vm586, %v560, 4286644096
    %v1952 = vmax.bf16 %v1948, %v1950
    %v1954 = vsel %vm586, %v49, 4286644096
    %v1957 = vsel %vm586, %v113, 4286644096
    %v1959 = vmax.bf16 %v1954, %v1957
    %v1961 = vsel %vm586, %v177, 4286644096
    %v1963 = vmax.bf16 %v1959, %v1961
    %v1965 = vsel %vm586, %v241, 4286644096
    %v1967 = vmax.bf16 %v1963, %v1965
    %v1969 = vsel %vm586, %v305, 4286644096
    %v1971 = vmax.bf16 %v1967, %v1969
    %v1973 = vsel %vm586, %v369, 4286644096
    %v1975 = vmax.bf16 %v1971, %v1973
    %v1977 = vsel %vm586, %v433, 4286644096
    %v1979 = vmax.bf16 %v1975, %v1977
    %v1981 = vsel %vm586, %v497, 4286644096
    %v1983 = vmax.bf16 %v1979, %v1981
    %v1985 = vsel %vm586, %v561, 4286644096
    %v1987 = vmax.bf16 %v1983, %v1985
    %v1989 = vsel %vm586, %v50, 4286644096
    %v1992 = vsel %vm586, %v114, 4286644096
    %v1994 = vmax.bf16 %v1989, %v1992
    %v1996 = vsel %vm586, %v178, 4286644096
    %v1998 = vmax.bf16 %v1994, %v1996
    %v2000 = vsel %vm586, %v242, 4286644096
    %v2002 = vmax.bf16 %v1998, %v2000
    %v2004 = vsel %vm586, %v306, 4286644096
    %v2006 = vmax.bf16 %v2002, %v2004
    %v2008 = vsel %vm586, %v370, 4286644096
    %v2010 = vmax.bf16 %v2006, %v2008
    %v2012 = vsel %vm586, %v434, 4286644096
    %v2014 = vmax.bf16 %v2010, %v2012
    %v2016 = vsel %vm586, %v498, 4286644096
    %v2018 = vmax.bf16 %v2014, %v2016
    %v2020 = vsel %vm586, %v562, 4286644096
    %v2022 = vmax.bf16 %v2018, %v2020
    %v2024 = vsel %vm586, %v51, 4286644096
    %v2027 = vsel %vm586, %v115, 4286644096
    %v2029 = vmax.bf16 %v2024, %v2027
    %v2031 = vsel %vm586, %v179, 4286644096
    %v2033 = vmax.bf16 %v2029, %v2031
    %v2035 = vsel %vm586, %v243, 4286644096
    %v2037 = vmax.bf16 %v2033, %v2035
    %v2039 = vsel %vm586, %v307, 4286644096
    %v2041 = vmax.bf16 %v2037, %v2039
    %v2043 = vsel %vm586, %v371, 4286644096
    %v2045 = vmax.bf16 %v2041, %v2043
    %v2047 = vsel %vm586, %v435, 4286644096
    %v2049 = vmax.bf16 %v2045, %v2047
    %v2051 = vsel %vm586, %v499, 4286644096
    %v2053 = vmax.bf16 %v2049, %v2051
    %v2055 = vsel %vm586, %v563, 4286644096
    %v2057 = vmax.bf16 %v2053, %v2055
    %v2059 = vsel %vm586, %v52, 4286644096
    %v2062 = vsel %vm586, %v116, 4286644096
    %v2064 = vmax.bf16 %v2059, %v2062
    %v2066 = vsel %vm586, %v180, 4286644096
    %v2068 = vmax.bf16 %v2064, %v2066
    %v2070 = vsel %vm586, %v244, 4286644096
    %v2072 = vmax.bf16 %v2068, %v2070
    %v2074 = vsel %vm586, %v308, 4286644096
    %v2076 = vmax.bf16 %v2072, %v2074
    %v2078 = vsel %vm586, %v372, 4286644096
    %v2080 = vmax.bf16 %v2076, %v2078
    %v2082 = vsel %vm586, %v436, 4286644096
    %v2084 = vmax.bf16 %v2080, %v2082
    %v2086 = vsel %vm586, %v500, 4286644096
    %v2088 = vmax.bf16 %v2084, %v2086
    %v2090 = vsel %vm586, %v564, 4286644096
    %v2092 = vmax.bf16 %v2088, %v2090
    %v2094 = vsel %vm586, %v53, 4286644096
    %v2097 = vsel %vm586, %v117, 4286644096
    %v2099 = vmax.bf16 %v2094, %v2097
    %v2101 = vsel %vm586, %v181, 4286644096
    %v2103 = vmax.bf16 %v2099, %v2101
    %v2105 = vsel %vm586, %v245, 4286644096
    %v2107 = vmax.bf16 %v2103, %v2105
    %v2109 = vsel %vm586, %v309, 4286644096
    %v2111 = vmax.bf16 %v2107, %v2109
    %v2113 = vsel %vm586, %v373, 4286644096
    %v2115 = vmax.bf16 %v2111, %v2113
    %v2117 = vsel %vm586, %v437, 4286644096
    %v2119 = vmax.bf16 %v2115, %v2117
    %v2121 = vsel %vm586, %v501, 4286644096
    %v2123 = vmax.bf16 %v2119, %v2121
    %v2125 = vsel %vm586, %v565, 4286644096
    %v2127 = vmax.bf16 %v2123, %v2125
    %v2129 = vsel %vm586, %v54, 4286644096
    %v2132 = vsel %vm586, %v118, 4286644096
    %v2134 = vmax.bf16 %v2129, %v2132
    %v2136 = vsel %vm586, %v182, 4286644096
    %v2138 = vmax.bf16 %v2134, %v2136
    %v2140 = vsel %vm586, %v246, 4286644096
    %v2142 = vmax.bf16 %v2138, %v2140
    %v2144 = vsel %vm586, %v310, 4286644096
    %v2146 = vmax.bf16 %v2142, %v2144
    %v2148 = vsel %vm586, %v374, 4286644096
    %v2150 = vmax.bf16 %v2146, %v2148
    %v2152 = vsel %vm586, %v438, 4286644096
    %v2154 = vmax.bf16 %v2150, %v2152
    %v2156 = vsel %vm586, %v502, 4286644096
    %v2158 = vmax.bf16 %v2154, %v2156
    %v2160 = vsel %vm586, %v566, 4286644096
    %v2162 = vmax.bf16 %v2158, %v2160
    %v2164 = vsel %vm586, %v55, 4286644096
    %v2167 = vsel %vm586, %v119, 4286644096
    %v2169 = vmax.bf16 %v2164, %v2167
    %v2171 = vsel %vm586, %v183, 4286644096
    %v2173 = vmax.bf16 %v2169, %v2171
    %v2175 = vsel %vm586, %v247, 4286644096
    %v2177 = vmax.bf16 %v2173, %v2175
    %v2179 = vsel %vm586, %v311, 4286644096
    %v2181 = vmax.bf16 %v2177, %v2179
    %v2183 = vsel %vm586, %v375, 4286644096
    %v2185 = vmax.bf16 %v2181, %v2183
    %v2187 = vsel %vm586, %v439, 4286644096
    %v2189 = vmax.bf16 %v2185, %v2187
    %v2191 = vsel %vm586, %v503, 4286644096
    %v2193 = vmax.bf16 %v2189, %v2191
    %v2195 = vsel %vm586, %v567, 4286644096
    %v2197 = vmax.bf16 %v2193, %v2195
    %v2199 = vsel %vm586, %v56, 4286644096
    %v2202 = vsel %vm586, %v120, 4286644096
    %v2204 = vmax.bf16 %v2199, %v2202
    %v2206 = vsel %vm586, %v184, 4286644096
    %v2208 = vmax.bf16 %v2204, %v2206
    %v2210 = vsel %vm586, %v248, 4286644096
    %v2212 = vmax.bf16 %v2208, %v2210
    %v2214 = vsel %vm586, %v312, 4286644096
    %v2216 = vmax.bf16 %v2212, %v2214
    %v2218 = vsel %vm586, %v376, 4286644096
    %v2220 = vmax.bf16 %v2216, %v2218
    %v2222 = vsel %vm586, %v440, 4286644096
    %v2224 = vmax.bf16 %v2220, %v2222
    %v2226 = vsel %vm586, %v504, 4286644096
    %v2228 = vmax.bf16 %v2224, %v2226
    %v2230 = vsel %vm586, %v568, 4286644096
    %v2232 = vmax.bf16 %v2228, %v2230
    %v2234 = vsel %vm586, %v57, 4286644096
    %v2237 = vsel %vm586, %v121, 4286644096
    %v2239 = vmax.bf16 %v2234, %v2237
    %v2241 = vsel %vm586, %v185, 4286644096
    %v2243 = vmax.bf16 %v2239, %v2241
    %v2245 = vsel %vm586, %v249, 4286644096
    %v2247 = vmax.bf16 %v2243, %v2245
    %v2249 = vsel %vm586, %v313, 4286644096
    %v2251 = vmax.bf16 %v2247, %v2249
    %v2253 = vsel %vm586, %v377, 4286644096
    %v2255 = vmax.bf16 %v2251, %v2253
    %v2257 = vsel %vm586, %v441, 4286644096
    %v2259 = vmax.bf16 %v2255, %v2257
    %v2261 = vsel %vm586, %v505, 4286644096
    %v2263 = vmax.bf16 %v2259, %v2261
    %v2265 = vsel %vm586, %v569, 4286644096
    %v2267 = vmax.bf16 %v2263, %v2265
    %v2269 = vsel %vm586, %v58, 4286644096
    %v2272 = vsel %vm586, %v122, 4286644096
    %v2274 = vmax.bf16 %v2269, %v2272
    %v2276 = vsel %vm586, %v186, 4286644096
    %v2278 = vmax.bf16 %v2274, %v2276
    %v2280 = vsel %vm586, %v250, 4286644096
    %v2282 = vmax.bf16 %v2278, %v2280
    %v2284 = vsel %vm586, %v314, 4286644096
    %v2286 = vmax.bf16 %v2282, %v2284
    %v2288 = vsel %vm586, %v378, 4286644096
    %v2290 = vmax.bf16 %v2286, %v2288
    %v2292 = vsel %vm586, %v442, 4286644096
    %v2294 = vmax.bf16 %v2290, %v2292
    %v2296 = vsel %vm586, %v506, 4286644096
    %v2298 = vmax.bf16 %v2294, %v2296
    %v2300 = vsel %vm586, %v570, 4286644096
    %v2302 = vmax.bf16 %v2298, %v2300
    %v2304 = vsel %vm586, %v59, 4286644096
    %v2307 = vsel %vm586, %v123, 4286644096
    %v2309 = vmax.bf16 %v2304, %v2307
    %v2311 = vsel %vm586, %v187, 4286644096
    %v2313 = vmax.bf16 %v2309, %v2311
    %v2315 = vsel %vm586, %v251, 4286644096
    %v2317 = vmax.bf16 %v2313, %v2315
    %v2319 = vsel %vm586, %v315, 4286644096
    %v2321 = vmax.bf16 %v2317, %v2319
    %v2323 = vsel %vm586, %v379, 4286644096
    %v2325 = vmax.bf16 %v2321, %v2323
    %v2327 = vsel %vm586, %v443, 4286644096
    %v2329 = vmax.bf16 %v2325, %v2327
    %v2331 = vsel %vm586, %v507, 4286644096
    %v2333 = vmax.bf16 %v2329, %v2331
    %v2335 = vsel %vm586, %v571, 4286644096
    %v2337 = vmax.bf16 %v2333, %v2335
    %v2339 = vsel %vm586, %v60, 4286644096
    %v2342 = vsel %vm586, %v124, 4286644096
    %v2344 = vmax.bf16 %v2339, %v2342
    %v2346 = vsel %vm586, %v188, 4286644096
    %v2348 = vmax.bf16 %v2344, %v2346
    %v2350 = vsel %vm586, %v252, 4286644096
    %v2352 = vmax.bf16 %v2348, %v2350
    %v2354 = vsel %vm586, %v316, 4286644096
    %v2356 = vmax.bf16 %v2352, %v2354
    %v2358 = vsel %vm586, %v380, 4286644096
    %v2360 = vmax.bf16 %v2356, %v2358
    %v2362 = vsel %vm586, %v444, 4286644096
    %v2364 = vmax.bf16 %v2360, %v2362
    %v2366 = vsel %vm586, %v508, 4286644096
    %v2368 = vmax.bf16 %v2364, %v2366
    %v2370 = vsel %vm586, %v572, 4286644096
    %v2372 = vmax.bf16 %v2368, %v2370
    %v2374 = vsel %vm586, %v61, 4286644096
    %v2377 = vsel %vm586, %v125, 4286644096
    %v2379 = vmax.bf16 %v2374, %v2377
    %v2381 = vsel %vm586, %v189, 4286644096
    %v2383 = vmax.bf16 %v2379, %v2381
    %v2385 = vsel %vm586, %v253, 4286644096
    %v2387 = vmax.bf16 %v2383, %v2385
    %v2389 = vsel %vm586, %v317, 4286644096
    %v2391 = vmax.bf16 %v2387, %v2389
    %v2393 = vsel %vm586, %v381, 4286644096
    %v2395 = vmax.bf16 %v2391, %v2393
    %v2397 = vsel %vm586, %v445, 4286644096
    %v2399 = vmax.bf16 %v2395, %v2397
    %v2401 = vsel %vm586, %v509, 4286644096
    %v2403 = vmax.bf16 %v2399, %v2401
    %v2405 = vsel %vm586, %v573, 4286644096
    %v2407 = vmax.bf16 %v2403, %v2405
    %v2409 = vsel %vm586, %v62, 4286644096
    %v2412 = vsel %vm586, %v126, 4286644096
    %v2414 = vmax.bf16 %v2409, %v2412
    %v2416 = vsel %vm586, %v190, 4286644096
    %v2418 = vmax.bf16 %v2414, %v2416
    %v2420 = vsel %vm586, %v254, 4286644096
    %v2422 = vmax.bf16 %v2418, %v2420
    %v2424 = vsel %vm586, %v318, 4286644096
    %v2426 = vmax.bf16 %v2422, %v2424
    %v2428 = vsel %vm586, %v382, 4286644096
    %v2430 = vmax.bf16 %v2426, %v2428
    %v2432 = vsel %vm586, %v446, 4286644096
    %v2434 = vmax.bf16 %v2430, %v2432
    %v2436 = vsel %vm586, %v510, 4286644096
    %v2438 = vmax.bf16 %v2434, %v2436
    %v2440 = vsel %vm586, %v574, 4286644096
    %v2442 = vmax.bf16 %v2438, %v2440
    %v2444 = vsel %vm586, %v63, 4286644096
    %v2447 = vsel %vm586, %v127, 4286644096
    %v2449 = vmax.bf16 %v2444, %v2447
    %v2451 = vsel %vm586, %v191, 4286644096
    %v2453 = vmax.bf16 %v2449, %v2451
    %v2455 = vsel %vm586, %v255, 4286644096
    %v2457 = vmax.bf16 %v2453, %v2455
    %v2459 = vsel %vm586, %v319, 4286644096
    %v2461 = vmax.bf16 %v2457, %v2459
    %v2463 = vsel %vm586, %v383, 4286644096
    %v2465 = vmax.bf16 %v2461, %v2463
    %v2467 = vsel %vm586, %v447, 4286644096
    %v2469 = vmax.bf16 %v2465, %v2467
    %v2471 = vsel %vm586, %v511, 4286644096
    %v2473 = vmax.bf16 %v2469, %v2471
    %v2475 = vsel %vm586, %v575, 4286644096
    %v2477 = vmax.bf16 %v2473, %v2475
    %v2479 = vsel %vm586, %v64, 4286644096
    %v2482 = vsel %vm586, %v128, 4286644096
    %v2484 = vmax.bf16 %v2479, %v2482
    %v2486 = vsel %vm586, %v192, 4286644096
    %v2488 = vmax.bf16 %v2484, %v2486
    %v2490 = vsel %vm586, %v256, 4286644096
    %v2492 = vmax.bf16 %v2488, %v2490
    %v2494 = vsel %vm586, %v320, 4286644096
    %v2496 = vmax.bf16 %v2492, %v2494
    %v2498 = vsel %vm586, %v384, 4286644096
    %v2500 = vmax.bf16 %v2496, %v2498
    %v2502 = vsel %vm586, %v448, 4286644096
    %v2504 = vmax.bf16 %v2500, %v2502
    %v2506 = vsel %vm586, %v512, 4286644096
    %v2508 = vmax.bf16 %v2504, %v2506
    %v2510 = vsel %vm586, %v576, 4286644096
    %v2512 = vmax.bf16 %v2508, %v2510
    %v2514 = vsel %vm586, %v65, 4286644096
    %v2517 = vsel %vm586, %v129, 4286644096
    %v2519 = vmax.bf16 %v2514, %v2517
    %v2521 = vsel %vm586, %v193, 4286644096
    %v2523 = vmax.bf16 %v2519, %v2521
    %v2525 = vsel %vm586, %v257, 4286644096
    %v2527 = vmax.bf16 %v2523, %v2525
    %v2529 = vsel %vm586, %v321, 4286644096
    %v2531 = vmax.bf16 %v2527, %v2529
    %v2533 = vsel %vm586, %v385, 4286644096
    %v2535 = vmax.bf16 %v2531, %v2533
    %v2537 = vsel %vm586, %v449, 4286644096
    %v2539 = vmax.bf16 %v2535, %v2537
    %v2541 = vsel %vm586, %v513, 4286644096
    %v2543 = vmax.bf16 %v2539, %v2541
    %v2545 = vsel %vm586, %v577, 4286644096
    %v2547 = vmax.bf16 %v2543, %v2545
    %v2549 = vsel %vm586, %v66, 4286644096
    %v2552 = vsel %vm586, %v130, 4286644096
    %v2554 = vmax.bf16 %v2549, %v2552
    %v2556 = vsel %vm586, %v194, 4286644096
    %v2558 = vmax.bf16 %v2554, %v2556
    %v2560 = vsel %vm586, %v258, 4286644096
    %v2562 = vmax.bf16 %v2558, %v2560
    %v2564 = vsel %vm586, %v322, 4286644096
    %v2566 = vmax.bf16 %v2562, %v2564
    %v2568 = vsel %vm586, %v386, 4286644096
    %v2570 = vmax.bf16 %v2566, %v2568
    %v2572 = vsel %vm586, %v450, 4286644096
    %v2574 = vmax.bf16 %v2570, %v2572
    %v2576 = vsel %vm586, %v514, 4286644096
    %v2578 = vmax.bf16 %v2574, %v2576
    %v2580 = vsel %vm586, %v578, 4286644096
    %v2582 = vmax.bf16 %v2578, %v2580
    %v2584 = vsel %vm586, %v67, 4286644096
    %v2587 = vsel %vm586, %v131, 4286644096
    %v2589 = vmax.bf16 %v2584, %v2587
    %v2591 = vsel %vm586, %v195, 4286644096
    %v2593 = vmax.bf16 %v2589, %v2591
    %v2595 = vsel %vm586, %v259, 4286644096
    %v2597 = vmax.bf16 %v2593, %v2595
    %v2599 = vsel %vm586, %v323, 4286644096
    %v2601 = vmax.bf16 %v2597, %v2599
    %v2603 = vsel %vm586, %v387, 4286644096
    %v2605 = vmax.bf16 %v2601, %v2603
    %v2607 = vsel %vm586, %v451, 4286644096
    %v2609 = vmax.bf16 %v2605, %v2607
    %v2611 = vsel %vm586, %v515, 4286644096
    %v2613 = vmax.bf16 %v2609, %v2611
    %v2615 = vsel %vm586, %v579, 4286644096
    %v2617 = vmax.bf16 %v2613, %v2615
    %v2619 = vsel %vm586, %v68, 4286644096
    %v2622 = vsel %vm586, %v132, 4286644096
    %v2624 = vmax.bf16 %v2619, %v2622
    %v2626 = vsel %vm586, %v196, 4286644096
    %v2628 = vmax.bf16 %v2624, %v2626
    %v2630 = vsel %vm586, %v260, 4286644096
    %v2632 = vmax.bf16 %v2628, %v2630
    %v2634 = vsel %vm586, %v324, 4286644096
    %v2636 = vmax.bf16 %v2632, %v2634
    %v2638 = vsel %vm586, %v388, 4286644096
    %v2640 = vmax.bf16 %v2636, %v2638
    %v2642 = vsel %vm586, %v452, 4286644096
    %v2644 = vmax.bf16 %v2640, %v2642
    %v2646 = vsel %vm586, %v516, 4286644096
    %v2648 = vmax.bf16 %v2644, %v2646
    %v2650 = vsel %vm586, %v580, 4286644096
    %v2652 = vmax.bf16 %v2648, %v2650
    %v2654 = vsel %vm586, %v69, 4286644096
    %v2657 = vsel %vm586, %v133, 4286644096
    %v2659 = vmax.bf16 %v2654, %v2657
    %v2661 = vsel %vm586, %v197, 4286644096
    %v2663 = vmax.bf16 %v2659, %v2661
    %v2665 = vsel %vm586, %v261, 4286644096
    %v2667 = vmax.bf16 %v2663, %v2665
    %v2669 = vsel %vm586, %v325, 4286644096
    %v2671 = vmax.bf16 %v2667, %v2669
    %v2673 = vsel %vm586, %v389, 4286644096
    %v2675 = vmax.bf16 %v2671, %v2673
    %v2677 = vsel %vm586, %v453, 4286644096
    %v2679 = vmax.bf16 %v2675, %v2677
    %v2681 = vsel %vm586, %v517, 4286644096
    %v2683 = vmax.bf16 %v2679, %v2681
    %v2685 = vsel %vm586, %v581, 4286644096
    %v2687 = vmax.bf16 %v2683, %v2685
    %v2689 = vsel %vm586, %v70, 4286644096
    %v2692 = vsel %vm586, %v134, 4286644096
    %v2694 = vmax.bf16 %v2689, %v2692
    %v2696 = vsel %vm586, %v198, 4286644096
    %v2698 = vmax.bf16 %v2694, %v2696
    %v2700 = vsel %vm586, %v262, 4286644096
    %v2702 = vmax.bf16 %v2698, %v2700
    %v2704 = vsel %vm586, %v326, 4286644096
    %v2706 = vmax.bf16 %v2702, %v2704
    %v2708 = vsel %vm586, %v390, 4286644096
    %v2710 = vmax.bf16 %v2706, %v2708
    %v2712 = vsel %vm586, %v454, 4286644096
    %v2714 = vmax.bf16 %v2710, %v2712
    %v2716 = vsel %vm586, %v518, 4286644096
    %v2718 = vmax.bf16 %v2714, %v2716
    %v2720 = vsel %vm586, %v582, 4286644096
    %v2722 = vmax.bf16 %v2718, %v2720
    %v2724 = vsel %vm586, %v71, 4286644096
    %v2727 = vsel %vm586, %v135, 4286644096
    %v2729 = vmax.bf16 %v2724, %v2727
    %v2731 = vsel %vm586, %v199, 4286644096
    %v2733 = vmax.bf16 %v2729, %v2731
    %v2735 = vsel %vm586, %v263, 4286644096
    %v2737 = vmax.bf16 %v2733, %v2735
    %v2739 = vsel %vm586, %v327, 4286644096
    %v2741 = vmax.bf16 %v2737, %v2739
    %v2743 = vsel %vm586, %v391, 4286644096
    %v2745 = vmax.bf16 %v2741, %v2743
    %v2747 = vsel %vm586, %v455, 4286644096
    %v2749 = vmax.bf16 %v2745, %v2747
    %v2751 = vsel %vm586, %v519, 4286644096
    %v2753 = vmax.bf16 %v2749, %v2751
    %v2755 = vsel %vm586, %v583, 4286644096
    %v2757 = vmax.bf16 %v2753, %v2755
    %v2759 = vsel %vm586, %v72, 4286644096
    %v2762 = vsel %vm586, %v136, 4286644096
    %v2764 = vmax.bf16 %v2759, %v2762
    %v2766 = vsel %vm586, %v200, 4286644096
    %v2768 = vmax.bf16 %v2764, %v2766
    %v2770 = vsel %vm586, %v264, 4286644096
    %v2772 = vmax.bf16 %v2768, %v2770
    %v2774 = vsel %vm586, %v328, 4286644096
    %v2776 = vmax.bf16 %v2772, %v2774
    %v2778 = vsel %vm586, %v392, 4286644096
    %v2780 = vmax.bf16 %v2776, %v2778
    %v2782 = vsel %vm586, %v456, 4286644096
    %v2784 = vmax.bf16 %v2780, %v2782
    %v2786 = vsel %vm586, %v520, 4286644096
    %v2788 = vmax.bf16 %v2784, %v2786
    %v2790 = vsel %vm586, %v584, 4286644096
    %v2792 = vmax.bf16 %v2788, %v2790
    %v2794 = vsel %vm586, %v73, 4286644096
    %v2797 = vsel %vm586, %v137, 4286644096
    %v2799 = vmax.bf16 %v2794, %v2797
    %v2801 = vsel %vm586, %v201, 4286644096
    %v2803 = vmax.bf16 %v2799, %v2801
    %v2805 = vsel %vm586, %v265, 4286644096
    %v2807 = vmax.bf16 %v2803, %v2805
    %v2809 = vsel %vm586, %v329, 4286644096
    %v2811 = vmax.bf16 %v2807, %v2809
    %v2813 = vsel %vm586, %v393, 4286644096
    %v2815 = vmax.bf16 %v2811, %v2813
    %v2817 = vsel %vm586, %v457, 4286644096
    %v2819 = vmax.bf16 %v2815, %v2817
    %v2821 = vsel %vm586, %v521, 4286644096
    %v2823 = vmax.bf16 %v2819, %v2821
    %v2825 = vsel %vm586, %v585, 4286644096
    %v2827 = vmax.bf16 %v2823, %v2825
    %2828 = vst.msk [vmem:[#allocation2] sm:$0xf] %vm586, %v622
    %2829 = vst.msk [vmem:[#allocation2 + $0x4] sm:$0xf] %vm586, %v657
    %2830 = vst.msk [vmem:[#allocation2 + $0x8] sm:$0xf] %vm586, %v692
    %2831 = vst.msk [vmem:[#allocation2 + $0xc] sm:$0xf] %vm586, %v727
    %2832 = vst.msk [vmem:[#allocation2 + $0x10] sm:$0xf] %vm586, %v762
    %2833 = vst.msk [vmem:[#allocation2 + $0x14] sm:$0xf] %vm586, %v797
    %2834 = vst.msk [vmem:[#allocation2 + $0x18] sm:$0xf] %vm586, %v832
    %2835 = vst.msk [vmem:[#allocation2 + $0x1c] sm:$0xf] %vm586, %v867
    %2836 = vst.msk [vmem:[#allocation2 + $0x20] sm:$0xf] %vm586, %v902
    %2837 = vst.msk [vmem:[#allocation2 + $0x24] sm:$0xf] %vm586, %v937
    %2838 = vst.msk [vmem:[#allocation2 + $0x28] sm:$0xf] %vm586, %v972
    %2839 = vst.msk [vmem:[#allocation2 + $0x2c] sm:$0xf] %vm586, %v1007
    %2840 = vst.msk [vmem:[#allocation2 + $0x30] sm:$0xf] %vm586, %v1042
    %2841 = vst.msk [vmem:[#allocation2 + $0x34] sm:$0xf] %vm586, %v1077
    %2842 = vst.msk [vmem:[#allocation2 + $0x38] sm:$0xf] %vm586, %v1112
    %2843 = vst.msk [vmem:[#allocation2 + $0x3c] sm:$0xf] %vm586, %v1147
    %2844 = vst.msk [vmem:[#allocation2 + $0x40] sm:$0xf] %vm586, %v1182
    %2845 = vst.msk [vmem:[#allocation2 + $0x44] sm:$0xf] %vm586, %v1217
    %2846 = vst.msk [vmem:[#allocation2 + $0x48] sm:$0xf] %vm586, %v1252
    %2847 = vst.msk [vmem:[#allocation2 + $0x4c] sm:$0xf] %vm586, %v1287
    %2848 = vst.msk [vmem:[#allocation2 + $0x50] sm:$0xf] %vm586, %v1322
    %2849 = vst.msk [vmem:[#allocation2 + $0x54] sm:$0xf] %vm586, %v1357
    %2850 = vst.msk [vmem:[#allocation2 + $0x58] sm:$0xf] %vm586, %v1392
    %2851 = vst.msk [vmem:[#allocation2 + $0x5c] sm:$0xf] %vm586, %v1427
    %2852 = vst.msk [vmem:[#allocation2 + $0x60] sm:$0xf] %vm586, %v1462
    %2853 = vst.msk [vmem:[#allocation2 + $0x64] sm:$0xf] %vm586, %v1497
    %2854 = vst.msk [vmem:[#allocation2 + $0x68] sm:$0xf] %vm586, %v1532
    %2855 = vst.msk [vmem:[#allocation2 + $0x6c] sm:$0xf] %vm586, %v1567
    %2856 = vst.msk [vmem:[#allocation2 + $0x70] sm:$0xf] %vm586, %v1602
    %2857 = vst.msk [vmem:[#allocation2 + $0x74] sm:$0xf] %vm586, %v1637
    %2858 = vst.msk [vmem:[#allocation2 + $0x78] sm:$0xf] %vm586, %v1672
    %2859 = vst.msk [vmem:[#allocation2 + $0x7c] sm:$0xf] %vm586, %v1707
    %2860 = vst.msk [vmem:[#allocation2 + $0x80] sm:$0xf] %vm586, %v1742
    %2861 = vst.msk [vmem:[#allocation2 + $0x84] sm:$0xf] %vm586, %v1777
    %2862 = vst.msk [vmem:[#allocation2 + $0x88] sm:$0xf] %vm586, %v1812
    %2863 = vst.msk [vmem:[#allocation2 + $0x8c] sm:$0xf] %vm586, %v1847
    %2864 = vst.msk [vmem:[#allocation2 + $0x90] sm:$0xf] %vm586, %v1882
    %2865 = vst.msk [vmem:[#allocation2 + $0x94] sm:$0xf] %vm586, %v1917
    %2866 = vst.msk [vmem:[#allocation2 + $0x98] sm:$0xf] %vm586, %v1952
    %2867 = vst.msk [vmem:[#allocation2 + $0x9c] sm:$0xf] %vm586, %v1987
    %2868 = vst.msk [vmem:[#allocation2 + $0xa0] sm:$0xf] %vm586, %v2022
    %2869 = vst.msk [vmem:[#allocation2 + $0xa4] sm:$0xf] %vm586, %v2057
    %2870 = vst.msk [vmem:[#allocation2 + $0xa8] sm:$0xf] %vm586, %v2092
    %2871 = vst.msk [vmem:[#allocation2 + $0xac] sm:$0xf] %vm586, %v2127
    %2872 = vst.msk [vmem:[#allocation2 + $0xb0] sm:$0xf] %vm586, %v2162
    %2873 = vst.msk [vmem:[#allocation2 + $0xb4] sm:$0xf] %vm586, %v2197
    %2874 = vst.msk [vmem:[#allocation2 + $0xb8] sm:$0xf] %vm586, %v2232
    %2875 = vst.msk [vmem:[#allocation2 + $0xbc] sm:$0xf] %vm586, %v2267
    %2876 = vst.msk [vmem:[#allocation2 + $0xc0] sm:$0xf] %vm586, %v2302
    %2877 = vst.msk [vmem:[#allocation2 + $0xc4] sm:$0xf] %vm586, %v2337
    %2878 = vst.msk [vmem:[#allocation2 + $0xc8] sm:$0xf] %vm586, %v2372
    %2879 = vst.msk [vmem:[#allocation2 + $0xcc] sm:$0xf] %vm586, %v2407
    %2880 = vst.msk [vmem:[#allocation2 + $0xd0] sm:$0xf] %vm586, %v2442
    %2881 = vst.msk [vmem:[#allocation2 + $0xd4] sm:$0xf] %vm586, %v2477
    %2882 = vst.msk [vmem:[#allocation2 + $0xd8] sm:$0xf] %vm586, %v2512
    %2883 = vst.msk [vmem:[#allocation2 + $0xdc] sm:$0xf] %vm586, %v2547
    %2884 = vst.msk [vmem:[#allocation2 + $0xe0] sm:$0xf] %vm586, %v2582
    %2885 = vst.msk [vmem:[#allocation2 + $0xe4] sm:$0xf] %vm586, %v2617
    %2886 = vst.msk [vmem:[#allocation2 + $0xe8] sm:$0xf] %vm586, %v2652
    %2887 = vst.msk [vmem:[#allocation2 + $0xec] sm:$0xf] %vm586, %v2687
    %2888 = vst.msk [vmem:[#allocation2 + $0xf0] sm:$0xf] %vm586, %v2722
    %2889 = vst.msk [vmem:[#allocation2 + $0xf4] sm:$0xf] %vm586, %v2757
    %2890 = vst.msk [vmem:[#allocation2 + $0xf8] sm:$0xf] %vm586, %v2792
    %2891 = vst.msk [vmem:[#allocation2 + $0xfc] sm:$0xf] %vm586, %v2827
    // Predicated region
    $region6: #{_stem_fwd.3} parent=1 // pred_check
      _
    $region7: #{_stem_fwd.3} parent=1 // pred_check_branch
      %2893 = sbr.rel (0) target = $region9
    $region8: #{_stem_fwd.3} parent=1 // pred_region
      %s2895 = ssub.s32 4096, 4096
      %2896 = vsyncadd [#allocation3], %s2895
      %s2897 = sshll.u32 [#allocation2], 4
      %s2898 = int_to_ptr.vmem [resolvable:$true] %s2897
      %2903 = dma.vmem_to_hbm [thread:$0]  %s2898, 4096, %s1, [#allocation3], 64, 64, 4
    $region9: #{_stem_fwd.3} parent=1 // pred_fallthru
      _
    // Predicated region
    $region10: #{_stem_fwd.3} parent=1 // pred_check
      _
    $region11: #{_stem_fwd.3} parent=1 // pred_check_branch
      %2905 = sbr.rel (0) target = $region13
    $region12: #{_stem_fwd.3} parent=1 // pred_region
      %2906 = dma.done [#allocation3], 4096
    $region13: #{_stem_fwd.3} parent=1 // pred_fallthru
      _
    %2907 = vsyncpa [#allocation3], 1

</llo_original>
